<compile_context>
chip_gen: v7x
topology: tpu7x:2x2x1
jax: 0.10.0
libtpu: 0.0.40
codegen_flags: <defaults>
</compile_context>

<pallas_src>
import functools

import jax
import jax.numpy as jnp
from jax import lax
from jax.experimental import pallas as pl
from jax.experimental.pallas import tpu as pltpu


def _lstm_decoder_kernel(n_layers, hidden_size, seq_len_m1,
                         props_ref, h0_ref, c0_ref, *refs):
    """Stacked-LSTM recurrence (fully unrolled) + one-matmul decoder epilogue."""
    H = hidden_size
    L = n_layers
    T = seq_len_m1

    # ---- unpack refs ------------------------------------------------------
    # per layer l:  w_ih_T (in_l,4H), w_hh_T (H,4H), b (1,4H)
    # then:         w_dec_blk (T*H, T*O), b_dec_rep (1, T*O)
    # outputs:      out (B, T*O), hN (L,B,H), cN (L,B,H)
    # scratch:      htop (B, T*H)
    idx = 0
    w_ih, w_hh, b_l = [], [], []
    for _ in range(L):
        w_ih.append(refs[idx][...]); idx += 1
        w_hh.append(refs[idx][...]); idx += 1
        b_l.append(refs[idx][...]); idx += 1
    w_dec_blk = refs[idx][...]; idx += 1
    b_dec_rep = refs[idx][...]; idx += 1
    out_ref = refs[idx]; idx += 1
    hN_ref = refs[idx]; idx += 1
    cN_ref = refs[idx]; idx += 1
    htop_ref = refs[idx]; idx += 1

    x0 = props_ref[...].astype(jnp.float32)          # (B, P) — same at every t
    B = x0.shape[0]

    # Loop-invariant layer-0 input contribution (ONE-shot input), hoisted off
    # the critical path; bias folded in once.
    pre0 = jnp.dot(x0, w_ih[0], preferred_element_type=jnp.float32) + b_l[0]

    # Hoisted (1,4H)->(B,4H) bias broadcasts for upper layers.
    b_bc = [jnp.broadcast_to(b_l[l], (B, 4 * H)) for l in range(1, L)]

    # Flat per-layer carry (no (L,B,H) restack inside the loop).
    h0_all = h0_ref[...].astype(jnp.float32)
    c0_all = c0_ref[...].astype(jnp.float32)
    hs = [h0_all[l] for l in range(L)]
    cs = [c0_all[l] for l in range(L)]

    def gate_update(gates, c_prev):
        # Single-EUP sigmoid (sigmoid(x) == 0.5*tanh(0.5*x) + 0.5), applied to
        # the full (B,4H) tile; one full-width tanh likewise.  PyTorch gate
        # order: i, f, g, o.
        sig = 0.5 * jnp.tanh(0.5 * gates) + 0.5
        tnh = jnp.tanh(gates)
        i_g = sig[:, 0 * H:1 * H]
        f_g = sig[:, 1 * H:2 * H]
        g_g = tnh[:, 2 * H:3 * H]
        o_g = sig[:, 3 * H:4 * H]
        c_new = f_g * c_prev + i_g * g_g
        h_new = o_g * jnp.tanh(c_new)
        return h_new, c_new

    # T is a small static constant -> full unroll (visible instruction stream).
    for t in range(T):
        # layer 0: only the recurrent matmul is on the serial chain.
        gates = pre0 + jnp.dot(hs[0], w_hh[0], preferred_element_type=jnp.float32)
        h_new, c_new = gate_update(gates, cs[0])
        hs[0], cs[0] = h_new, c_new
        x = h_new
        for l in range(1, L):
            # Un-fused input/recurrent matmuls: no per-step lane concat.
            gates = (jnp.dot(x, w_ih[l], preferred_element_type=jnp.float32)
                     + jnp.dot(hs[l], w_hh[l], preferred_element_type=jnp.float32)
                     + b_bc[l - 1])
            h_new, c_new = gate_update(gates, cs[l])
            hs[l], cs[l] = h_new, c_new
            x = h_new
            # TODO(synk): recurrent dropout between layers is a training-only
            # op (inference no-op), intentionally omitted.
        # Stream top-layer h into VMEM scratch (store hides under MXU/EUP slack).
        htop_ref[:, t * H:(t + 1) * H] = x

    # ---- decoder epilogue: one matmul, lane-dense (B, T*O) store ----------
    out_ref[...] = (jnp.dot(htop_ref[...], w_dec_blk,
                            preferred_element_type=jnp.float32) + b_dec_rep)

    # Final states, written once (aliased onto h0/c0 buffers).
    hN_ref[...] = jnp.stack(hs, axis=0)
    cN_ref[...] = jnp.stack(cs, axis=0)


def conditional_smiles_rnn_forward(properties, hidden, params, *, seq_len):
    """Equivalent of ConditionalSmilesRnn.forward(x, properties, hidden) default path."""
    h0, c0 = hidden
    n_layers, B, H = h0.shape
    T = seq_len - 1
    P = properties.shape[1]
    w_dec_T = params["decoder_w_T"]               # (H, O)
    b_dec = params["decoder_b"]                   # (1, O)
    O = w_dec_T.shape[1]

    # Per-layer weights kept split (input & recurrent matmuls un-fused in-kernel).
    flat_weights = []
    for l in range(n_layers):
        w_ih_T, w_hh_T, b = params["lstm"][l]
        flat_weights += [w_ih_T, w_hh_T, b]

    # Block-diagonal decoder weight: (T*H, T*O) with w_dec_T on the diagonal.
    # Applied to the (B, T*H) stacked top-layer hiddens it yields the
    # lane-dense batch-first (B, T*O) logits slab in a single MXU pass.
    w_dec_blk = jnp.kron(jnp.eye(T, dtype=w_dec_T.dtype), w_dec_T)
    b_dec_rep = jnp.tile(b_dec, (1, T))           # (1, T*O)

    kernel = functools.partial(_lstm_decoder_kernel, n_layers, H, T)
    vmem = pl.BlockSpec(memory_space=pltpu.MemorySpace.VMEM)
    n_inputs = 3 + len(flat_weights) + 2

    # Advisory cost hint for XLA scheduling around this sequential kernel.
    flops = (2 * B * P * 4 * H
             + T * 2 * B * H * 4 * H
             + T * (n_layers - 1) * 2 * (2 * B * H * 4 * H)
             + 2 * B * (T * H) * (T * O))
    transcendentals = T * n_layers * 9 * B * H
    bytes_accessed = 4 * (properties.size + h0.size + c0.size
                          + sum(int(w.size) for w in flat_weights)
                          + w_dec_blk.size + b_dec_rep.size
                          + B * T * O + 2 * n_layers * B * H)

    out_flat, hN, cN = pl.pallas_call(
        kernel,
        out_shape=(
            jax.ShapeDtypeStruct((B, T * O), jnp.float32),
            jax.ShapeDtypeStruct((n_layers, B, H), jnp.float32),
            jax.ShapeDtypeStruct((n_layers, B, H), jnp.float32),
        ),
        in_specs=[vmem] * n_inputs,
        out_specs=(vmem, vmem, vmem),
        scratch_shapes=[pltpu.VMEM((B, T * H), jnp.float32)],
        input_output_aliases={1: 1, 2: 2},        # h0 -> h_n, c0 -> c_n
        cost_estimate=pl.CostEstimate(flops=flops,
                                      transcendentals=transcendentals,
                                      bytes_accessed=bytes_accessed),
    )(properties, h0, c0, *flat_weights, w_dec_blk, b_dec_rep)

    output = out_flat.reshape(B, T, O)            # free reshape, batch_first
    return output, (hN, cN)


def init_params(key, input_size, property_size, hidden_size, output_size, n_layers):
    """Deterministic synthetic parameter init mirroring the module's shapes."""
    H = hidden_size
    keys = jax.random.split(key, 2 * n_layers + 2)
    lstm = []
    for l in range(n_layers):
        in_l = property_size if l == 0 else hidden_size
        # stand-ins for nn.init.orthogonal_ (deterministic, well-scaled)
        w_ih = jax.random.normal(keys[2 * l], (4 * H, in_l), jnp.float32) * 0.2
        w_hh = jax.random.normal(keys[2 * l + 1], (4 * H, H), jnp.float32) * 0.2
        # biases: zeros, with the forget-gate quarter set to 1 (as in init_weights)
        b_ih = jnp.zeros((4 * H,), jnp.float32).at[H:2 * H].set(1.0)
        b_hh = jnp.zeros((4 * H,), jnp.float32).at[H:2 * H].set(1.0)
        b = (b_ih + b_hh).reshape(1, 4 * H)
        lstm.append((w_ih.T, w_hh.T, b))
    # decoder: xavier_uniform weight, zero bias
    limit = (6.0 / (hidden_size + output_size)) ** 0.5
    w_dec = jax.random.uniform(keys[-2], (output_size, hidden_size), jnp.float32,
                               -limit, limit)
    b_dec = jnp.zeros((1, output_size), jnp.float32)
    # encoder Embedding exists in the module but is unused by this forward path
    encoder = jax.random.normal(keys[-1], (input_size, hidden_size), jnp.float32) * 0.1
    return {"lstm": lstm, "decoder_w_T": w_dec.T, "decoder_b": b_dec,
            "encoder": encoder}


def _reference_forward(properties, hidden, params, *, seq_len):
    """Pure-JAX reference of the same forward pass (for correctness checking)."""
    h0, c0 = hidden
    n_layers, B, H = h0.shape
    T = seq_len - 1
    x0 = properties.astype(jnp.float32)

    def step(carry, _):
        h, c = carry
        x = x0
        hs, cs = [], []
        for l in range(n_layers):
            w_ih_T, w_hh_T, b = params["lstm"][l]
            gates = x @ w_ih_T + h[l] @ w_hh_T + b
            i_g = jax.nn.sigmoid(gates[:, 0 * H:1 * H])
            f_g = jax.nn.sigmoid(gates[:, 1 * H:2 * H])
            g_g = jnp.tanh(gates[:, 2 * H:3 * H])
            o_g = jax.nn.sigmoid(gates[:, 3 * H:4 * H])
            c_l = f_g * c[l] + i_g * g_g
            h_l = o_g * jnp.tanh(c_l)
            hs.append(h_l); cs.append(c_l)
            x = h_l
        logits = x @ params["decoder_w_T"] + params["decoder_b"]
        return (jnp.stack(hs, 0), jnp.stack(cs, 0)), logits

    (hN, cN), out_tb = lax.scan(step, (h0, c0), None, length=T)
    return jnp.transpose(out_tb, (1, 0, 2)), (hN, cN)


if __name__ == "__main__":
    # module config (small shapes)
    input_size = 16      # vocab (encoder only; unused in this forward path)
    property_size = 4
    hidden_size = 32
    output_size = 16
    n_layers = 2
    seq_len = 9          # forward produces seq_len - 1 = 8 steps
    batch = 2

    key = jax.random.PRNGKey(0)
    kp, kprops = jax.random.split(key)
    params = init_params(kp, input_size, property_size, hidden_size,
                         output_size, n_layers)

    properties = jax.random.normal(kprops, (batch, property_size), jnp.float32)
    hidden = (jnp.zeros((n_layers, batch, hidden_size), jnp.float32),
              jnp.zeros((n_layers, batch, hidden_size), jnp.float32))

    # Reference computed first (h0/c0 are donated/aliased to the kernel outputs).
    ref_out, (ref_h, ref_c) = _reference_forward(properties, hidden, params,
                                                 seq_len=seq_len)
    jax.block_until_ready((ref_out, ref_h, ref_c))

    out, (hN, cN) = conditional_smiles_rnn_forward(properties, hidden, params,
                                                   seq_len=seq_len)
    jax.block_until_ready((out, hN, cN))

    assert out.shape == (batch, seq_len - 1, output_size)
    assert hN.shape == (n_layers, batch, hidden_size)
    assert jnp.allclose(out, ref_out, atol=1e-5, rtol=1e-5)
    assert jnp.allclose(hN, ref_h, atol=1e-5, rtol=1e-5)
    assert jnp.allclose(cN, ref_c, atol=1e-5, rtol=1e-5)

    print("KERNEL_OK")
</pallas_src>

<mosaic_0001>
module attributes {stable_mosaic.version = 11 : i64} {
  func.func @_lstm_decoder_kernel(%arg0: memref<2x4xf32, #tpu.memory_space<vmem>>, %arg1: memref<2x2x32xf32, #tpu.memory_space<vmem>>, %arg2: memref<2x2x32xf32, #tpu.memory_space<vmem>>, %arg3: memref<4x128xf32, #tpu.memory_space<vmem>>, %arg4: memref<32x128xf32, #tpu.memory_space<vmem>>, %arg5: memref<1x128xf32, #tpu.memory_space<vmem>>, %arg6: memref<32x128xf32, #tpu.memory_space<vmem>>, %arg7: memref<32x128xf32, #tpu.memory_space<vmem>>, %arg8: memref<1x128xf32, #tpu.memory_space<vmem>>, %arg9: memref<256x128xf32, #tpu.memory_space<vmem>>, %arg10: memref<1x128xf32, #tpu.memory_space<vmem>>, %arg11: memref<2x128xf32, #tpu.memory_space<vmem>>, %arg12: memref<2x2x32xf32, #tpu.memory_space<vmem>>, %arg13: memref<2x2x32xf32, #tpu.memory_space<vmem>>, %arg14: memref<2x256xf32, #tpu.memory_space<vmem>>) attributes {dimension_semantics = [], scalar_prefetch = 0 : i64, scratch_operands = 1 : i64, tpu.core_type = #tpu.core_type<tc>} {
    %c0 = arith.constant 0 : index
    %c0_0 = arith.constant 0 : index
    %0 = vector.load %arg3[%c0, %c0_0] : memref<4x128xf32, #tpu.memory_space<vmem>>, vector<4x128xf32>
    %c0_1 = arith.constant 0 : index
    %c0_2 = arith.constant 0 : index
    %1 = vector.load %arg4[%c0_1, %c0_2] : memref<32x128xf32, #tpu.memory_space<vmem>>, vector<32x128xf32>
    %c0_3 = arith.constant 0 : index
    %c0_4 = arith.constant 0 : index
    %2 = vector.load %arg5[%c0_3, %c0_4] : memref<1x128xf32, #tpu.memory_space<vmem>>, vector<1x128xf32>
    %c0_5 = arith.constant 0 : index
    %c0_6 = arith.constant 0 : index
    %3 = vector.load %arg6[%c0_5, %c0_6] : memref<32x128xf32, #tpu.memory_space<vmem>>, vector<32x128xf32>
    %c0_7 = arith.constant 0 : index
    %c0_8 = arith.constant 0 : index
    %4 = vector.load %arg7[%c0_7, %c0_8] : memref<32x128xf32, #tpu.memory_space<vmem>>, vector<32x128xf32>
    %c0_9 = arith.constant 0 : index
    %c0_10 = arith.constant 0 : index
    %5 = vector.load %arg8[%c0_9, %c0_10] : memref<1x128xf32, #tpu.memory_space<vmem>>, vector<1x128xf32>
    %c0_11 = arith.constant 0 : index
    %c0_12 = arith.constant 0 : index
    %6 = vector.load %arg9[%c0_11, %c0_12] : memref<256x128xf32, #tpu.memory_space<vmem>>, vector<256x128xf32>
    %c0_13 = arith.constant 0 : index
    %c0_14 = arith.constant 0 : index
    %7 = vector.load %arg10[%c0_13, %c0_14] : memref<1x128xf32, #tpu.memory_space<vmem>>, vector<1x128xf32>
    %c0_15 = arith.constant 0 : index
    %c0_16 = arith.constant 0 : index
    %8 = vector.load %arg0[%c0_15, %c0_16] : memref<2x4xf32, #tpu.memory_space<vmem>>, vector<2x4xf32>
    %cst = arith.constant dense<0.000000e+00> : vector<2x128xf32>
    %9 = tpu.matmul %8, %0, %cst {dimension_numbers = #tpu.dot_dimension_numbers<[1], [0], [0], [1], [0, 0, 1, 1], [], []>} : vector<2x4xf32>, vector<4x128xf32>, vector<2x128xf32> -> vector<2x128xf32>
    %10 = vector.broadcast %2 : vector<1x128xf32> to vector<2x128xf32>
    %11 = arith.addf %9, %10 : vector<2x128xf32>
    %12 = vector.shape_cast %5 : vector<1x128xf32> to vector<1x128xf32>
    %13 = vector.broadcast %12 : vector<1x128xf32> to vector<2x128xf32>
    %c0_17 = arith.constant 0 : index
    %c0_18 = arith.constant 0 : index
    %c0_19 = arith.constant 0 : index
    %14 = vector.load %arg1[%c0_17, %c0_18, %c0_19] : memref<2x2x32xf32, #tpu.memory_space<vmem>>, vector<2x2x32xf32>
    %c0_20 = arith.constant 0 : index
    %c0_21 = arith.constant 0 : index
    %c0_22 = arith.constant 0 : index
    %15 = vector.load %arg2[%c0_20, %c0_21, %c0_22] : memref<2x2x32xf32, #tpu.memory_space<vmem>>, vector<2x2x32xf32>
    %16 = vector.extract_strided_slice %14 {offsets = [0, 0, 0], sizes = [1, 2, 32], strides = [1, 1, 1]} : vector<2x2x32xf32> to vector<1x2x32xf32>
    %17 = vector.shape_cast %16 : vector<1x2x32xf32> to vector<2x32xf32>
    %18 = vector.extract_strided_slice %14 {offsets = [1, 0, 0], sizes = [1, 2, 32], strides = [1, 1, 1]} : vector<2x2x32xf32> to vector<1x2x32xf32>
    %19 = vector.shape_cast %18 : vector<1x2x32xf32> to vector<2x32xf32>
    %20 = vector.extract_strided_slice %15 {offsets = [0, 0, 0], sizes = [1, 2, 32], strides = [1, 1, 1]} : vector<2x2x32xf32> to vector<1x2x32xf32>
    %21 = vector.shape_cast %20 : vector<1x2x32xf32> to vector<2x32xf32>
    %22 = vector.extract_strided_slice %15 {offsets = [1, 0, 0], sizes = [1, 2, 32], strides = [1, 1, 1]} : vector<2x2x32xf32> to vector<1x2x32xf32>
    %23 = vector.shape_cast %22 : vector<1x2x32xf32> to vector<2x32xf32>
    %cst_23 = arith.constant dense<0.000000e+00> : vector<2x128xf32>
    %24 = tpu.matmul %17, %1, %cst_23 {dimension_numbers = #tpu.dot_dimension_numbers<[1], [0], [0], [1], [0, 0, 1, 1], [], []>} : vector<2x32xf32>, vector<32x128xf32>, vector<2x128xf32> -> vector<2x128xf32>
    %25 = arith.addf %11, %24 : vector<2x128xf32>
    %cst_24 = arith.constant 5.000000e-01 : f32
    %26 = vector.broadcast %cst_24 : f32 to vector<2x128xf32>
    %27 = arith.mulf %26, %25 : vector<2x128xf32>
    %28 = math.tanh %27 : vector<2x128xf32>
    %cst_25 = arith.constant 5.000000e-01 : f32
    %29 = vector.broadcast %cst_25 : f32 to vector<2x128xf32>
    %30 = arith.mulf %29, %28 : vector<2x128xf32>
    %cst_26 = arith.constant 5.000000e-01 : f32
    %31 = vector.broadcast %cst_26 : f32 to vector<2x128xf32>
    %32 = arith.addf %30, %31 : vector<2x128xf32>
    %33 = math.tanh %25 : vector<2x128xf32>
    %34 = vector.extract_strided_slice %32 {offsets = [0, 0], sizes = [2, 32], strides = [1, 1]} : vector<2x128xf32> to vector<2x32xf32>
    %35 = vector.extract_strided_slice %32 {offsets = [0, 32], sizes = [2, 32], strides = [1, 1]} : vector<2x128xf32> to vector<2x32xf32>
    %36 = vector.extract_strided_slice %33 {offsets = [0, 64], sizes = [2, 32], strides = [1, 1]} : vector<2x128xf32> to vector<2x32xf32>
    %37 = vector.extract_strided_slice %32 {offsets = [0, 96], sizes = [2, 32], strides = [1, 1]} : vector<2x128xf32> to vector<2x32xf32>
    %38 = arith.mulf %35, %21 : vector<2x32xf32>
    %39 = arith.mulf %34, %36 : vector<2x32xf32>
    %40 = arith.addf %38, %39 : vector<2x32xf32>
    %41 = math.tanh %40 : vector<2x32xf32>
    %42 = arith.mulf %37, %41 : vector<2x32xf32>
    %cst_27 = arith.constant dense<0.000000e+00> : vector<2x128xf32>
    %43 = tpu.matmul %42, %3, %cst_27 {dimension_numbers = #tpu.dot_dimension_numbers<[1], [0], [0], [1], [0, 0, 1, 1], [], []>} : vector<2x32xf32>, vector<32x128xf32>, vector<2x128xf32> -> vector<2x128xf32>
    %cst_28 = arith.constant dense<0.000000e+00> : vector<2x128xf32>
    %44 = tpu.matmul %19, %4, %cst_28 {dimension_numbers = #tpu.dot_dimension_numbers<[1], [0], [0], [1], [0, 0, 1, 1], [], []>} : vector<2x32xf32>, vector<32x128xf32>, vector<2x128xf32> -> vector<2x128xf32>
    %45 = arith.addf %43, %44 : vector<2x128xf32>
    %46 = arith.addf %45, %13 : vector<2x128xf32>
    %cst_29 = arith.constant 5.000000e-01 : f32
    %47 = vector.broadcast %cst_29 : f32 to vector<2x128xf32>
    %48 = arith.mulf %47, %46 : vector<2x128xf32>
    %49 = math.tanh %48 : vector<2x128xf32>
    %cst_30 = arith.constant 5.000000e-01 : f32
    %50 = vector.broadcast %cst_30 : f32 to vector<2x128xf32>
    %51 = arith.mulf %50, %49 : vector<2x128xf32>
    %cst_31 = arith.constant 5.000000e-01 : f32
    %52 = vector.broadcast %cst_31 : f32 to vector<2x128xf32>
    %53 = arith.addf %51, %52 : vector<2x128xf32>
    %54 = math.tanh %46 : vector<2x128xf32>
    %55 = vector.extract_strided_slice %53 {offsets = [0, 0], sizes = [2, 32], strides = [1, 1]} : vector<2x128xf32> to vector<2x32xf32>
    %56 = vector.extract_strided_slice %53 {offsets = [0, 32], sizes = [2, 32], strides = [1, 1]} : vector<2x128xf32> to vector<2x32xf32>
    %57 = vector.extract_strided_slice %54 {offsets = [0, 64], sizes = [2, 32], strides = [1, 1]} : vector<2x128xf32> to vector<2x32xf32>
    %58 = vector.extract_strided_slice %53 {offsets = [0, 96], sizes = [2, 32], strides = [1, 1]} : vector<2x128xf32> to vector<2x32xf32>
    %59 = arith.mulf %56, %23 : vector<2x32xf32>
    %60 = arith.mulf %55, %57 : vector<2x32xf32>
    %61 = arith.addf %59, %60 : vector<2x32xf32>
    %62 = math.tanh %61 : vector<2x32xf32>
    %63 = arith.mulf %58, %62 : vector<2x32xf32>
    %c0_32 = arith.constant 0 : index
    %c0_33 = arith.constant 0 : index
    %64 = vector.load %arg14[%c0_32, %c0_33] : memref<2x256xf32, #tpu.memory_space<vmem>>, vector<2x32xf32>
    tpu.vector_store %arg14[%c0_32, %c0_33], %63 {strides = array<i32>} : memref<2x256xf32, #tpu.memory_space<vmem>>, vector<2x32xf32>,
    %cst_34 = arith.constant dense<0.000000e+00> : vector<2x128xf32>
    %65 = tpu.matmul %42, %1, %cst_34 {dimension_numbers = #tpu.dot_dimension_numbers<[1], [0], [0], [1], [0, 0, 1, 1], [], []>} : vector<2x32xf32>, vector<32x128xf32>, vector<2x128xf32> -> vector<2x128xf32>
    %66 = arith.addf %11, %65 : vector<2x128xf32>
    %cst_35 = arith.constant 5.000000e-01 : f32
    %67 = vector.broadcast %cst_35 : f32 to vector<2x128xf32>
    %68 = arith.mulf %67, %66 : vector<2x128xf32>
    %69 = math.tanh %68 : vector<2x128xf32>
    %cst_36 = arith.constant 5.000000e-01 : f32
    %70 = vector.broadcast %cst_36 : f32 to vector<2x128xf32>
    %71 = arith.mulf %70, %69 : vector<2x128xf32>
    %cst_37 = arith.constant 5.000000e-01 : f32
    %72 = vector.broadcast %cst_37 : f32 to vector<2x128xf32>
    %73 = arith.addf %71, %72 : vector<2x128xf32>
    %74 = math.tanh %66 : vector<2x128xf32>
    %75 = vector.extract_strided_slice %73 {offsets = [0, 0], sizes = [2, 32], strides = [1, 1]} : vector<2x128xf32> to vector<2x32xf32>
    %76 = vector.extract_strided_slice %73 {offsets = [0, 32], sizes = [2, 32], strides = [1, 1]} : vector<2x128xf32> to vector<2x32xf32>
    %77 = vector.extract_strided_slice %74 {offsets = [0, 64], sizes = [2, 32], strides = [1, 1]} : vector<2x128xf32> to vector<2x32xf32>
    %78 = vector.extract_strided_slice %73 {offsets = [0, 96], sizes = [2, 32], strides = [1, 1]} : vector<2x128xf32> to vector<2x32xf32>
    %79 = arith.mulf %76, %40 : vector<2x32xf32>
    %80 = arith.mulf %75, %77 : vector<2x32xf32>
    %81 = arith.addf %79, %80 : vector<2x32xf32>
    %82 = math.tanh %81 : vector<2x32xf32>
    %83 = arith.mulf %78, %82 : vector<2x32xf32>
    %cst_38 = arith.constant dense<0.000000e+00> : vector<2x128xf32>
    %84 = tpu.matmul %83, %3, %cst_38 {dimension_numbers = #tpu.dot_dimension_numbers<[1], [0], [0], [1], [0, 0, 1, 1], [], []>} : vector<2x32xf32>, vector<32x128xf32>, vector<2x128xf32> -> vector<2x128xf32>
    %cst_39 = arith.constant dense<0.000000e+00> : vector<2x128xf32>
    %85 = tpu.matmul %63, %4, %cst_39 {dimension_numbers = #tpu.dot_dimension_numbers<[1], [0], [0], [1], [0, 0, 1, 1], [], []>} : vector<2x32xf32>, vector<32x128xf32>, vector<2x128xf32> -> vector<2x128xf32>
    %86 = arith.addf %84, %85 : vector<2x128xf32>
    %87 = arith.addf %86, %13 : vector<2x128xf32>
    %cst_40 = arith.constant 5.000000e-01 : f32
    %88 = vector.broadcast %cst_40 : f32 to vector<2x128xf32>
    %89 = arith.mulf %88, %87 : vector<2x128xf32>
    %90 = math.tanh %89 : vector<2x128xf32>
    %cst_41 = arith.constant 5.000000e-01 : f32
    %91 = vector.broadcast %cst_41 : f32 to vector<2x128xf32>
    %92 = arith.mulf %91, %90 : vector<2x128xf32>
    %cst_42 = arith.constant 5.000000e-01 : f32
    %93 = vector.broadcast %cst_42 : f32 to vector<2x128xf32>
    %94 = arith.addf %92, %93 : vector<2x128xf32>
    %95 = math.tanh %87 : vector<2x128xf32>
    %96 = vector.extract_strided_slice %94 {offsets = [0, 0], sizes = [2, 32], strides = [1, 1]} : vector<2x128xf32> to vector<2x32xf32>
    %97 = vector.extract_strided_slice %94 {offsets = [0, 32], sizes = [2, 32], strides = [1, 1]} : vector<2x128xf32> to vector<2x32xf32>
    %98 = vector.extract_strided_slice %95 {offsets = [0, 64], sizes = [2, 32], strides = [1, 1]} : vector<2x128xf32> to vector<2x32xf32>
    %99 = vector.extract_strided_slice %94 {offsets = [0, 96], sizes = [2, 32], strides = [1, 1]} : vector<2x128xf32> to vector<2x32xf32>
    %100 = arith.mulf %97, %61 : vector<2x32xf32>
    %101 = arith.mulf %96, %98 : vector<2x32xf32>
    %102 = arith.addf %100, %101 : vector<2x32xf32>
    %103 = math.tanh %102 : vector<2x32xf32>
    %104 = arith.mulf %99, %103 : vector<2x32xf32>
    %c0_43 = arith.constant 0 : index
    %c32 = arith.constant 32 : index
    %105 = vector.load %arg14[%c0_43, %c32] : memref<2x256xf32, #tpu.memory_space<vmem>>, vector<2x32xf32>
    tpu.vector_store %arg14[%c0_43, %c32], %104 {strides = array<i32>} : memref<2x256xf32, #tpu.memory_space<vmem>>, vector<2x32xf32>,
    %cst_44 = arith.constant dense<0.000000e+00> : vector<2x128xf32>
    %106 = tpu.matmul %83, %1, %cst_44 {dimension_numbers = #tpu.dot_dimension_numbers<[1], [0], [0], [1], [0, 0, 1, 1], [], []>} : vector<2x32xf32>, vector<32x128xf32>, vector<2x128xf32> -> vector<2x128xf32>
    %107 = arith.addf %11, %106 : vector<2x128xf32>
    %cst_45 = arith.constant 5.000000e-01 : f32
    %108 = vector.broadcast %cst_45 : f32 to vector<2x128xf32>
    %109 = arith.mulf %108, %107 : vector<2x128xf32>
    %110 = math.tanh %109 : vector<2x128xf32>
    %cst_46 = arith.constant 5.000000e-01 : f32
    %111 = vector.broadcast %cst_46 : f32 to vector<2x128xf32>
    %112 = arith.mulf %111, %110 : vector<2x128xf32>
    %cst_47 = arith.constant 5.000000e-01 : f32
    %113 = vector.broadcast %cst_47 : f32 to vector<2x128xf32>
    %114 = arith.addf %112, %113 : vector<2x128xf32>
    %115 = math.tanh %107 : vector<2x128xf32>
    %116 = vector.extract_strided_slice %114 {offsets = [0, 0], sizes = [2, 32], strides = [1, 1]} : vector<2x128xf32> to vector<2x32xf32>
    %117 = vector.extract_strided_slice %114 {offsets = [0, 32], sizes = [2, 32], strides = [1, 1]} : vector<2x128xf32> to vector<2x32xf32>
    %118 = vector.extract_strided_slice %115 {offsets = [0, 64], sizes = [2, 32], strides = [1, 1]} : vector<2x128xf32> to vector<2x32xf32>
    %119 = vector.extract_strided_slice %114 {offsets = [0, 96], sizes = [2, 32], strides = [1, 1]} : vector<2x128xf32> to vector<2x32xf32>
    %120 = arith.mulf %117, %81 : vector<2x32xf32>
    %121 = arith.mulf %116, %118 : vector<2x32xf32>
    %122 = arith.addf %120, %121 : vector<2x32xf32>
    %123 = math.tanh %122 : vector<2x32xf32>
    %124 = arith.mulf %119, %123 : vector<2x32xf32>
    %cst_48 = arith.constant dense<0.000000e+00> : vector<2x128xf32>
    %125 = tpu.matmul %124, %3, %cst_48 {dimension_numbers = #tpu.dot_dimension_numbers<[1], [0], [0], [1], [0, 0, 1, 1], [], []>} : vector<2x32xf32>, vector<32x128xf32>, vector<2x128xf32> -> vector<2x128xf32>
    %cst_49 = arith.constant dense<0.000000e+00> : vector<2x128xf32>
    %126 = tpu.matmul %104, %4, %cst_49 {dimension_numbers = #tpu.dot_dimension_numbers<[1], [0], [0], [1], [0, 0, 1, 1], [], []>} : vector<2x32xf32>, vector<32x128xf32>, vector<2x128xf32> -> vector<2x128xf32>
    %127 = arith.addf %125, %126 : vector<2x128xf32>
    %128 = arith.addf %127, %13 : vector<2x128xf32>
    %cst_50 = arith.constant 5.000000e-01 : f32
    %129 = vector.broadcast %cst_50 : f32 to vector<2x128xf32>
    %130 = arith.mulf %129, %128 : vector<2x128xf32>
    %131 = math.tanh %130 : vector<2x128xf32>
    %cst_51 = arith.constant 5.000000e-01 : f32
    %132 = vector.broadcast %cst_51 : f32 to vector<2x128xf32>
    %133 = arith.mulf %132, %131 : vector<2x128xf32>
    %cst_52 = arith.constant 5.000000e-01 : f32
    %134 = vector.broadcast %cst_52 : f32 to vector<2x128xf32>
    %135 = arith.addf %133, %134 : vector<2x128xf32>
    %136 = math.tanh %128 : vector<2x128xf32>
    %137 = vector.extract_strided_slice %135 {offsets = [0, 0], sizes = [2, 32], strides = [1, 1]} : vector<2x128xf32> to vector<2x32xf32>
    %138 = vector.extract_strided_slice %135 {offsets = [0, 32], sizes = [2, 32], strides = [1, 1]} : vector<2x128xf32> to vector<2x32xf32>
    %139 = vector.extract_strided_slice %136 {offsets = [0, 64], sizes = [2, 32], strides = [1, 1]} : vector<2x128xf32> to vector<2x32xf32>
    %140 = vector.extract_strided_slice %135 {offsets = [0, 96], sizes = [2, 32], strides = [1, 1]} : vector<2x128xf32> to vector<2x32xf32>
    %141 = arith.mulf %138, %102 : vector<2x32xf32>
    %142 = arith.mulf %137, %139 : vector<2x32xf32>
    %143 = arith.addf %141, %142 : vector<2x32xf32>
    %144 = math.tanh %143 : vector<2x32xf32>
    %145 = arith.mulf %140, %144 : vector<2x32xf32>
    %c0_53 = arith.constant 0 : index
    %c64 = arith.constant 64 : index
    %146 = vector.load %arg14[%c0_53, %c64] : memref<2x256xf32, #tpu.memory_space<vmem>>, vector<2x32xf32>
    tpu.vector_store %arg14[%c0_53, %c64], %145 {strides = array<i32>} : memref<2x256xf32, #tpu.memory_space<vmem>>, vector<2x32xf32>,
    %cst_54 = arith.constant dense<0.000000e+00> : vector<2x128xf32>
    %147 = tpu.matmul %124, %1, %cst_54 {dimension_numbers = #tpu.dot_dimension_numbers<[1], [0], [0], [1], [0, 0, 1, 1], [], []>} : vector<2x32xf32>, vector<32x128xf32>, vector<2x128xf32> -> vector<2x128xf32>
    %148 = arith.addf %11, %147 : vector<2x128xf32>
    %cst_55 = arith.constant 5.000000e-01 : f32
    %149 = vector.broadcast %cst_55 : f32 to vector<2x128xf32>
    %150 = arith.mulf %149, %148 : vector<2x128xf32>
    %151 = math.tanh %150 : vector<2x128xf32>
    %cst_56 = arith.constant 5.000000e-01 : f32
    %152 = vector.broadcast %cst_56 : f32 to vector<2x128xf32>
    %153 = arith.mulf %152, %151 : vector<2x128xf32>
    %cst_57 = arith.constant 5.000000e-01 : f32
    %154 = vector.broadcast %cst_57 : f32 to vector<2x128xf32>
    %155 = arith.addf %153, %154 : vector<2x128xf32>
    %156 = math.tanh %148 : vector<2x128xf32>
    %157 = vector.extract_strided_slice %155 {offsets = [0, 0], sizes = [2, 32], strides = [1, 1]} : vector<2x128xf32> to vector<2x32xf32>
    %158 = vector.extract_strided_slice %155 {offsets = [0, 32], sizes = [2, 32], strides = [1, 1]} : vector<2x128xf32> to vector<2x32xf32>
    %159 = vector.extract_strided_slice %156 {offsets = [0, 64], sizes = [2, 32], strides = [1, 1]} : vector<2x128xf32> to vector<2x32xf32>
    %160 = vector.extract_strided_slice %155 {offsets = [0, 96], sizes = [2, 32], strides = [1, 1]} : vector<2x128xf32> to vector<2x32xf32>
    %161 = arith.mulf %158, %122 : vector<2x32xf32>
    %162 = arith.mulf %157, %159 : vector<2x32xf32>
    %163 = arith.addf %161, %162 : vector<2x32xf32>
    %164 = math.tanh %163 : vector<2x32xf32>
    %165 = arith.mulf %160, %164 : vector<2x32xf32>
    %cst_58 = arith.constant dense<0.000000e+00> : vector<2x128xf32>
    %166 = tpu.matmul %165, %3, %cst_58 {dimension_numbers = #tpu.dot_dimension_numbers<[1], [0], [0], [1], [0, 0, 1, 1], [], []>} : vector<2x32xf32>, vector<32x128xf32>, vector<2x128xf32> -> vector<2x128xf32>
    %cst_59 = arith.constant dense<0.000000e+00> : vector<2x128xf32>
    %167 = tpu.matmul %145, %4, %cst_59 {dimension_numbers = #tpu.dot_dimension_numbers<[1], [0], [0], [1], [0, 0, 1, 1], [], []>} : vector<2x32xf32>, vector<32x128xf32>, vector<2x128xf32> -> vector<2x128xf32>
    %168 = arith.addf %166, %167 : vector<2x128xf32>
    %169 = arith.addf %168, %13 : vector<2x128xf32>
    %cst_60 = arith.constant 5.000000e-01 : f32
    %170 = vector.broadcast %cst_60 : f32 to vector<2x128xf32>
    %171 = arith.mulf %170, %169 : vector<2x128xf32>
    %172 = math.tanh %171 : vector<2x128xf32>
    %cst_61 = arith.constant 5.000000e-01 : f32
    %173 = vector.broadcast %cst_61 : f32 to vector<2x128xf32>
    %174 = arith.mulf %173, %172 : vector<2x128xf32>
    %cst_62 = arith.constant 5.000000e-01 : f32
    %175 = vector.broadcast %cst_62 : f32 to vector<2x128xf32>
    %176 = arith.addf %174, %175 : vector<2x128xf32>
    %177 = math.tanh %169 : vector<2x128xf32>
    %178 = vector.extract_strided_slice %176 {offsets = [0, 0], sizes = [2, 32], strides = [1, 1]} : vector<2x128xf32> to vector<2x32xf32>
    %179 = vector.extract_strided_slice %176 {offsets = [0, 32], sizes = [2, 32], strides = [1, 1]} : vector<2x128xf32> to vector<2x32xf32>
    %180 = vector.extract_strided_slice %177 {offsets = [0, 64], sizes = [2, 32], strides = [1, 1]} : vector<2x128xf32> to vector<2x32xf32>
    %181 = vector.extract_strided_slice %176 {offsets = [0, 96], sizes = [2, 32], strides = [1, 1]} : vector<2x128xf32> to vector<2x32xf32>
    %182 = arith.mulf %179, %143 : vector<2x32xf32>
    %183 = arith.mulf %178, %180 : vector<2x32xf32>
    %184 = arith.addf %182, %183 : vector<2x32xf32>
    %185 = math.tanh %184 : vector<2x32xf32>
    %186 = arith.mulf %181, %185 : vector<2x32xf32>
    %c0_63 = arith.constant 0 : index
    %c96 = arith.constant 96 : index
    %187 = vector.load %arg14[%c0_63, %c96] : memref<2x256xf32, #tpu.memory_space<vmem>>, vector<2x32xf32>
    tpu.vector_store %arg14[%c0_63, %c96], %186 {strides = array<i32>} : memref<2x256xf32, #tpu.memory_space<vmem>>, vector<2x32xf32>,
    %cst_64 = arith.constant dense<0.000000e+00> : vector<2x128xf32>
    %188 = tpu.matmul %165, %1, %cst_64 {dimension_numbers = #tpu.dot_dimension_numbers<[1], [0], [0], [1], [0, 0, 1, 1], [], []>} : vector<2x32xf32>, vector<32x128xf32>, vector<2x128xf32> -> vector<2x128xf32>
    %189 = arith.addf %11, %188 : vector<2x128xf32>
    %cst_65 = arith.constant 5.000000e-01 : f32
    %190 = vector.broadcast %cst_65 : f32 to vector<2x128xf32>
    %191 = arith.mulf %190, %189 : vector<2x128xf32>
    %192 = math.tanh %191 : vector<2x128xf32>
    %cst_66 = arith.constant 5.000000e-01 : f32
    %193 = vector.broadcast %cst_66 : f32 to vector<2x128xf32>
    %194 = arith.mulf %193, %192 : vector<2x128xf32>
    %cst_67 = arith.constant 5.000000e-01 : f32
    %195 = vector.broadcast %cst_67 : f32 to vector<2x128xf32>
    %196 = arith.addf %194, %195 : vector<2x128xf32>
    %197 = math.tanh %189 : vector<2x128xf32>
    %198 = vector.extract_strided_slice %196 {offsets = [0, 0], sizes = [2, 32], strides = [1, 1]} : vector<2x128xf32> to vector<2x32xf32>
    %199 = vector.extract_strided_slice %196 {offsets = [0, 32], sizes = [2, 32], strides = [1, 1]} : vector<2x128xf32> to vector<2x32xf32>
    %200 = vector.extract_strided_slice %197 {offsets = [0, 64], sizes = [2, 32], strides = [1, 1]} : vector<2x128xf32> to vector<2x32xf32>
    %201 = vector.extract_strided_slice %196 {offsets = [0, 96], sizes = [2, 32], strides = [1, 1]} : vector<2x128xf32> to vector<2x32xf32>
    %202 = arith.mulf %199, %163 : vector<2x32xf32>
    %203 = arith.mulf %198, %200 : vector<2x32xf32>
    %204 = arith.addf %202, %203 : vector<2x32xf32>
    %205 = math.tanh %204 : vector<2x32xf32>
    %206 = arith.mulf %201, %205 : vector<2x32xf32>
    %cst_68 = arith.constant dense<0.000000e+00> : vector<2x128xf32>
    %207 = tpu.matmul %206, %3, %cst_68 {dimension_numbers = #tpu.dot_dimension_numbers<[1], [0], [0], [1], [0, 0, 1, 1], [], []>} : vector<2x32xf32>, vector<32x128xf32>, vector<2x128xf32> -> vector<2x128xf32>
    %cst_69 = arith.constant dense<0.000000e+00> : vector<2x128xf32>
    %208 = tpu.matmul %186, %4, %cst_69 {dimension_numbers = #tpu.dot_dimension_numbers<[1], [0], [0], [1], [0, 0, 1, 1], [], []>} : vector<2x32xf32>, vector<32x128xf32>, vector<2x128xf32> -> vector<2x128xf32>
    %209 = arith.addf %207, %208 : vector<2x128xf32>
    %210 = arith.addf %209, %13 : vector<2x128xf32>
    %cst_70 = arith.constant 5.000000e-01 : f32
    %211 = vector.broadcast %cst_70 : f32 to vector<2x128xf32>
    %212 = arith.mulf %211, %210 : vector<2x128xf32>
    %213 = math.tanh %212 : vector<2x128xf32>
    %cst_71 = arith.constant 5.000000e-01 : f32
    %214 = vector.broadcast %cst_71 : f32 to vector<2x128xf32>
    %215 = arith.mulf %214, %213 : vector<2x128xf32>
    %cst_72 = arith.constant 5.000000e-01 : f32
    %216 = vector.broadcast %cst_72 : f32 to vector<2x128xf32>
    %217 = arith.addf %215, %216 : vector<2x128xf32>
    %218 = math.tanh %210 : vector<2x128xf32>
    %219 = vector.extract_strided_slice %217 {offsets = [0, 0], sizes = [2, 32], strides = [1, 1]} : vector<2x128xf32> to vector<2x32xf32>
    %220 = vector.extract_strided_slice %217 {offsets = [0, 32], sizes = [2, 32], strides = [1, 1]} : vector<2x128xf32> to vector<2x32xf32>
    %221 = vector.extract_strided_slice %218 {offsets = [0, 64], sizes = [2, 32], strides = [1, 1]} : vector<2x128xf32> to vector<2x32xf32>
    %222 = vector.extract_strided_slice %217 {offsets = [0, 96], sizes = [2, 32], strides = [1, 1]} : vector<2x128xf32> to vector<2x32xf32>
    %223 = arith.mulf %220, %184 : vector<2x32xf32>
    %224 = arith.mulf %219, %221 : vector<2x32xf32>
    %225 = arith.addf %223, %224 : vector<2x32xf32>
    %226 = math.tanh %225 : vector<2x32xf32>
    %227 = arith.mulf %222, %226 : vector<2x32xf32>
    %c0_73 = arith.constant 0 : index
    %c128 = arith.constant 128 : index
    %228 = vector.load %arg14[%c0_73, %c128] : memref<2x256xf32, #tpu.memory_space<vmem>>, vector<2x32xf32>
    tpu.vector_store %arg14[%c0_73, %c128], %227 {strides = array<i32>} : memref<2x256xf32, #tpu.memory_space<vmem>>, vector<2x32xf32>,
    %cst_74 = arith.constant dense<0.000000e+00> : vector<2x128xf32>
    %229 = tpu.matmul %206, %1, %cst_74 {dimension_numbers = #tpu.dot_dimension_numbers<[1], [0], [0], [1], [0, 0, 1, 1], [], []>} : vector<2x32xf32>, vector<32x128xf32>, vector<2x128xf32> -> vector<2x128xf32>
    %230 = arith.addf %11, %229 : vector<2x128xf32>
    %cst_75 = arith.constant 5.000000e-01 : f32
    %231 = vector.broadcast %cst_75 : f32 to vector<2x128xf32>
    %232 = arith.mulf %231, %230 : vector<2x128xf32>
    %233 = math.tanh %232 : vector<2x128xf32>
    %cst_76 = arith.constant 5.000000e-01 : f32
    %234 = vector.broadcast %cst_76 : f32 to vector<2x128xf32>
    %235 = arith.mulf %234, %233 : vector<2x128xf32>
    %cst_77 = arith.constant 5.000000e-01 : f32
    %236 = vector.broadcast %cst_77 : f32 to vector<2x128xf32>
    %237 = arith.addf %235, %236 : vector<2x128xf32>
    %238 = math.tanh %230 : vector<2x128xf32>
    %239 = vector.extract_strided_slice %237 {offsets = [0, 0], sizes = [2, 32], strides = [1, 1]} : vector<2x128xf32> to vector<2x32xf32>
    %240 = vector.extract_strided_slice %237 {offsets = [0, 32], sizes = [2, 32], strides = [1, 1]} : vector<2x128xf32> to vector<2x32xf32>
    %241 = vector.extract_strided_slice %238 {offsets = [0, 64], sizes = [2, 32], strides = [1, 1]} : vector<2x128xf32> to vector<2x32xf32>
    %242 = vector.extract_strided_slice %237 {offsets = [0, 96], sizes = [2, 32], strides = [1, 1]} : vector<2x128xf32> to vector<2x32xf32>
    %243 = arith.mulf %240, %204 : vector<2x32xf32>
    %244 = arith.mulf %239, %241 : vector<2x32xf32>
    %245 = arith.addf %243, %244 : vector<2x32xf32>
    %246 = math.tanh %245 : vector<2x32xf32>
    %247 = arith.mulf %242, %246 : vector<2x32xf32>
    %cst_78 = arith.constant dense<0.000000e+00> : vector<2x128xf32>
    %248 = tpu.matmul %247, %3, %cst_78 {dimension_numbers = #tpu.dot_dimension_numbers<[1], [0], [0], [1], [0, 0, 1, 1], [], []>} : vector<2x32xf32>, vector<32x128xf32>, vector<2x128xf32> -> vector<2x128xf32>
    %cst_79 = arith.constant dense<0.000000e+00> : vector<2x128xf32>
    %249 = tpu.matmul %227, %4, %cst_79 {dimension_numbers = #tpu.dot_dimension_numbers<[1], [0], [0], [1], [0, 0, 1, 1], [], []>} : vector<2x32xf32>, vector<32x128xf32>, vector<2x128xf32> -> vector<2x128xf32>
    %250 = arith.addf %248, %249 : vector<2x128xf32>
    %251 = arith.addf %250, %13 : vector<2x128xf32>
    %cst_80 = arith.constant 5.000000e-01 : f32
    %252 = vector.broadcast %cst_80 : f32 to vector<2x128xf32>
    %253 = arith.mulf %252, %251 : vector<2x128xf32>
    %254 = math.tanh %253 : vector<2x128xf32>
    %cst_81 = arith.constant 5.000000e-01 : f32
    %255 = vector.broadcast %cst_81 : f32 to vector<2x128xf32>
    %256 = arith.mulf %255, %254 : vector<2x128xf32>
    %cst_82 = arith.constant 5.000000e-01 : f32
    %257 = vector.broadcast %cst_82 : f32 to vector<2x128xf32>
    %258 = arith.addf %256, %257 : vector<2x128xf32>
    %259 = math.tanh %251 : vector<2x128xf32>
    %260 = vector.extract_strided_slice %258 {offsets = [0, 0], sizes = [2, 32], strides = [1, 1]} : vector<2x128xf32> to vector<2x32xf32>
    %261 = vector.extract_strided_slice %258 {offsets = [0, 32], sizes = [2, 32], strides = [1, 1]} : vector<2x128xf32> to vector<2x32xf32>
    %262 = vector.extract_strided_slice %259 {offsets = [0, 64], sizes = [2, 32], strides = [1, 1]} : vector<2x128xf32> to vector<2x32xf32>
    %263 = vector.extract_strided_slice %258 {offsets = [0, 96], sizes = [2, 32], strides = [1, 1]} : vector<2x128xf32> to vector<2x32xf32>
    %264 = arith.mulf %261, %225 : vector<2x32xf32>
    %265 = arith.mulf %260, %262 : vector<2x32xf32>
    %266 = arith.addf %264, %265 : vector<2x32xf32>
    %267 = math.tanh %266 : vector<2x32xf32>
    %268 = arith.mulf %263, %267 : vector<2x32xf32>
    %c0_83 = arith.constant 0 : index
    %c160 = arith.constant 160 : index
    %269 = vector.load %arg14[%c0_83, %c160] : memref<2x256xf32, #tpu.memory_space<vmem>>, vector<2x32xf32>
    tpu.vector_store %arg14[%c0_83, %c160], %268 {strides = array<i32>} : memref<2x256xf32, #tpu.memory_space<vmem>>, vector<2x32xf32>,
    %cst_84 = arith.constant dense<0.000000e+00> : vector<2x128xf32>
    %270 = tpu.matmul %247, %1, %cst_84 {dimension_numbers = #tpu.dot_dimension_numbers<[1], [0], [0], [1], [0, 0, 1, 1], [], []>} : vector<2x32xf32>, vector<32x128xf32>, vector<2x128xf32> -> vector<2x128xf32>
    %271 = arith.addf %11, %270 : vector<2x128xf32>
    %cst_85 = arith.constant 5.000000e-01 : f32
    %272 = vector.broadcast %cst_85 : f32 to vector<2x128xf32>
    %273 = arith.mulf %272, %271 : vector<2x128xf32>
    %274 = math.tanh %273 : vector<2x128xf32>
    %cst_86 = arith.constant 5.000000e-01 : f32
    %275 = vector.broadcast %cst_86 : f32 to vector<2x128xf32>
    %276 = arith.mulf %275, %274 : vector<2x128xf32>
    %cst_87 = arith.constant 5.000000e-01 : f32
    %277 = vector.broadcast %cst_87 : f32 to vector<2x128xf32>
    %278 = arith.addf %276, %277 : vector<2x128xf32>
    %279 = math.tanh %271 : vector<2x128xf32>
    %280 = vector.extract_strided_slice %278 {offsets = [0, 0], sizes = [2, 32], strides = [1, 1]} : vector<2x128xf32> to vector<2x32xf32>
    %281 = vector.extract_strided_slice %278 {offsets = [0, 32], sizes = [2, 32], strides = [1, 1]} : vector<2x128xf32> to vector<2x32xf32>
    %282 = vector.extract_strided_slice %279 {offsets = [0, 64], sizes = [2, 32], strides = [1, 1]} : vector<2x128xf32> to vector<2x32xf32>
    %283 = vector.extract_strided_slice %278 {offsets = [0, 96], sizes = [2, 32], strides = [1, 1]} : vector<2x128xf32> to vector<2x32xf32>
    %284 = arith.mulf %281, %245 : vector<2x32xf32>
    %285 = arith.mulf %280, %282 : vector<2x32xf32>
    %286 = arith.addf %284, %285 : vector<2x32xf32>
    %287 = math.tanh %286 : vector<2x32xf32>
    %288 = arith.mulf %283, %287 : vector<2x32xf32>
    %cst_88 = arith.constant dense<0.000000e+00> : vector<2x128xf32>
    %289 = tpu.matmul %288, %3, %cst_88 {dimension_numbers = #tpu.dot_dimension_numbers<[1], [0], [0], [1], [0, 0, 1, 1], [], []>} : vector<2x32xf32>, vector<32x128xf32>, vector<2x128xf32> -> vector<2x128xf32>
    %cst_89 = arith.constant dense<0.000000e+00> : vector<2x128xf32>
    %290 = tpu.matmul %268, %4, %cst_89 {dimension_numbers = #tpu.dot_dimension_numbers<[1], [0], [0], [1], [0, 0, 1, 1], [], []>} : vector<2x32xf32>, vector<32x128xf32>, vector<2x128xf32> -> vector<2x128xf32>
    %291 = arith.addf %289, %290 : vector<2x128xf32>
    %292 = arith.addf %291, %13 : vector<2x128xf32>
    %cst_90 = arith.constant 5.000000e-01 : f32
    %293 = vector.broadcast %cst_90 : f32 to vector<2x128xf32>
    %294 = arith.mulf %293, %292 : vector<2x128xf32>
    %295 = math.tanh %294 : vector<2x128xf32>
    %cst_91 = arith.constant 5.000000e-01 : f32
    %296 = vector.broadcast %cst_91 : f32 to vector<2x128xf32>
    %297 = arith.mulf %296, %295 : vector<2x128xf32>
    %cst_92 = arith.constant 5.000000e-01 : f32
    %298 = vector.broadcast %cst_92 : f32 to vector<2x128xf32>
    %299 = arith.addf %297, %298 : vector<2x128xf32>
    %300 = math.tanh %292 : vector<2x128xf32>
    %301 = vector.extract_strided_slice %299 {offsets = [0, 0], sizes = [2, 32], strides = [1, 1]} : vector<2x128xf32> to vector<2x32xf32>
    %302 = vector.extract_strided_slice %299 {offsets = [0, 32], sizes = [2, 32], strides = [1, 1]} : vector<2x128xf32> to vector<2x32xf32>
    %303 = vector.extract_strided_slice %300 {offsets = [0, 64], sizes = [2, 32], strides = [1, 1]} : vector<2x128xf32> to vector<2x32xf32>
    %304 = vector.extract_strided_slice %299 {offsets = [0, 96], sizes = [2, 32], strides = [1, 1]} : vector<2x128xf32> to vector<2x32xf32>
    %305 = arith.mulf %302, %266 : vector<2x32xf32>
    %306 = arith.mulf %301, %303 : vector<2x32xf32>
    %307 = arith.addf %305, %306 : vector<2x32xf32>
    %308 = math.tanh %307 : vector<2x32xf32>
    %309 = arith.mulf %304, %308 : vector<2x32xf32>
    %c0_93 = arith.constant 0 : index
    %c192 = arith.constant 192 : index
    %310 = vector.load %arg14[%c0_93, %c192] : memref<2x256xf32, #tpu.memory_space<vmem>>, vector<2x32xf32>
    tpu.vector_store %arg14[%c0_93, %c192], %309 {strides = array<i32>} : memref<2x256xf32, #tpu.memory_space<vmem>>, vector<2x32xf32>,
    %cst_94 = arith.constant dense<0.000000e+00> : vector<2x128xf32>
    %311 = tpu.matmul %288, %1, %cst_94 {dimension_numbers = #tpu.dot_dimension_numbers<[1], [0], [0], [1], [0, 0, 1, 1], [], []>} : vector<2x32xf32>, vector<32x128xf32>, vector<2x128xf32> -> vector<2x128xf32>
    %312 = arith.addf %11, %311 : vector<2x128xf32>
    %cst_95 = arith.constant 5.000000e-01 : f32
    %313 = vector.broadcast %cst_95 : f32 to vector<2x128xf32>
    %314 = arith.mulf %313, %312 : vector<2x128xf32>
    %315 = math.tanh %314 : vector<2x128xf32>
    %cst_96 = arith.constant 5.000000e-01 : f32
    %316 = vector.broadcast %cst_96 : f32 to vector<2x128xf32>
    %317 = arith.mulf %316, %315 : vector<2x128xf32>
    %cst_97 = arith.constant 5.000000e-01 : f32
    %318 = vector.broadcast %cst_97 : f32 to vector<2x128xf32>
    %319 = arith.addf %317, %318 : vector<2x128xf32>
    %320 = math.tanh %312 : vector<2x128xf32>
    %321 = vector.extract_strided_slice %319 {offsets = [0, 0], sizes = [2, 32], strides = [1, 1]} : vector<2x128xf32> to vector<2x32xf32>
    %322 = vector.extract_strided_slice %319 {offsets = [0, 32], sizes = [2, 32], strides = [1, 1]} : vector<2x128xf32> to vector<2x32xf32>
    %323 = vector.extract_strided_slice %320 {offsets = [0, 64], sizes = [2, 32], strides = [1, 1]} : vector<2x128xf32> to vector<2x32xf32>
    %324 = vector.extract_strided_slice %319 {offsets = [0, 96], sizes = [2, 32], strides = [1, 1]} : vector<2x128xf32> to vector<2x32xf32>
    %325 = arith.mulf %322, %286 : vector<2x32xf32>
    %326 = arith.mulf %321, %323 : vector<2x32xf32>
    %327 = arith.addf %325, %326 : vector<2x32xf32>
    %328 = math.tanh %327 : vector<2x32xf32>
    %329 = arith.mulf %324, %328 : vector<2x32xf32>
    %cst_98 = arith.constant dense<0.000000e+00> : vector<2x128xf32>
    %330 = tpu.matmul %329, %3, %cst_98 {dimension_numbers = #tpu.dot_dimension_numbers<[1], [0], [0], [1], [0, 0, 1, 1], [], []>} : vector<2x32xf32>, vector<32x128xf32>, vector<2x128xf32> -> vector<2x128xf32>
    %cst_99 = arith.constant dense<0.000000e+00> : vector<2x128xf32>
    %331 = tpu.matmul %309, %4, %cst_99 {dimension_numbers = #tpu.dot_dimension_numbers<[1], [0], [0], [1], [0, 0, 1, 1], [], []>} : vector<2x32xf32>, vector<32x128xf32>, vector<2x128xf32> -> vector<2x128xf32>
    %332 = arith.addf %330, %331 : vector<2x128xf32>
    %333 = arith.addf %332, %13 : vector<2x128xf32>
    %cst_100 = arith.constant 5.000000e-01 : f32
    %334 = vector.broadcast %cst_100 : f32 to vector<2x128xf32>
    %335 = arith.mulf %334, %333 : vector<2x128xf32>
    %336 = math.tanh %335 : vector<2x128xf32>
    %cst_101 = arith.constant 5.000000e-01 : f32
    %337 = vector.broadcast %cst_101 : f32 to vector<2x128xf32>
    %338 = arith.mulf %337, %336 : vector<2x128xf32>
    %cst_102 = arith.constant 5.000000e-01 : f32
    %339 = vector.broadcast %cst_102 : f32 to vector<2x128xf32>
    %340 = arith.addf %338, %339 : vector<2x128xf32>
    %341 = math.tanh %333 : vector<2x128xf32>
    %342 = vector.extract_strided_slice %340 {offsets = [0, 0], sizes = [2, 32], strides = [1, 1]} : vector<2x128xf32> to vector<2x32xf32>
    %343 = vector.extract_strided_slice %340 {offsets = [0, 32], sizes = [2, 32], strides = [1, 1]} : vector<2x128xf32> to vector<2x32xf32>
    %344 = vector.extract_strided_slice %341 {offsets = [0, 64], sizes = [2, 32], strides = [1, 1]} : vector<2x128xf32> to vector<2x32xf32>
    %345 = vector.extract_strided_slice %340 {offsets = [0, 96], sizes = [2, 32], strides = [1, 1]} : vector<2x128xf32> to vector<2x32xf32>
    %346 = arith.mulf %343, %307 : vector<2x32xf32>
    %347 = arith.mulf %342, %344 : vector<2x32xf32>
    %348 = arith.addf %346, %347 : vector<2x32xf32>
    %349 = math.tanh %348 : vector<2x32xf32>
    %350 = arith.mulf %345, %349 : vector<2x32xf32>
    %c0_103 = arith.constant 0 : index
    %c224 = arith.constant 224 : index
    %351 = vector.load %arg14[%c0_103, %c224] : memref<2x256xf32, #tpu.memory_space<vmem>>, vector<2x32xf32>
    tpu.vector_store %arg14[%c0_103, %c224], %350 {strides = array<i32>} : memref<2x256xf32, #tpu.memory_space<vmem>>, vector<2x32xf32>,
    %c0_104 = arith.constant 0 : index
    %c0_105 = arith.constant 0 : index
    %352 = vector.load %arg14[%c0_104, %c0_105] : memref<2x256xf32, #tpu.memory_space<vmem>>, vector<2x256xf32>
    %cst_106 = arith.constant dense<0.000000e+00> : vector<2x128xf32>
    %353 = tpu.matmul %352, %6, %cst_106 {dimension_numbers = #tpu.dot_dimension_numbers<[1], [0], [0], [1], [0, 0, 1, 1], [], []>} : vector<2x256xf32>, vector<256x128xf32>, vector<2x128xf32> -> vector<2x128xf32>
    %354 = vector.broadcast %7 : vector<1x128xf32> to vector<2x128xf32>
    %355 = arith.addf %353, %354 : vector<2x128xf32>
    %c0_107 = arith.constant 0 : index
    %c0_108 = arith.constant 0 : index
    %356 = vector.load %arg11[%c0_107, %c0_108] : memref<2x128xf32, #tpu.memory_space<vmem>>, vector<2x128xf32>
    tpu.vector_store %arg11[%c0_107, %c0_108], %355 {strides = array<i32>} : memref<2x128xf32, #tpu.memory_space<vmem>>, vector<2x128xf32>,
    %357 = vector.shape_cast %329 : vector<2x32xf32> to vector<1x2x32xf32>
    %358 = vector.shape_cast %350 : vector<2x32xf32> to vector<1x2x32xf32>
    %359 = tpu.concatenate %357, %358 in 0 : vector<1x2x32xf32>, vector<1x2x32xf32> -> vector<2x2x32xf32>
    %c0_109 = arith.constant 0 : index
    %c0_110 = arith.constant 0 : index
    %c0_111 = arith.constant 0 : index
    %360 = vector.load %arg12[%c0_109, %c0_110, %c0_111] : memref<2x2x32xf32, #tpu.memory_space<vmem>>, vector<2x2x32xf32>
    tpu.vector_store %arg12[%c0_109, %c0_110, %c0_111], %359 {strides = array<i32>} : memref<2x2x32xf32, #tpu.memory_space<vmem>>, vector<2x2x32xf32>,
    %361 = vector.shape_cast %327 : vector<2x32xf32> to vector<1x2x32xf32>
    %362 = vector.shape_cast %348 : vector<2x32xf32> to vector<1x2x32xf32>
    %363 = tpu.concatenate %361, %362 in 0 : vector<1x2x32xf32>, vector<1x2x32xf32> -> vector<2x2x32xf32>
    %c0_112 = arith.constant 0 : index
    %c0_113 = arith.constant 0 : index
    %c0_114 = arith.constant 0 : index
    %364 = vector.load %arg13[%c0_112, %c0_113, %c0_114] : memref<2x2x32xf32, #tpu.memory_space<vmem>>, vector<2x2x32xf32>
    tpu.vector_store %arg13[%c0_112, %c0_113, %c0_114], %363 {strides = array<i32>} : memref<2x2x32xf32, #tpu.memory_space<vmem>>, vector<2x2x32xf32>,
    return
  }
}

</mosaic_0001>

<llo_original>
// kernel: tpu_custom_call.1
$region0: #{tpu_custom_call.1}
  #allocation0 [shape = 'u32[]', space=smem, size = 0x4, offset = 0x4, fixed_abs, tag = 'smem constant byte address 0x4 - core index']
  #allocation1 [shape = 'u32[144,128]{1,0:T(1,128)}', space=vmem, size = 0x12000, scoped, tag = 'internal scratch']
  #allocation2 [shape = 'f32[2,256]{1,0:T(2,128)}', space=vmem, size = 0x800, scoped, tag = 'scratch operand']
  %s0 = inlined_call_operand.vmem [shape: f32[2,4], index: 0, kind: input, shape index: {}]
  %s1 = inlined_call_operand.hbm [shape: f32[2,2,32], index: 1, kind: input, shape index: {}, may-alias: {1,12}]
  %s2 = inlined_call_operand.hbm [shape: f32[2,2,32], index: 2, kind: input, shape index: {}, may-alias: {2,13}]
  %s3 = inlined_call_operand.vmem [shape: f32[4,128], index: 3, kind: input, shape index: {}]
  %s4 = inlined_call_operand.vmem [shape: f32[32,128], index: 4, kind: input, shape index: {}]
  %s5 = inlined_call_operand.hbm [shape: f32[1,128], index: 5, kind: input, shape index: {}]
  %s6 = inlined_call_operand.hbm [shape: f32[32,128], index: 6, kind: input, shape index: {}]
  %s7 = inlined_call_operand.hbm [shape: f32[32,128], index: 7, kind: input, shape index: {}]
  %s8 = inlined_call_operand.hbm [shape: f32[1,128], index: 8, kind: input, shape index: {}]
  %s9 = inlined_call_operand.hbm [shape: f32[256,128], index: 9, kind: input, shape index: {}]
  %s10 = inlined_call_operand.hbm [shape: f32[1,128], index: 10, kind: input, shape index: {}]
  %s11 = inlined_call_operand.hbm [shape: f32[2,128], index: 11, kind: output, shape index: {0}]
  %s12 = inlined_call_operand.hbm [shape: f32[2,2,32], index: 12, kind: output, shape index: {1}, may-alias: {1,12}]
  %s13 = inlined_call_operand.hbm [shape: f32[2,2,32], index: 13, kind: output, shape index: {2}, may-alias: {2,13}]
  %14 = xla_tuple %s11, %s12, %s13
  %s15 = sld [smem:[#allocation0]]
  $region102: #{tpu_custom_call.1} parent=0
    _
  %s17 = ssub.s32 1, %s15
  %s18 = scalar_select 0, %s17, %s15
  $region1: #{tpu_custom_call.1} parent=0
    #allocation3 [shape = 'u8[2048]{0}', space=vmem, size = 0x800, scoped, tag = 'input window, operand 1, single buffered']
    #allocation4 [shape = 's32[1]{0}', space=sflag, size = 0x4, scoped, tag = 'scoped memory for tpu_custom_call.1']
    #allocation5 [shape = 's32[1]{0}', space=sflag, size = 0x4, scoped, tag = 'scoped memory for tpu_custom_call.1']
    #allocation6 [shape = 'u8[2048]{0}', space=vmem, size = 0x800, scoped, tag = 'input window, operand 2, single buffered']
    #allocation7 [shape = 's32[1]{0}', space=sflag, size = 0x4, scoped, tag = 'scoped memory for tpu_custom_call.1']
    #allocation8 [shape = 'u8[512]{0}', space=vmem, size = 0x400, scoped, tag = 'input window, operand 5, single buffered']
    #allocation9 [shape = 'u8[16384]{0}', space=vmem, size = 0x4000, scoped, tag = 'input window, operand 6, single buffered']
    #allocation10 [shape = 's32[1]{0}', space=sflag, size = 0x4, scoped, tag = 'scoped memory for tpu_custom_call.1']
    #allocation11 [shape = 'u8[16384]{0}', space=vmem, size = 0x4000, scoped, tag = 'input window, operand 7, single buffered']
    #allocation12 [shape = 'u8[512]{0}', space=vmem, size = 0x400, scoped, tag = 'input window, operand 8, single buffered']
    #allocation13 [shape = 's32[1]{0}', space=sflag, size = 0x4, scoped, tag = 'scoped memory for tpu_custom_call.1']
    #allocation14 [shape = 'u8[131072]{0}', space=vmem, size = 0x20000, scoped, tag = 'input window, operand 9, single buffered']
    #allocation15 [shape = 'u8[512]{0}', space=vmem, size = 0x400, scoped, tag = 'input window, operand 10, single buffered']
    #allocation16 [shape = 's32[1]{0}', space=sflag, size = 0x4, scoped, tag = 'scoped memory for tpu_custom_call.1']
    #allocation17 [shape = 'u8[1024]{0}', space=vmem, size = 0x400, scoped, tag = 'output window, operand 0, single buffered']
    #allocation18 [shape = 'u8[2048]{0}', space=vmem, size = 0x800, scoped, tag = 'output window, operand 1, single buffered']
    #allocation19 [shape = 's32[1]{0}', space=sflag, size = 0x4, scoped, tag = 'scoped memory for tpu_custom_call.1']
    #allocation20 [shape = 'u8[2048]{0}', space=vmem, size = 0x800, scoped, tag = 'output window, operand 2, single buffered']
    %19 = vsyncpa [#allocation4], 0
    %20 = vsyncpa [#allocation7], 0
    %21 = vsyncpa [#allocation10], 0
    %22 = vsyncpa [#allocation13], 0
    %23 = vsyncpa [#allocation16], 0
    %24 = vsyncpa [#allocation5], 0
    %25 = vsyncpa [#allocation19], 0
    // Predicated region
    $region2: #{tpu_custom_call.1} parent=1 // pred_check
      _
    $region3: #{tpu_custom_call.1} parent=1 // pred_check_branch
      %27 = sbr.rel (0) target = $region5
    $region4: #{tpu_custom_call.1} parent=1 // pred_region
      _
    $region5: #{tpu_custom_call.1} parent=1 // pred_fallthru
      _
    // Predicated region
    $region6: #{tpu_custom_call.1} parent=1 // pred_check
      _
    $region7: #{tpu_custom_call.1} parent=1 // pred_check_branch
      %29 = sbr.rel (0) target = $region9
    $region8: #{tpu_custom_call.1} parent=1 // pred_region
      %s31 = ssub.s32 64, 64
      %32 = vsyncadd [#allocation4], %s31
      %s33 = sshll.u32 [#allocation3], 4
      %s34 = int_to_ptr.vmem [resolvable:$true] %s33
      %39 = dma.hbm_to_vmem [thread:$0]  %s1, 64, %s34, [#allocation4], 32, 32, 2
    $region9: #{tpu_custom_call.1} parent=1 // pred_fallthru
      _
    // Predicated region
    $region10: #{tpu_custom_call.1} parent=1 // pred_check
      _
    $region11: #{tpu_custom_call.1} parent=1 // pred_check_branch
      %41 = sbr.rel (0) target = $region13
    $region12: #{tpu_custom_call.1} parent=1 // pred_region
      %s43 = ssub.s32 64, 64
      %44 = vsyncadd [#allocation7], %s43
      %s45 = sshll.u32 [#allocation6], 4
      %s46 = int_to_ptr.vmem [resolvable:$true] %s45
      %51 = dma.hbm_to_vmem [thread:$0]  %s2, 64, %s46, [#allocation7], 32, 32, 2
    $region13: #{tpu_custom_call.1} parent=1 // pred_fallthru
      _
    // Predicated region
    $region14: #{tpu_custom_call.1} parent=1 // pred_check
      _
    $region15: #{tpu_custom_call.1} parent=1 // pred_check_branch
      %53 = sbr.rel (0) target = $region17
    $region16: #{tpu_custom_call.1} parent=1 // pred_region
      _
    $region17: #{tpu_custom_call.1} parent=1 // pred_fallthru
      _
    // Predicated region
    $region18: #{tpu_custom_call.1} parent=1 // pred_check
      _
    $region19: #{tpu_custom_call.1} parent=1 // pred_check_branch
      %55 = sbr.rel (0) target = $region21
    $region20: #{tpu_custom_call.1} parent=1 // pred_region
      _
    $region21: #{tpu_custom_call.1} parent=1 // pred_fallthru
      _
    // Predicated region
    $region22: #{tpu_custom_call.1} parent=1 // pred_check
      _
    $region23: #{tpu_custom_call.1} parent=1 // pred_check_branch
      %57 = sbr.rel (0) target = $region25
    $region24: #{tpu_custom_call.1} parent=1 // pred_region
      %s59 = ssub.s32 16, 16
      %60 = vsyncadd [#allocation7], %s59
      %s62 = sshll.u32 [#allocation8], 4
      %s63 = int_to_ptr.vmem [resolvable:$true] %s62
      %65 = dma.hbm_to_vmem [thread:$0]  %s5, 16, %s63, [#allocation7]
    $region25: #{tpu_custom_call.1} parent=1 // pred_fallthru
      _
    // Predicated region
    $region26: #{tpu_custom_call.1} parent=1 // pred_check
      _
    $region27: #{tpu_custom_call.1} parent=1 // pred_check_branch
      %67 = sbr.rel (0) target = $region29
    $region28: #{tpu_custom_call.1} parent=1 // pred_region
      %s69 = ssub.s32 512, 512
      %70 = vsyncadd [#allocation10], %s69
      %s71 = sshll.u32 [#allocation9], 4
      %s72 = int_to_ptr.vmem [resolvable:$true] %s71
      %77 = dma.hbm_to_vmem [thread:$0]  %s6, 512, %s72, [#allocation10], 128, 128, 8
    $region29: #{tpu_custom_call.1} parent=1 // pred_fallthru
      _
    // Predicated region
    $region30: #{tpu_custom_call.1} parent=1 // pred_check
      _
    $region31: #{tpu_custom_call.1} parent=1 // pred_check_branch
      %79 = sbr.rel (0) target = $region33
    $region32: #{tpu_custom_call.1} parent=1 // pred_region
      %s81 = ssub.s32 512, 512
      %82 = vsyncadd [#allocation10], %s81
      %s83 = sshll.u32 [#allocation11], 4
      %s84 = int_to_ptr.vmem [resolvable:$true] %s83
      %89 = dma.hbm_to_vmem [thread:$0]  %s7, 512, %s84, [#allocation10], 128, 128, 8
    $region33: #{tpu_custom_call.1} parent=1 // pred_fallthru
      _
    // Predicated region
    $region34: #{tpu_custom_call.1} parent=1 // pred_check
      _
    $region35: #{tpu_custom_call.1} parent=1 // pred_check_branch
      %91 = sbr.rel (0) target = $region37
    $region36: #{tpu_custom_call.1} parent=1 // pred_region
      %s93 = ssub.s32 16, 16
      %94 = vsyncadd [#allocation13], %s93
      %s96 = sshll.u32 [#allocation12], 4
      %s97 = int_to_ptr.vmem [resolvable:$true] %s96
      %99 = dma.hbm_to_vmem [thread:$0]  %s8, 16, %s97, [#allocation13]
    $region37: #{tpu_custom_call.1} parent=1 // pred_fallthru
      _
    // Predicated region
    $region38: #{tpu_custom_call.1} parent=1 // pred_check
      _
    $region39: #{tpu_custom_call.1} parent=1 // pred_check_branch
      %101 = sbr.rel (0) target = $region41
    $region40: #{tpu_custom_call.1} parent=1 // pred_region
      %s103 = ssub.s32 4096, 4096
      %104 = vsyncadd [#allocation13], %s103
      %s105 = sshll.u32 [#allocation14], 4
      %s106 = int_to_ptr.vmem [resolvable:$true] %s105
      %111 = dma.hbm_to_vmem [thread:$0]  %s9, 4096, %s106, [#allocation13], 128, 128, 8
    $region41: #{tpu_custom_call.1} parent=1 // pred_fallthru
      _
    // Predicated region
    $region42: #{tpu_custom_call.1} parent=1 // pred_check
      _
    $region43: #{tpu_custom_call.1} parent=1 // pred_check_branch
      %113 = sbr.rel (0) target = $region45
    $region44: #{tpu_custom_call.1} parent=1 // pred_region
      %s115 = ssub.s32 16, 16
      %116 = vsyncadd [#allocation16], %s115
      %s118 = sshll.u32 [#allocation15], 4
      %s119 = int_to_ptr.vmem [resolvable:$true] %s118
      %121 = dma.hbm_to_vmem [thread:$0]  %s10, 16, %s119, [#allocation16]
    $region45: #{tpu_custom_call.1} parent=1 // pred_fallthru
      _
    // Predicated region
    $region46: #{tpu_custom_call.1} parent=1 // pred_check
      _
    $region47: #{tpu_custom_call.1} parent=1 // pred_check_branch
      %123 = sbr.rel (0) target = $region49
    $region48: #{tpu_custom_call.1} parent=1 // pred_region
      %124 = dma.done [#allocation4], 64
    $region49: #{tpu_custom_call.1} parent=1 // pred_fallthru
      _
    // Predicated region
    $region50: #{tpu_custom_call.1} parent=1 // pred_check
      _
    $region51: #{tpu_custom_call.1} parent=1 // pred_check_branch
      %126 = sbr.rel (0) target = $region53
    $region52: #{tpu_custom_call.1} parent=1 // pred_region
      %127 = dma.done [#allocation7], 64
    $region53: #{tpu_custom_call.1} parent=1 // pred_fallthru
      _
    // Predicated region
    $region54: #{tpu_custom_call.1} parent=1 // pred_check
      _
    $region55: #{tpu_custom_call.1} parent=1 // pred_check_branch
      %129 = sbr.rel (0) target = $region57
    $region56: #{tpu_custom_call.1} parent=1 // pred_region
      %130 = dma.done [#allocation7], 16
    $region57: #{tpu_custom_call.1} parent=1 // pred_fallthru
      _
    // Predicated region
    $region58: #{tpu_custom_call.1} parent=1 // pred_check
      _
    $region59: #{tpu_custom_call.1} parent=1 // pred_check_branch
      %132 = sbr.rel (0) target = $region61
    $region60: #{tpu_custom_call.1} parent=1 // pred_region
      %133 = dma.done [#allocation10], 512
    $region61: #{tpu_custom_call.1} parent=1 // pred_fallthru
      _
    // Predicated region
    $region62: #{tpu_custom_call.1} parent=1 // pred_check
      _
    $region63: #{tpu_custom_call.1} parent=1 // pred_check_branch
      %135 = sbr.rel (0) target = $region65
    $region64: #{tpu_custom_call.1} parent=1 // pred_region
      %136 = dma.done [#allocation10], 512
    $region65: #{tpu_custom_call.1} parent=1 // pred_fallthru
      _
    // Predicated region
    $region66: #{tpu_custom_call.1} parent=1 // pred_check
      _
    $region67: #{tpu_custom_call.1} parent=1 // pred_check_branch
      %138 = sbr.rel (0) target = $region69
    $region68: #{tpu_custom_call.1} parent=1 // pred_region
      %139 = dma.done [#allocation13], 16
    $region69: #{tpu_custom_call.1} parent=1 // pred_fallthru
      _
    // Predicated region
    $region70: #{tpu_custom_call.1} parent=1 // pred_check
      _
    $region71: #{tpu_custom_call.1} parent=1 // pred_check_branch
      %141 = sbr.rel (0) target = $region73
    $region72: #{tpu_custom_call.1} parent=1 // pred_region
      %142 = dma.done [#allocation13], 4096
    $region73: #{tpu_custom_call.1} parent=1 // pred_fallthru
      _
    // Predicated region
    $region74: #{tpu_custom_call.1} parent=1 // pred_check
      _
    $region75: #{tpu_custom_call.1} parent=1 // pred_check_branch
      %144 = sbr.rel (0) target = $region77
    $region76: #{tpu_custom_call.1} parent=1 // pred_region
      %145 = dma.done [#allocation16], 16
    $region77: #{tpu_custom_call.1} parent=1 // pred_fallthru
      _
    %v146 = vld [vmem:[%s3] sm:$0xf]
    %v147 = vld [vmem:[%s4] sm:$0xff]
    %v148 = vld [vmem:[%s4 + $0x8] sm:$0xff]
    %v149 = vld [vmem:[%s4 + $0x10] sm:$0xff]
    %v150 = vld [vmem:[%s4 + $0x18] sm:$0xff]
    %v151 = vld [vmem:[#allocation8] sm:$0x1]
    %v152 = vld [vmem:[#allocation9] sm:$0xff]
    %v153 = vld [vmem:[#allocation9 + $0x8] sm:$0xff]
    %v154 = vld [vmem:[#allocation9 + $0x10] sm:$0xff]
    %v155 = vld [vmem:[#allocation9 + $0x18] sm:$0xff]
    %v156 = vld [vmem:[#allocation11] sm:$0xff]
    %v157 = vld [vmem:[#allocation11 + $0x8] sm:$0xff]
    %v158 = vld [vmem:[#allocation11 + $0x10] sm:$0xff]
    %v159 = vld [vmem:[#allocation11 + $0x18] sm:$0xff]
    %v160 = vld [vmem:[#allocation12] sm:$0x1]
    %v161 = vld [vmem:[#allocation14] sm:$0xff]
    %v162 = vld [vmem:[#allocation14 + $0x8] sm:$0xff]
    %v163 = vld [vmem:[#allocation14 + $0x10] sm:$0xff]
    %v164 = vld [vmem:[#allocation14 + $0x18] sm:$0xff]
    %v165 = vld [vmem:[#allocation14 + $0x20] sm:$0xff]
    %v166 = vld [vmem:[#allocation14 + $0x28] sm:$0xff]
    %v167 = vld [vmem:[#allocation14 + $0x30] sm:$0xff]
    %v168 = vld [vmem:[#allocation14 + $0x38] sm:$0xff]
    %v169 = vld [vmem:[#allocation14 + $0x40] sm:$0xff]
    %v170 = vld [vmem:[#allocation14 + $0x48] sm:$0xff]
    %v171 = vld [vmem:[#allocation14 + $0x50] sm:$0xff]
    %v172 = vld [vmem:[#allocation14 + $0x58] sm:$0xff]
    %v173 = vld [vmem:[#allocation14 + $0x60] sm:$0xff]
    %v174 = vld [vmem:[#allocation14 + $0x68] sm:$0xff]
    %v175 = vld [vmem:[#allocation14 + $0x70] sm:$0xff]
    %v176 = vld [vmem:[#allocation14 + $0x78] sm:$0xff]
    %v177 = vld [vmem:[#allocation14 + $0x80] sm:$0xff]
    %v178 = vld [vmem:[#allocation14 + $0x88] sm:$0xff]
    %v179 = vld [vmem:[#allocation14 + $0x90] sm:$0xff]
    %v180 = vld [vmem:[#allocation14 + $0x98] sm:$0xff]
    %v181 = vld [vmem:[#allocation14 + $0xa0] sm:$0xff]
    %v182 = vld [vmem:[#allocation14 + $0xa8] sm:$0xff]
    %v183 = vld [vmem:[#allocation14 + $0xb0] sm:$0xff]
    %v184 = vld [vmem:[#allocation14 + $0xb8] sm:$0xff]
    %v185 = vld [vmem:[#allocation14 + $0xc0] sm:$0xff]
    %v186 = vld [vmem:[#allocation14 + $0xc8] sm:$0xff]
    %v187 = vld [vmem:[#allocation14 + $0xd0] sm:$0xff]
    %v188 = vld [vmem:[#allocation14 + $0xd8] sm:$0xff]
    %v189 = vld [vmem:[#allocation14 + $0xe0] sm:$0xff]
    %v190 = vld [vmem:[#allocation14 + $0xe8] sm:$0xff]
    %v191 = vld [vmem:[#allocation14 + $0xf0] sm:$0xff]
    %v192 = vld [vmem:[#allocation14 + $0xf8] sm:$0xff]
    %v193 = vld [vmem:[#allocation15] sm:$0x1]
    %v194 = vld [vmem:[%s0] sm:$0x3]
    %v196 = vlaneseq
    %v197 = vshrl.u32 %v196, 7
    %v198 = vsub.s32 0, %v197
    %v199 = vrot.slane %v151, %v198
    %vm201 = vcmask 31744
    %v203 = vsel %vm201, %v194, 0
    %vm205 = vcmask 1043456
    %v207 = vsel %vm205, %v146, 0
    %209 = vmatprep.subr.mxu0 0.0
    %210 = vmatpush1.msra.mxu0 %v207
    %211 = vmatprep.subr.mxu0 0.0
    %212 = vmatpush1.msra.mxu0 0.0
    %213 = vmatprep.subr.mxu0 0.0
    %214 = vmatpush1.msra.mxu0 0.0
    %215 = vmatprep.subr.mxu0 0.0
    %216 = vmatpush1.msra.mxu0 0.0
    %217 = vmatprep.subr.mxu0 0.0
    %218 = vmatpush1.msra.mxu0 0.0
    %219 = vmatprep.subr.mxu0 0.0
    %220 = vmatpush1.msra.mxu0 0.0
    %221 = vmatprep.subr.mxu0 0.0
    %222 = vmatpush1.msra.mxu0 0.0
    %223 = vmatprep.subr.mxu0 0.0
    %224 = vmatpush1.msra.mxu0 0.0
    %225 = vmatprep.subr.mxu0 0.0
    %226 = vmatpush1.msra.mxu0 0.0
    %227 = vmatprep.subr.mxu0 0.0
    %228 = vmatpush1.msra.mxu0 0.0
    %229 = vmatprep.subr.mxu0 0.0
    %230 = vmatpush1.msra.mxu0 0.0
    %231 = vmatprep.subr.mxu0 0.0
    %232 = vmatpush1.msra.mxu0 0.0
    %233 = vmatprep.subr.mxu0 0.0
    %234 = vmatpush1.msra.mxu0 0.0
    %235 = vmatprep.subr.mxu0 0.0
    %236 = vmatpush1.msra.mxu0 0.0
    %237 = vmatprep.subr.mxu0 0.0
    %238 = vmatpush1.msra.mxu0 0.0
    %239 = vmatprep.subr.mxu0 0.0
    %240 = vmatpush1.msra.mxu0 0.0
    %241 = vmatprep.subr.mxu0 0.0
    %242 = vmatpush1.msra.mxu0 0.0
    %243 = vmatprep.subr.mxu0 0.0
    %244 = vmatpush1.msra.mxu0 0.0
    %245 = vmatprep.subr.mxu0 0.0
    %246 = vmatpush1.msra.mxu0 0.0
    %247 = vmatprep.subr.mxu0 0.0
    %248 = vmatpush1.msra.mxu0 0.0
    %249 = vmatprep.subr.mxu0 0.0
    %250 = vmatpush1.msra.mxu0 0.0
    %251 = vmatprep.subr.mxu0 0.0
    %252 = vmatpush1.msra.mxu0 0.0
    %253 = vmatprep.subr.mxu0 0.0
    %254 = vmatpush1.msra.mxu0 0.0
    %255 = vmatprep.subr.mxu0 0.0
    %256 = vmatpush1.msra.mxu0 0.0
    %257 = vmatprep.subr.mxu0 0.0
    %258 = vmatpush1.msra.mxu0 0.0
    %259 = vmatprep.subr.mxu0 0.0
    %260 = vmatpush1.msra.mxu0 0.0
    %261 = vmatprep.subr.mxu0 0.0
    %262 = vmatpush1.msra.mxu0 0.0
    %263 = vmatprep.subr.mxu0 0.0
    %264 = vmatpush1.msra.mxu0 0.0
    %265 = vmatprep.subr.mxu0 0.0
    %266 = vmatpush1.msra.mxu0 0.0
    %267 = vmatprep.subr.mxu0 0.0
    %268 = vmatpush1.msra.mxu0 0.0
    %269 = vmatprep.subr.mxu0 0.0
    %270 = vmatpush1.msra.mxu0 0.0
    %271 = vmatprep.subr.mxu0 0.0
    %272 = vmatpush1.msra.mxu0 0.0
    %273 = vmatprep.mubr.f32.mxu0 0.0
    %274 = vmatmul.mubr.f32.gmra.mrb[0].mxu0 %v203
    %v275 = vpop.f32.mrb[0].mxu0
    %v276 = vadd.f32 %v199, %v275
    %v277 = vpop.f32.mrb[0].mxu0
    %278 = vdwg.mxu0
    %v280 = vlaneseq
    %v281 = vshrl.u32 %v280, 7
    %v282 = vsub.s32 0, %v281
    %v283 = vrot.slane %v160, %v282
    %v285 = vld [vmem:[#allocation3] sm:$0x3]
    %v286 = vld [vmem:[#allocation3 + $0x2] sm:$0x3]
    %v287 = vld [vmem:[#allocation6] sm:$0x3]
    %v288 = vld [vmem:[#allocation6 + $0x2] sm:$0x3]
    %vm289 = vcmask 261120
    %v291 = vsel %vm289, %v285, 0
    %293 = vmatprep.subr.mxu0 0.0
    %294 = vmatpush1.msra.mxu0 %v147
    %295 = vmatprep.subr.mxu0 0.0
    %296 = vmatpush1.msra.mxu0 %v148
    %297 = vmatprep.subr.mxu0 0.0
    %298 = vmatpush1.msra.mxu0 %v149
    %299 = vmatprep.subr.mxu0 0.0
    %300 = vmatpush1.msra.mxu0 %v150
    %301 = vmatprep.subr.mxu0 0.0
    %302 = vmatpush1.msra.mxu0 0.0
    %303 = vmatprep.subr.mxu0 0.0
    %304 = vmatpush1.msra.mxu0 0.0
    %305 = vmatprep.subr.mxu0 0.0
    %306 = vmatpush1.msra.mxu0 0.0
    %307 = vmatprep.subr.mxu0 0.0
    %308 = vmatpush1.msra.mxu0 0.0
    %309 = vmatprep.subr.mxu0 0.0
    %310 = vmatpush1.msra.mxu0 0.0
    %311 = vmatprep.subr.mxu0 0.0
    %312 = vmatpush1.msra.mxu0 0.0
    %313 = vmatprep.subr.mxu0 0.0
    %314 = vmatpush1.msra.mxu0 0.0
    %315 = vmatprep.subr.mxu0 0.0
    %316 = vmatpush1.msra.mxu0 0.0
    %317 = vmatprep.subr.mxu0 0.0
    %318 = vmatpush1.msra.mxu0 0.0
    %319 = vmatprep.subr.mxu0 0.0
    %320 = vmatpush1.msra.mxu0 0.0
    %321 = vmatprep.subr.mxu0 0.0
    %322 = vmatpush1.msra.mxu0 0.0
    %323 = vmatprep.subr.mxu0 0.0
    %324 = vmatpush1.msra.mxu0 0.0
    %325 = vmatprep.subr.mxu0 0.0
    %326 = vmatpush1.msra.mxu0 0.0
    %327 = vmatprep.subr.mxu0 0.0
    %328 = vmatpush1.msra.mxu0 0.0
    %329 = vmatprep.subr.mxu0 0.0
    %330 = vmatpush1.msra.mxu0 0.0
    %331 = vmatprep.subr.mxu0 0.0
    %332 = vmatpush1.msra.mxu0 0.0
    %333 = vmatprep.subr.mxu0 0.0
    %334 = vmatpush1.msra.mxu0 0.0
    %335 = vmatprep.subr.mxu0 0.0
    %336 = vmatpush1.msra.mxu0 0.0
    %337 = vmatprep.subr.mxu0 0.0
    %338 = vmatpush1.msra.mxu0 0.0
    %339 = vmatprep.subr.mxu0 0.0
    %340 = vmatpush1.msra.mxu0 0.0
    %341 = vmatprep.subr.mxu0 0.0
    %342 = vmatpush1.msra.mxu0 0.0
    %343 = vmatprep.subr.mxu0 0.0
    %344 = vmatpush1.msra.mxu0 0.0
    %345 = vmatprep.subr.mxu0 0.0
    %346 = vmatpush1.msra.mxu0 0.0
    %347 = vmatprep.subr.mxu0 0.0
    %348 = vmatpush1.msra.mxu0 0.0
    %349 = vmatprep.subr.mxu0 0.0
    %350 = vmatpush1.msra.mxu0 0.0
    %351 = vmatprep.subr.mxu0 0.0
    %352 = vmatpush1.msra.mxu0 0.0
    %353 = vmatprep.subr.mxu0 0.0
    %354 = vmatpush1.msra.mxu0 0.0
    %355 = vmatprep.subr.mxu0 0.0
    %356 = vmatpush1.msra.mxu0 0.0
    %357 = vmatprep.mubr.f32.mxu0 0.0
    %358 = vmatmul.mubr.f32.gmra.mrb[0].mxu0 %v291
    %v359 = vpop.f32.mrb[0].mxu0
    %v360 = vadd.f32 0.0, %v359
    %v361 = vpop.f32.mrb[0].mxu0
    %362 = vdwg.mxu0
    %v363 = vadd.f32 %v276, %v360
    %v364 = vmul.f32 %v363, 0.5
    %v365 = vtanh.pop %v364
    %v366 = vmul.f32 %v365, 0.5
    %v367 = vadd.f32 %v366, 0.5
    %v368 = vtanh.pop %v363
    %370 = vrot.lane.b32.xlu0 %v287, 32
    %v371 = vpop.permute.xlu0 %370
    %v373 = vmul.f32 %v367, %v371
    %375 = vrot.lane.b32.xlu0 %v368, 64
    %v376 = vpop.permute.xlu0 %375
    %v378 = vmul.f32 %v367, %v376
    %380 = vrot.lane.b32.xlu0 %v378, 32
    %v381 = vpop.permute.xlu0 %380
    %v383 = vadd.f32 %v373, %v381
    %v384 = vtanh.pop %v383
    %386 = vrot.lane.b32.xlu0 %v384, 64
    %v387 = vpop.permute.xlu0 %386
    %v389 = vmul.f32 %v367, %v387
    %v391 = vsel %vm289, %v286, 0
    %393 = vmatprep.subr.mxu0 0.0
    %394 = vmatpush1.msra.mxu0 %v156
    %395 = vmatprep.subr.mxu0 0.0
    %396 = vmatpush1.msra.mxu0 %v157
    %397 = vmatprep.subr.mxu0 0.0
    %398 = vmatpush1.msra.mxu0 %v158
    %399 = vmatprep.subr.mxu0 0.0
    %400 = vmatpush1.msra.mxu0 %v159
    %401 = vmatprep.subr.mxu0 0.0
    %402 = vmatpush1.msra.mxu0 0.0
    %403 = vmatprep.subr.mxu0 0.0
    %404 = vmatpush1.msra.mxu0 0.0
    %405 = vmatprep.subr.mxu0 0.0
    %406 = vmatpush1.msra.mxu0 0.0
    %407 = vmatprep.subr.mxu0 0.0
    %408 = vmatpush1.msra.mxu0 0.0
    %409 = vmatprep.subr.mxu0 0.0
    %410 = vmatpush1.msra.mxu0 0.0
    %411 = vmatprep.subr.mxu0 0.0
    %412 = vmatpush1.msra.mxu0 0.0
    %413 = vmatprep.subr.mxu0 0.0
    %414 = vmatpush1.msra.mxu0 0.0
    %415 = vmatprep.subr.mxu0 0.0
    %416 = vmatpush1.msra.mxu0 0.0
    %417 = vmatprep.subr.mxu0 0.0
    %418 = vmatpush1.msra.mxu0 0.0
    %419 = vmatprep.subr.mxu0 0.0
    %420 = vmatpush1.msra.mxu0 0.0
    %421 = vmatprep.subr.mxu0 0.0
    %422 = vmatpush1.msra.mxu0 0.0
    %423 = vmatprep.subr.mxu0 0.0
    %424 = vmatpush1.msra.mxu0 0.0
    %425 = vmatprep.subr.mxu0 0.0
    %426 = vmatpush1.msra.mxu0 0.0
    %427 = vmatprep.subr.mxu0 0.0
    %428 = vmatpush1.msra.mxu0 0.0
    %429 = vmatprep.subr.mxu0 0.0
    %430 = vmatpush1.msra.mxu0 0.0
    %431 = vmatprep.subr.mxu0 0.0
    %432 = vmatpush1.msra.mxu0 0.0
    %433 = vmatprep.subr.mxu0 0.0
    %434 = vmatpush1.msra.mxu0 0.0
    %435 = vmatprep.subr.mxu0 0.0
    %436 = vmatpush1.msra.mxu0 0.0
    %437 = vmatprep.subr.mxu0 0.0
    %438 = vmatpush1.msra.mxu0 0.0
    %439 = vmatprep.subr.mxu0 0.0
    %440 = vmatpush1.msra.mxu0 0.0
    %441 = vmatprep.subr.mxu0 0.0
    %442 = vmatpush1.msra.mxu0 0.0
    %443 = vmatprep.subr.mxu0 0.0
    %444 = vmatpush1.msra.mxu0 0.0
    %445 = vmatprep.subr.mxu0 0.0
    %446 = vmatpush1.msra.mxu0 0.0
    %447 = vmatprep.subr.mxu0 0.0
    %448 = vmatpush1.msra.mxu0 0.0
    %449 = vmatprep.subr.mxu0 0.0
    %450 = vmatpush1.msra.mxu0 0.0
    %451 = vmatprep.subr.mxu0 0.0
    %452 = vmatpush1.msra.mxu0 0.0
    %453 = vmatprep.subr.mxu0 0.0
    %454 = vmatpush1.msra.mxu0 0.0
    %455 = vmatprep.subr.mxu0 0.0
    %456 = vmatpush1.msra.mxu0 0.0
    %457 = vmatprep.mubr.f32.mxu0 0.0
    %458 = vmatmul.mubr.f32.gmra.mrb[0].mxu0 %v391
    %v459 = vpop.f32.mrb[0].mxu0
    %v460 = vadd.f32 0.0, %v459
    %v461 = vpop.f32.mrb[0].mxu0
    %462 = vdwg.mxu0
    %464 = vrot.lane.b32.xlu0 %v389, 32
    %v465 = vpop.permute.xlu0 %464
    %v466 = vsel %vm289, %v465, 0
    %468 = vmatprep.subr.mxu0 0.0
    %469 = vmatpush1.msra.mxu0 %v152
    %470 = vmatprep.subr.mxu0 0.0
    %471 = vmatpush1.msra.mxu0 %v153
    %472 = vmatprep.subr.mxu0 0.0
    %473 = vmatpush1.msra.mxu0 %v154
    %474 = vmatprep.subr.mxu0 0.0
    %475 = vmatpush1.msra.mxu0 %v155
    %476 = vmatprep.subr.mxu0 0.0
    %477 = vmatpush1.msra.mxu0 0.0
    %478 = vmatprep.subr.mxu0 0.0
    %479 = vmatpush1.msra.mxu0 0.0
    %480 = vmatprep.subr.mxu0 0.0
    %481 = vmatpush1.msra.mxu0 0.0
    %482 = vmatprep.subr.mxu0 0.0
    %483 = vmatpush1.msra.mxu0 0.0
    %484 = vmatprep.subr.mxu0 0.0
    %485 = vmatpush1.msra.mxu0 0.0
    %486 = vmatprep.subr.mxu0 0.0
    %487 = vmatpush1.msra.mxu0 0.0
    %488 = vmatprep.subr.mxu0 0.0
    %489 = vmatpush1.msra.mxu0 0.0
    %490 = vmatprep.subr.mxu0 0.0
    %491 = vmatpush1.msra.mxu0 0.0
    %492 = vmatprep.subr.mxu0 0.0
    %493 = vmatpush1.msra.mxu0 0.0
    %494 = vmatprep.subr.mxu0 0.0
    %495 = vmatpush1.msra.mxu0 0.0
    %496 = vmatprep.subr.mxu0 0.0
    %497 = vmatpush1.msra.mxu0 0.0
    %498 = vmatprep.subr.mxu0 0.0
    %499 = vmatpush1.msra.mxu0 0.0
    %500 = vmatprep.subr.mxu0 0.0
    %501 = vmatpush1.msra.mxu0 0.0
    %502 = vmatprep.subr.mxu0 0.0
    %503 = vmatpush1.msra.mxu0 0.0
    %504 = vmatprep.subr.mxu0 0.0
    %505 = vmatpush1.msra.mxu0 0.0
    %506 = vmatprep.subr.mxu0 0.0
    %507 = vmatpush1.msra.mxu0 0.0
    %508 = vmatprep.subr.mxu0 0.0
    %509 = vmatpush1.msra.mxu0 0.0
    %510 = vmatprep.subr.mxu0 0.0
    %511 = vmatpush1.msra.mxu0 0.0
    %512 = vmatprep.subr.mxu0 0.0
    %513 = vmatpush1.msra.mxu0 0.0
    %514 = vmatprep.subr.mxu0 0.0
    %515 = vmatpush1.msra.mxu0 0.0
    %516 = vmatprep.subr.mxu0 0.0
    %517 = vmatpush1.msra.mxu0 0.0
    %518 = vmatprep.subr.mxu0 0.0
    %519 = vmatpush1.msra.mxu0 0.0
    %520 = vmatprep.subr.mxu0 0.0
    %521 = vmatpush1.msra.mxu0 0.0
    %522 = vmatprep.subr.mxu0 0.0
    %523 = vmatpush1.msra.mxu0 0.0
    %524 = vmatprep.subr.mxu0 0.0
    %525 = vmatpush1.msra.mxu0 0.0
    %526 = vmatprep.subr.mxu0 0.0
    %527 = vmatpush1.msra.mxu0 0.0
    %528 = vmatprep.subr.mxu0 0.0
    %529 = vmatpush1.msra.mxu0 0.0
    %530 = vmatprep.subr.mxu0 0.0
    %531 = vmatpush1.msra.mxu0 0.0
    %532 = vmatprep.mubr.f32.mxu0 0.0
    %533 = vmatmul.mubr.f32.gmra.mrb[0].mxu0 %v466
    %v534 = vpop.f32.mrb[0].mxu0
    %v535 = vadd.f32 %v460, %v534
    %v536 = vpop.f32.mrb[0].mxu0
    %537 = vdwg.mxu0
    %v538 = vadd.f32 %v535, %v283
    %v539 = vmul.f32 %v538, 0.5
    %v540 = vtanh.pop %v539
    %v541 = vmul.f32 %v540, 0.5
    %v542 = vadd.f32 %v541, 0.5
    %v543 = vtanh.pop %v538
    %545 = vrot.lane.b32.xlu0 %v288, 32
    %v546 = vpop.permute.xlu0 %545
    %v548 = vmul.f32 %v542, %v546
    %550 = vrot.lane.b32.xlu0 %v543, 64
    %v551 = vpop.permute.xlu0 %550
    %v553 = vmul.f32 %v542, %v551
    %555 = vrot.lane.b32.xlu0 %v553, 32
    %v556 = vpop.permute.xlu0 %555
    %v558 = vadd.f32 %v548, %v556
    %v559 = vtanh.pop %v558
    %561 = vrot.lane.b32.xlu0 %v559, 64
    %v562 = vpop.permute.xlu0 %561
    %v564 = vmul.f32 %v542, %v562
    %v567 = vunpack.c.l.s4 1983009808
    %v568 = vunpack.c.0.s8 %v567
    %v569 = vlaneseq
    %v570 = vshrl.u32 %v569, 7
    %v571 = vsub.s32 %v568, %v570
    %v572 = vrot.slane %v564, %v571
    %573 = vrot.lane.b32.xlu0 %v572, 32
    %v574 = vpop.permute.xlu0 %573
    %vm576 = vcmask 254976
    %577 = vst.msk [vmem:[#allocation2] sm:$0x3] %vm576, %v574
    %578 = vmatprep.subr.mxu0 0.0
    %579 = vmatpush1.msra.mxu0 %v147
    %580 = vmatprep.subr.mxu0 0.0
    %581 = vmatpush1.msra.mxu0 %v148
    %582 = vmatprep.subr.mxu0 0.0
    %583 = vmatpush1.msra.mxu0 %v149
    %584 = vmatprep.subr.mxu0 0.0
    %585 = vmatpush1.msra.mxu0 %v150
    %586 = vmatprep.subr.mxu0 0.0
    %587 = vmatpush1.msra.mxu0 0.0
    %588 = vmatprep.subr.mxu0 0.0
    %589 = vmatpush1.msra.mxu0 0.0
    %590 = vmatprep.subr.mxu0 0.0
    %591 = vmatpush1.msra.mxu0 0.0
    %592 = vmatprep.subr.mxu0 0.0
    %593 = vmatpush1.msra.mxu0 0.0
    %594 = vmatprep.subr.mxu0 0.0
    %595 = vmatpush1.msra.mxu0 0.0
    %596 = vmatprep.subr.mxu0 0.0
    %597 = vmatpush1.msra.mxu0 0.0
    %598 = vmatprep.subr.mxu0 0.0
    %599 = vmatpush1.msra.mxu0 0.0
    %600 = vmatprep.subr.mxu0 0.0
    %601 = vmatpush1.msra.mxu0 0.0
    %602 = vmatprep.subr.mxu0 0.0
    %603 = vmatpush1.msra.mxu0 0.0
    %604 = vmatprep.subr.mxu0 0.0
    %605 = vmatpush1.msra.mxu0 0.0
    %606 = vmatprep.subr.mxu0 0.0
    %607 = vmatpush1.msra.mxu0 0.0
    %608 = vmatprep.subr.mxu0 0.0
    %609 = vmatpush1.msra.mxu0 0.0
    %610 = vmatprep.subr.mxu0 0.0
    %611 = vmatpush1.msra.mxu0 0.0
    %612 = vmatprep.subr.mxu0 0.0
    %613 = vmatpush1.msra.mxu0 0.0
    %614 = vmatprep.subr.mxu0 0.0
    %615 = vmatpush1.msra.mxu0 0.0
    %616 = vmatprep.subr.mxu0 0.0
    %617 = vmatpush1.msra.mxu0 0.0
    %618 = vmatprep.subr.mxu0 0.0
    %619 = vmatpush1.msra.mxu0 0.0
    %620 = vmatprep.subr.mxu0 0.0
    %621 = vmatpush1.msra.mxu0 0.0
    %622 = vmatprep.subr.mxu0 0.0
    %623 = vmatpush1.msra.mxu0 0.0
    %624 = vmatprep.subr.mxu0 0.0
    %625 = vmatpush1.msra.mxu0 0.0
    %626 = vmatprep.subr.mxu0 0.0
    %627 = vmatpush1.msra.mxu0 0.0
    %628 = vmatprep.subr.mxu0 0.0
    %629 = vmatpush1.msra.mxu0 0.0
    %630 = vmatprep.subr.mxu0 0.0
    %631 = vmatpush1.msra.mxu0 0.0
    %632 = vmatprep.subr.mxu0 0.0
    %633 = vmatpush1.msra.mxu0 0.0
    %634 = vmatprep.subr.mxu0 0.0
    %635 = vmatpush1.msra.mxu0 0.0
    %636 = vmatprep.subr.mxu0 0.0
    %637 = vmatpush1.msra.mxu0 0.0
    %638 = vmatprep.subr.mxu0 0.0
    %639 = vmatpush1.msra.mxu0 0.0
    %640 = vmatprep.subr.mxu0 0.0
    %641 = vmatpush1.msra.mxu0 0.0
    %642 = vmatprep.mubr.f32.mxu0 0.0
    %643 = vmatmul.mubr.f32.gmra.mrb[0].mxu0 %v466
    %v644 = vpop.f32.mrb[0].mxu0
    %v645 = vadd.f32 0.0, %v644
    %v646 = vpop.f32.mrb[0].mxu0
    %647 = vdwg.mxu0
    %v648 = vadd.f32 %v276, %v645
    %v649 = vmul.f32 %v648, 0.5
    %v650 = vtanh.pop %v649
    %v651 = vmul.f32 %v650, 0.5
    %v652 = vadd.f32 %v651, 0.5
    %v653 = vtanh.pop %v648
    %v654 = vmul.f32 %v652, %v383
    %656 = vrot.lane.b32.xlu0 %v653, 64
    %v657 = vpop.permute.xlu0 %656
    %v659 = vmul.f32 %v652, %v657
    %661 = vrot.lane.b32.xlu0 %v659, 32
    %v662 = vpop.permute.xlu0 %661
    %v664 = vadd.f32 %v654, %v662
    %v665 = vtanh.pop %v664
    %667 = vrot.lane.b32.xlu0 %v665, 64
    %v668 = vpop.permute.xlu0 %667
    %v670 = vmul.f32 %v652, %v668
    %671 = vrot.lane.b32.xlu0 %v564, 32
    %v672 = vpop.permute.xlu0 %671
    %v673 = vsel %vm289, %v672, 0
    %675 = vmatprep.subr.mxu0 0.0
    %676 = vmatpush1.msra.mxu0 %v156
    %677 = vmatprep.subr.mxu0 0.0
    %678 = vmatpush1.msra.mxu0 %v157
    %679 = vmatprep.subr.mxu0 0.0
    %680 = vmatpush1.msra.mxu0 %v158
    %681 = vmatprep.subr.mxu0 0.0
    %682 = vmatpush1.msra.mxu0 %v159
    %683 = vmatprep.subr.mxu0 0.0
    %684 = vmatpush1.msra.mxu0 0.0
    %685 = vmatprep.subr.mxu0 0.0
    %686 = vmatpush1.msra.mxu0 0.0
    %687 = vmatprep.subr.mxu0 0.0
    %688 = vmatpush1.msra.mxu0 0.0
    %689 = vmatprep.subr.mxu0 0.0
    %690 = vmatpush1.msra.mxu0 0.0
    %691 = vmatprep.subr.mxu0 0.0
    %692 = vmatpush1.msra.mxu0 0.0
    %693 = vmatprep.subr.mxu0 0.0
    %694 = vmatpush1.msra.mxu0 0.0
    %695 = vmatprep.subr.mxu0 0.0
    %696 = vmatpush1.msra.mxu0 0.0
    %697 = vmatprep.subr.mxu0 0.0
    %698 = vmatpush1.msra.mxu0 0.0
    %699 = vmatprep.subr.mxu0 0.0
    %700 = vmatpush1.msra.mxu0 0.0
    %701 = vmatprep.subr.mxu0 0.0
    %702 = vmatpush1.msra.mxu0 0.0
    %703 = vmatprep.subr.mxu0 0.0
    %704 = vmatpush1.msra.mxu0 0.0
    %705 = vmatprep.subr.mxu0 0.0
    %706 = vmatpush1.msra.mxu0 0.0
    %707 = vmatprep.subr.mxu0 0.0
    %708 = vmatpush1.msra.mxu0 0.0
    %709 = vmatprep.subr.mxu0 0.0
    %710 = vmatpush1.msra.mxu0 0.0
    %711 = vmatprep.subr.mxu0 0.0
    %712 = vmatpush1.msra.mxu0 0.0
    %713 = vmatprep.subr.mxu0 0.0
    %714 = vmatpush1.msra.mxu0 0.0
    %715 = vmatprep.subr.mxu0 0.0
    %716 = vmatpush1.msra.mxu0 0.0
    %717 = vmatprep.subr.mxu0 0.0
    %718 = vmatpush1.msra.mxu0 0.0
    %719 = vmatprep.subr.mxu0 0.0
    %720 = vmatpush1.msra.mxu0 0.0
    %721 = vmatprep.subr.mxu0 0.0
    %722 = vmatpush1.msra.mxu0 0.0
    %723 = vmatprep.subr.mxu0 0.0
    %724 = vmatpush1.msra.mxu0 0.0
    %725 = vmatprep.subr.mxu0 0.0
    %726 = vmatpush1.msra.mxu0 0.0
    %727 = vmatprep.subr.mxu0 0.0
    %728 = vmatpush1.msra.mxu0 0.0
    %729 = vmatprep.subr.mxu0 0.0
    %730 = vmatpush1.msra.mxu0 0.0
    %731 = vmatprep.subr.mxu0 0.0
    %732 = vmatpush1.msra.mxu0 0.0
    %733 = vmatprep.subr.mxu0 0.0
    %734 = vmatpush1.msra.mxu0 0.0
    %735 = vmatprep.subr.mxu0 0.0
    %736 = vmatpush1.msra.mxu0 0.0
    %737 = vmatprep.subr.mxu0 0.0
    %738 = vmatpush1.msra.mxu0 0.0
    %739 = vmatprep.mubr.f32.mxu0 0.0
    %740 = vmatmul.mubr.f32.gmra.mrb[0].mxu0 %v673
    %v741 = vpop.f32.mrb[0].mxu0
    %v742 = vadd.f32 0.0, %v741
    %v743 = vpop.f32.mrb[0].mxu0
    %744 = vdwg.mxu0
    %746 = vrot.lane.b32.xlu0 %v670, 32
    %v747 = vpop.permute.xlu0 %746
    %v748 = vsel %vm289, %v747, 0
    %750 = vmatprep.subr.mxu0 0.0
    %751 = vmatpush1.msra.mxu0 %v152
    %752 = vmatprep.subr.mxu0 0.0
    %753 = vmatpush1.msra.mxu0 %v153
    %754 = vmatprep.subr.mxu0 0.0
    %755 = vmatpush1.msra.mxu0 %v154
    %756 = vmatprep.subr.mxu0 0.0
    %757 = vmatpush1.msra.mxu0 %v155
    %758 = vmatprep.subr.mxu0 0.0
    %759 = vmatpush1.msra.mxu0 0.0
    %760 = vmatprep.subr.mxu0 0.0
    %761 = vmatpush1.msra.mxu0 0.0
    %762 = vmatprep.subr.mxu0 0.0
    %763 = vmatpush1.msra.mxu0 0.0
    %764 = vmatprep.subr.mxu0 0.0
    %765 = vmatpush1.msra.mxu0 0.0
    %766 = vmatprep.subr.mxu0 0.0
    %767 = vmatpush1.msra.mxu0 0.0
    %768 = vmatprep.subr.mxu0 0.0
    %769 = vmatpush1.msra.mxu0 0.0
    %770 = vmatprep.subr.mxu0 0.0
    %771 = vmatpush1.msra.mxu0 0.0
    %772 = vmatprep.subr.mxu0 0.0
    %773 = vmatpush1.msra.mxu0 0.0
    %774 = vmatprep.subr.mxu0 0.0
    %775 = vmatpush1.msra.mxu0 0.0
    %776 = vmatprep.subr.mxu0 0.0
    %777 = vmatpush1.msra.mxu0 0.0
    %778 = vmatprep.subr.mxu0 0.0
    %779 = vmatpush1.msra.mxu0 0.0
    %780 = vmatprep.subr.mxu0 0.0
    %781 = vmatpush1.msra.mxu0 0.0
    %782 = vmatprep.subr.mxu0 0.0
    %783 = vmatpush1.msra.mxu0 0.0
    %784 = vmatprep.subr.mxu0 0.0
    %785 = vmatpush1.msra.mxu0 0.0
    %786 = vmatprep.subr.mxu0 0.0
    %787 = vmatpush1.msra.mxu0 0.0
    %788 = vmatprep.subr.mxu0 0.0
    %789 = vmatpush1.msra.mxu0 0.0
    %790 = vmatprep.subr.mxu0 0.0
    %791 = vmatpush1.msra.mxu0 0.0
    %792 = vmatprep.subr.mxu0 0.0
    %793 = vmatpush1.msra.mxu0 0.0
    %794 = vmatprep.subr.mxu0 0.0
    %795 = vmatpush1.msra.mxu0 0.0
    %796 = vmatprep.subr.mxu0 0.0
    %797 = vmatpush1.msra.mxu0 0.0
    %798 = vmatprep.subr.mxu0 0.0
    %799 = vmatpush1.msra.mxu0 0.0
    %800 = vmatprep.subr.mxu0 0.0
    %801 = vmatpush1.msra.mxu0 0.0
    %802 = vmatprep.subr.mxu0 0.0
    %803 = vmatpush1.msra.mxu0 0.0
    %804 = vmatprep.subr.mxu0 0.0
    %805 = vmatpush1.msra.mxu0 0.0
    %806 = vmatprep.subr.mxu0 0.0
    %807 = vmatpush1.msra.mxu0 0.0
    %808 = vmatprep.subr.mxu0 0.0
    %809 = vmatpush1.msra.mxu0 0.0
    %810 = vmatprep.subr.mxu0 0.0
    %811 = vmatpush1.msra.mxu0 0.0
    %812 = vmatprep.subr.mxu0 0.0
    %813 = vmatpush1.msra.mxu0 0.0
    %814 = vmatprep.mubr.f32.mxu0 0.0
    %815 = vmatmul.mubr.f32.gmra.mrb[0].mxu0 %v748
    %v816 = vpop.f32.mrb[0].mxu0
    %v817 = vadd.f32 %v742, %v816
    %v818 = vpop.f32.mrb[0].mxu0
    %819 = vdwg.mxu0
    %v820 = vadd.f32 %v817, %v283
    %v821 = vmul.f32 %v820, 0.5
    %v822 = vtanh.pop %v821
    %v823 = vmul.f32 %v822, 0.5
    %v824 = vadd.f32 %v823, 0.5
    %v825 = vtanh.pop %v820
    %v826 = vmul.f32 %v824, %v558
    %828 = vrot.lane.b32.xlu0 %v825, 64
    %v829 = vpop.permute.xlu0 %828
    %v831 = vmul.f32 %v824, %v829
    %833 = vrot.lane.b32.xlu0 %v831, 32
    %v834 = vpop.permute.xlu0 %833
    %v836 = vadd.f32 %v826, %v834
    %v837 = vtanh.pop %v836
    %839 = vrot.lane.b32.xlu0 %v837, 64
    %v840 = vpop.permute.xlu0 %839
    %v842 = vmul.f32 %v824, %v840
    %v845 = vunpack.c.l.s4 1983009808
    %v846 = vunpack.c.0.s8 %v845
    %v847 = vlaneseq
    %v848 = vshrl.u32 %v847, 7
    %v849 = vsub.s32 %v846, %v848
    %v850 = vrot.slane %v842, %v849
    %851 = vrot.lane.b32.xlu0 %v850, 64
    %v852 = vpop.permute.xlu0 %851
    %vm854 = vcmask 517376
    %855 = vst.msk [vmem:[#allocation2] sm:$0x3] %vm854, %v852
    %856 = vmatprep.subr.mxu0 0.0
    %857 = vmatpush1.msra.mxu0 %v147
    %858 = vmatprep.subr.mxu0 0.0
    %859 = vmatpush1.msra.mxu0 %v148
    %860 = vmatprep.subr.mxu0 0.0
    %861 = vmatpush1.msra.mxu0 %v149
    %862 = vmatprep.subr.mxu0 0.0
    %863 = vmatpush1.msra.mxu0 %v150
    %864 = vmatprep.subr.mxu0 0.0
    %865 = vmatpush1.msra.mxu0 0.0
    %866 = vmatprep.subr.mxu0 0.0
    %867 = vmatpush1.msra.mxu0 0.0
    %868 = vmatprep.subr.mxu0 0.0
    %869 = vmatpush1.msra.mxu0 0.0
    %870 = vmatprep.subr.mxu0 0.0
    %871 = vmatpush1.msra.mxu0 0.0
    %872 = vmatprep.subr.mxu0 0.0
    %873 = vmatpush1.msra.mxu0 0.0
    %874 = vmatprep.subr.mxu0 0.0
    %875 = vmatpush1.msra.mxu0 0.0
    %876 = vmatprep.subr.mxu0 0.0
    %877 = vmatpush1.msra.mxu0 0.0
    %878 = vmatprep.subr.mxu0 0.0
    %879 = vmatpush1.msra.mxu0 0.0
    %880 = vmatprep.subr.mxu0 0.0
    %881 = vmatpush1.msra.mxu0 0.0
    %882 = vmatprep.subr.mxu0 0.0
    %883 = vmatpush1.msra.mxu0 0.0
    %884 = vmatprep.subr.mxu0 0.0
    %885 = vmatpush1.msra.mxu0 0.0
    %886 = vmatprep.subr.mxu0 0.0
    %887 = vmatpush1.msra.mxu0 0.0
    %888 = vmatprep.subr.mxu0 0.0
    %889 = vmatpush1.msra.mxu0 0.0
    %890 = vmatprep.subr.mxu0 0.0
    %891 = vmatpush1.msra.mxu0 0.0
    %892 = vmatprep.subr.mxu0 0.0
    %893 = vmatpush1.msra.mxu0 0.0
    %894 = vmatprep.subr.mxu0 0.0
    %895 = vmatpush1.msra.mxu0 0.0
    %896 = vmatprep.subr.mxu0 0.0
    %897 = vmatpush1.msra.mxu0 0.0
    %898 = vmatprep.subr.mxu0 0.0
    %899 = vmatpush1.msra.mxu0 0.0
    %900 = vmatprep.subr.mxu0 0.0
    %901 = vmatpush1.msra.mxu0 0.0
    %902 = vmatprep.subr.mxu0 0.0
    %903 = vmatpush1.msra.mxu0 0.0
    %904 = vmatprep.subr.mxu0 0.0
    %905 = vmatpush1.msra.mxu0 0.0
    %906 = vmatprep.subr.mxu0 0.0
    %907 = vmatpush1.msra.mxu0 0.0
    %908 = vmatprep.subr.mxu0 0.0
    %909 = vmatpush1.msra.mxu0 0.0
    %910 = vmatprep.subr.mxu0 0.0
    %911 = vmatpush1.msra.mxu0 0.0
    %912 = vmatprep.subr.mxu0 0.0
    %913 = vmatpush1.msra.mxu0 0.0
    %914 = vmatprep.subr.mxu0 0.0
    %915 = vmatpush1.msra.mxu0 0.0
    %916 = vmatprep.subr.mxu0 0.0
    %917 = vmatpush1.msra.mxu0 0.0
    %918 = vmatprep.subr.mxu0 0.0
    %919 = vmatpush1.msra.mxu0 0.0
    %920 = vmatprep.mubr.f32.mxu0 0.0
    %921 = vmatmul.mubr.f32.gmra.mrb[0].mxu0 %v748
    %v922 = vpop.f32.mrb[0].mxu0
    %v923 = vadd.f32 0.0, %v922
    %v924 = vpop.f32.mrb[0].mxu0
    %925 = vdwg.mxu0
    %v926 = vadd.f32 %v276, %v923
    %v927 = vmul.f32 %v926, 0.5
    %v928 = vtanh.pop %v927
    %v929 = vmul.f32 %v928, 0.5
    %v930 = vadd.f32 %v929, 0.5
    %v931 = vtanh.pop %v926
    %v932 = vmul.f32 %v930, %v664
    %934 = vrot.lane.b32.xlu0 %v931, 64
    %v935 = vpop.permute.xlu0 %934
    %v937 = vmul.f32 %v930, %v935
    %939 = vrot.lane.b32.xlu0 %v937, 32
    %v940 = vpop.permute.xlu0 %939
    %v942 = vadd.f32 %v932, %v940
    %v943 = vtanh.pop %v942
    %945 = vrot.lane.b32.xlu0 %v943, 64
    %v946 = vpop.permute.xlu0 %945
    %v948 = vmul.f32 %v930, %v946
    %949 = vrot.lane.b32.xlu0 %v842, 32
    %v950 = vpop.permute.xlu0 %949
    %v951 = vsel %vm289, %v950, 0
    %953 = vmatprep.subr.mxu0 0.0
    %954 = vmatpush1.msra.mxu0 %v156
    %955 = vmatprep.subr.mxu0 0.0
    %956 = vmatpush1.msra.mxu0 %v157
    %957 = vmatprep.subr.mxu0 0.0
    %958 = vmatpush1.msra.mxu0 %v158
    %959 = vmatprep.subr.mxu0 0.0
    %960 = vmatpush1.msra.mxu0 %v159
    %961 = vmatprep.subr.mxu0 0.0
    %962 = vmatpush1.msra.mxu0 0.0
    %963 = vmatprep.subr.mxu0 0.0
    %964 = vmatpush1.msra.mxu0 0.0
    %965 = vmatprep.subr.mxu0 0.0
    %966 = vmatpush1.msra.mxu0 0.0
    %967 = vmatprep.subr.mxu0 0.0
    %968 = vmatpush1.msra.mxu0 0.0
    %969 = vmatprep.subr.mxu0 0.0
    %970 = vmatpush1.msra.mxu0 0.0
    %971 = vmatprep.subr.mxu0 0.0
    %972 = vmatpush1.msra.mxu0 0.0
    %973 = vmatprep.subr.mxu0 0.0
    %974 = vmatpush1.msra.mxu0 0.0
    %975 = vmatprep.subr.mxu0 0.0
    %976 = vmatpush1.msra.mxu0 0.0
    %977 = vmatprep.subr.mxu0 0.0
    %978 = vmatpush1.msra.mxu0 0.0
    %979 = vmatprep.subr.mxu0 0.0
    %980 = vmatpush1.msra.mxu0 0.0
    %981 = vmatprep.subr.mxu0 0.0
    %982 = vmatpush1.msra.mxu0 0.0
    %983 = vmatprep.subr.mxu0 0.0
    %984 = vmatpush1.msra.mxu0 0.0
    %985 = vmatprep.subr.mxu0 0.0
    %986 = vmatpush1.msra.mxu0 0.0
    %987 = vmatprep.subr.mxu0 0.0
    %988 = vmatpush1.msra.mxu0 0.0
    %989 = vmatprep.subr.mxu0 0.0
    %990 = vmatpush1.msra.mxu0 0.0
    %991 = vmatprep.subr.mxu0 0.0
    %992 = vmatpush1.msra.mxu0 0.0
    %993 = vmatprep.subr.mxu0 0.0
    %994 = vmatpush1.msra.mxu0 0.0
    %995 = vmatprep.subr.mxu0 0.0
    %996 = vmatpush1.msra.mxu0 0.0
    %997 = vmatprep.subr.mxu0 0.0
    %998 = vmatpush1.msra.mxu0 0.0
    %999 = vmatprep.subr.mxu0 0.0
    %1000 = vmatpush1.msra.mxu0 0.0
    %1001 = vmatprep.subr.mxu0 0.0
    %1002 = vmatpush1.msra.mxu0 0.0
    %1003 = vmatprep.subr.mxu0 0.0
    %1004 = vmatpush1.msra.mxu0 0.0
    %1005 = vmatprep.subr.mxu0 0.0
    %1006 = vmatpush1.msra.mxu0 0.0
    %1007 = vmatprep.subr.mxu0 0.0
    %1008 = vmatpush1.msra.mxu0 0.0
    %1009 = vmatprep.subr.mxu0 0.0
    %1010 = vmatpush1.msra.mxu0 0.0
    %1011 = vmatprep.subr.mxu0 0.0
    %1012 = vmatpush1.msra.mxu0 0.0
    %1013 = vmatprep.subr.mxu0 0.0
    %1014 = vmatpush1.msra.mxu0 0.0
    %1015 = vmatprep.subr.mxu0 0.0
    %1016 = vmatpush1.msra.mxu0 0.0
    %1017 = vmatprep.mubr.f32.mxu0 0.0
    %1018 = vmatmul.mubr.f32.gmra.mrb[0].mxu0 %v951
    %v1019 = vpop.f32.mrb[0].mxu0
    %v1020 = vadd.f32 0.0, %v1019
    %v1021 = vpop.f32.mrb[0].mxu0
    %1022 = vdwg.mxu0
    %1024 = vrot.lane.b32.xlu0 %v948, 32
    %v1025 = vpop.permute.xlu0 %1024
    %v1026 = vsel %vm289, %v1025, 0
    %1028 = vmatprep.subr.mxu0 0.0
    %1029 = vmatpush1.msra.mxu0 %v152
    %1030 = vmatprep.subr.mxu0 0.0
    %1031 = vmatpush1.msra.mxu0 %v153
    %1032 = vmatprep.subr.mxu0 0.0
    %1033 = vmatpush1.msra.mxu0 %v154
    %1034 = vmatprep.subr.mxu0 0.0
    %1035 = vmatpush1.msra.mxu0 %v155
    %1036 = vmatprep.subr.mxu0 0.0
    %1037 = vmatpush1.msra.mxu0 0.0
    %1038 = vmatprep.subr.mxu0 0.0
    %1039 = vmatpush1.msra.mxu0 0.0
    %1040 = vmatprep.subr.mxu0 0.0
    %1041 = vmatpush1.msra.mxu0 0.0
    %1042 = vmatprep.subr.mxu0 0.0
    %1043 = vmatpush1.msra.mxu0 0.0
    %1044 = vmatprep.subr.mxu0 0.0
    %1045 = vmatpush1.msra.mxu0 0.0
    %1046 = vmatprep.subr.mxu0 0.0
    %1047 = vmatpush1.msra.mxu0 0.0
    %1048 = vmatprep.subr.mxu0 0.0
    %1049 = vmatpush1.msra.mxu0 0.0
    %1050 = vmatprep.subr.mxu0 0.0
    %1051 = vmatpush1.msra.mxu0 0.0
    %1052 = vmatprep.subr.mxu0 0.0
    %1053 = vmatpush1.msra.mxu0 0.0
    %1054 = vmatprep.subr.mxu0 0.0
    %1055 = vmatpush1.msra.mxu0 0.0
    %1056 = vmatprep.subr.mxu0 0.0
    %1057 = vmatpush1.msra.mxu0 0.0
    %1058 = vmatprep.subr.mxu0 0.0
    %1059 = vmatpush1.msra.mxu0 0.0
    %1060 = vmatprep.subr.mxu0 0.0
    %1061 = vmatpush1.msra.mxu0 0.0
    %1062 = vmatprep.subr.mxu0 0.0
    %1063 = vmatpush1.msra.mxu0 0.0
    %1064 = vmatprep.subr.mxu0 0.0
    %1065 = vmatpush1.msra.mxu0 0.0
    %1066 = vmatprep.subr.mxu0 0.0
    %1067 = vmatpush1.msra.mxu0 0.0
    %1068 = vmatprep.subr.mxu0 0.0
    %1069 = vmatpush1.msra.mxu0 0.0
    %1070 = vmatprep.subr.mxu0 0.0
    %1071 = vmatpush1.msra.mxu0 0.0
    %1072 = vmatprep.subr.mxu0 0.0
    %1073 = vmatpush1.msra.mxu0 0.0
    %1074 = vmatprep.subr.mxu0 0.0
    %1075 = vmatpush1.msra.mxu0 0.0
    %1076 = vmatprep.subr.mxu0 0.0
    %1077 = vmatpush1.msra.mxu0 0.0
    %1078 = vmatprep.subr.mxu0 0.0
    %1079 = vmatpush1.msra.mxu0 0.0
    %1080 = vmatprep.subr.mxu0 0.0
    %1081 = vmatpush1.msra.mxu0 0.0
    %1082 = vmatprep.subr.mxu0 0.0
    %1083 = vmatpush1.msra.mxu0 0.0
    %1084 = vmatprep.subr.mxu0 0.0
    %1085 = vmatpush1.msra.mxu0 0.0
    %1086 = vmatprep.subr.mxu0 0.0
    %1087 = vmatpush1.msra.mxu0 0.0
    %1088 = vmatprep.subr.mxu0 0.0
    %1089 = vmatpush1.msra.mxu0 0.0
    %1090 = vmatprep.subr.mxu0 0.0
    %1091 = vmatpush1.msra.mxu0 0.0
    %1092 = vmatprep.mubr.f32.mxu0 0.0
    %1093 = vmatmul.mubr.f32.gmra.mrb[0].mxu0 %v1026
    %v1094 = vpop.f32.mrb[0].mxu0
    %v1095 = vadd.f32 %v1020, %v1094
    %v1096 = vpop.f32.mrb[0].mxu0
    %1097 = vdwg.mxu0
    %v1098 = vadd.f32 %v1095, %v283
    %v1099 = vmul.f32 %v1098, 0.5
    %v1100 = vtanh.pop %v1099
    %v1101 = vmul.f32 %v1100, 0.5
    %v1102 = vadd.f32 %v1101, 0.5
    %v1103 = vtanh.pop %v1098
    %v1104 = vmul.f32 %v1102, %v836
    %1106 = vrot.lane.b32.xlu0 %v1103, 64
    %v1107 = vpop.permute.xlu0 %1106
    %v1109 = vmul.f32 %v1102, %v1107
    %1111 = vrot.lane.b32.xlu0 %v1109, 32
    %v1112 = vpop.permute.xlu0 %1111
    %v1114 = vadd.f32 %v1104, %v1112
    %v1115 = vtanh.pop %v1114
    %1117 = vrot.lane.b32.xlu0 %v1115, 64
    %v1118 = vpop.permute.xlu0 %1117
    %v1120 = vmul.f32 %v1102, %v1118
    %v1123 = vunpack.c.l.s4 1983009808
    %v1124 = vunpack.c.0.s8 %v1123
    %v1125 = vlaneseq
    %v1126 = vshrl.u32 %v1125, 7
    %v1127 = vsub.s32 %v1124, %v1126
    %v1128 = vrot.slane %v1120, %v1127
    %1129 = vrot.lane.b32.xlu0 %v1128, 96
    %v1130 = vpop.permute.xlu0 %1129
    %vm1132 = vcmask 779776
    %1133 = vst.msk [vmem:[#allocation2] sm:$0x3] %vm1132, %v1130
    %1134 = vmatprep.subr.mxu0 0.0
    %1135 = vmatpush1.msra.mxu0 %v147
    %1136 = vmatprep.subr.mxu0 0.0
    %1137 = vmatpush1.msra.mxu0 %v148
    %1138 = vmatprep.subr.mxu0 0.0
    %1139 = vmatpush1.msra.mxu0 %v149
    %1140 = vmatprep.subr.mxu0 0.0
    %1141 = vmatpush1.msra.mxu0 %v150
    %1142 = vmatprep.subr.mxu0 0.0
    %1143 = vmatpush1.msra.mxu0 0.0
    %1144 = vmatprep.subr.mxu0 0.0
    %1145 = vmatpush1.msra.mxu0 0.0
    %1146 = vmatprep.subr.mxu0 0.0
    %1147 = vmatpush1.msra.mxu0 0.0
    %1148 = vmatprep.subr.mxu0 0.0
    %1149 = vmatpush1.msra.mxu0 0.0
    %1150 = vmatprep.subr.mxu0 0.0
    %1151 = vmatpush1.msra.mxu0 0.0
    %1152 = vmatprep.subr.mxu0 0.0
    %1153 = vmatpush1.msra.mxu0 0.0
    %1154 = vmatprep.subr.mxu0 0.0
    %1155 = vmatpush1.msra.mxu0 0.0
    %1156 = vmatprep.subr.mxu0 0.0
    %1157 = vmatpush1.msra.mxu0 0.0
    %1158 = vmatprep.subr.mxu0 0.0
    %1159 = vmatpush1.msra.mxu0 0.0
    %1160 = vmatprep.subr.mxu0 0.0
    %1161 = vmatpush1.msra.mxu0 0.0
    %1162 = vmatprep.subr.mxu0 0.0
    %1163 = vmatpush1.msra.mxu0 0.0
    %1164 = vmatprep.subr.mxu0 0.0
    %1165 = vmatpush1.msra.mxu0 0.0
    %1166 = vmatprep.subr.mxu0 0.0
    %1167 = vmatpush1.msra.mxu0 0.0
    %1168 = vmatprep.subr.mxu0 0.0
    %1169 = vmatpush1.msra.mxu0 0.0
    %1170 = vmatprep.subr.mxu0 0.0
    %1171 = vmatpush1.msra.mxu0 0.0
    %1172 = vmatprep.subr.mxu0 0.0
    %1173 = vmatpush1.msra.mxu0 0.0
    %1174 = vmatprep.subr.mxu0 0.0
    %1175 = vmatpush1.msra.mxu0 0.0
    %1176 = vmatprep.subr.mxu0 0.0
    %1177 = vmatpush1.msra.mxu0 0.0
    %1178 = vmatprep.subr.mxu0 0.0
    %1179 = vmatpush1.msra.mxu0 0.0
    %1180 = vmatprep.subr.mxu0 0.0
    %1181 = vmatpush1.msra.mxu0 0.0
    %1182 = vmatprep.subr.mxu0 0.0
    %1183 = vmatpush1.msra.mxu0 0.0
    %1184 = vmatprep.subr.mxu0 0.0
    %1185 = vmatpush1.msra.mxu0 0.0
    %1186 = vmatprep.subr.mxu0 0.0
    %1187 = vmatpush1.msra.mxu0 0.0
    %1188 = vmatprep.subr.mxu0 0.0
    %1189 = vmatpush1.msra.mxu0 0.0
    %1190 = vmatprep.subr.mxu0 0.0
    %1191 = vmatpush1.msra.mxu0 0.0
    %1192 = vmatprep.subr.mxu0 0.0
    %1193 = vmatpush1.msra.mxu0 0.0
    %1194 = vmatprep.subr.mxu0 0.0
    %1195 = vmatpush1.msra.mxu0 0.0
    %1196 = vmatprep.subr.mxu0 0.0
    %1197 = vmatpush1.msra.mxu0 0.0
    %1198 = vmatprep.mubr.f32.mxu0 0.0
    %1199 = vmatmul.mubr.f32.gmra.mrb[0].mxu0 %v1026
    %v1200 = vpop.f32.mrb[0].mxu0
    %v1201 = vadd.f32 0.0, %v1200
    %v1202 = vpop.f32.mrb[0].mxu0
    %1203 = vdwg.mxu0
    %v1204 = vadd.f32 %v276, %v1201
    %v1205 = vmul.f32 %v1204, 0.5
    %v1206 = vtanh.pop %v1205
    %v1207 = vmul.f32 %v1206, 0.5
    %v1208 = vadd.f32 %v1207, 0.5
    %v1209 = vtanh.pop %v1204
    %v1210 = vmul.f32 %v1208, %v942
    %1212 = vrot.lane.b32.xlu0 %v1209, 64
    %v1213 = vpop.permute.xlu0 %1212
    %v1215 = vmul.f32 %v1208, %v1213
    %1217 = vrot.lane.b32.xlu0 %v1215, 32
    %v1218 = vpop.permute.xlu0 %1217
    %v1220 = vadd.f32 %v1210, %v1218
    %v1221 = vtanh.pop %v1220
    %1223 = vrot.lane.b32.xlu0 %v1221, 64
    %v1224 = vpop.permute.xlu0 %1223
    %v1226 = vmul.f32 %v1208, %v1224
    %1227 = vrot.lane.b32.xlu0 %v1120, 32
    %v1228 = vpop.permute.xlu0 %1227
    %v1229 = vsel %vm289, %v1228, 0
    %1231 = vmatprep.subr.mxu0 0.0
    %1232 = vmatpush1.msra.mxu0 %v156
    %1233 = vmatprep.subr.mxu0 0.0
    %1234 = vmatpush1.msra.mxu0 %v157
    %1235 = vmatprep.subr.mxu0 0.0
    %1236 = vmatpush1.msra.mxu0 %v158
    %1237 = vmatprep.subr.mxu0 0.0
    %1238 = vmatpush1.msra.mxu0 %v159
    %1239 = vmatprep.subr.mxu0 0.0
    %1240 = vmatpush1.msra.mxu0 0.0
    %1241 = vmatprep.subr.mxu0 0.0
    %1242 = vmatpush1.msra.mxu0 0.0
    %1243 = vmatprep.subr.mxu0 0.0
    %1244 = vmatpush1.msra.mxu0 0.0
    %1245 = vmatprep.subr.mxu0 0.0
    %1246 = vmatpush1.msra.mxu0 0.0
    %1247 = vmatprep.subr.mxu0 0.0
    %1248 = vmatpush1.msra.mxu0 0.0
    %1249 = vmatprep.subr.mxu0 0.0
    %1250 = vmatpush1.msra.mxu0 0.0
    %1251 = vmatprep.subr.mxu0 0.0
    %1252 = vmatpush1.msra.mxu0 0.0
    %1253 = vmatprep.subr.mxu0 0.0
    %1254 = vmatpush1.msra.mxu0 0.0
    %1255 = vmatprep.subr.mxu0 0.0
    %1256 = vmatpush1.msra.mxu0 0.0
    %1257 = vmatprep.subr.mxu0 0.0
    %1258 = vmatpush1.msra.mxu0 0.0
    %1259 = vmatprep.subr.mxu0 0.0
    %1260 = vmatpush1.msra.mxu0 0.0
    %1261 = vmatprep.subr.mxu0 0.0
    %1262 = vmatpush1.msra.mxu0 0.0
    %1263 = vmatprep.subr.mxu0 0.0
    %1264 = vmatpush1.msra.mxu0 0.0
    %1265 = vmatprep.subr.mxu0 0.0
    %1266 = vmatpush1.msra.mxu0 0.0
    %1267 = vmatprep.subr.mxu0 0.0
    %1268 = vmatpush1.msra.mxu0 0.0
    %1269 = vmatprep.subr.mxu0 0.0
    %1270 = vmatpush1.msra.mxu0 0.0
    %1271 = vmatprep.subr.mxu0 0.0
    %1272 = vmatpush1.msra.mxu0 0.0
    %1273 = vmatprep.subr.mxu0 0.0
    %1274 = vmatpush1.msra.mxu0 0.0
    %1275 = vmatprep.subr.mxu0 0.0
    %1276 = vmatpush1.msra.mxu0 0.0
    %1277 = vmatprep.subr.mxu0 0.0
    %1278 = vmatpush1.msra.mxu0 0.0
    %1279 = vmatprep.subr.mxu0 0.0
    %1280 = vmatpush1.msra.mxu0 0.0
    %1281 = vmatprep.subr.mxu0 0.0
    %1282 = vmatpush1.msra.mxu0 0.0
    %1283 = vmatprep.subr.mxu0 0.0
    %1284 = vmatpush1.msra.mxu0 0.0
    %1285 = vmatprep.subr.mxu0 0.0
    %1286 = vmatpush1.msra.mxu0 0.0
    %1287 = vmatprep.subr.mxu0 0.0
    %1288 = vmatpush1.msra.mxu0 0.0
    %1289 = vmatprep.subr.mxu0 0.0
    %1290 = vmatpush1.msra.mxu0 0.0
    %1291 = vmatprep.subr.mxu0 0.0
    %1292 = vmatpush1.msra.mxu0 0.0
    %1293 = vmatprep.subr.mxu0 0.0
    %1294 = vmatpush1.msra.mxu0 0.0
    %1295 = vmatprep.mubr.f32.mxu0 0.0
    %1296 = vmatmul.mubr.f32.gmra.mrb[0].mxu0 %v1229
    %v1297 = vpop.f32.mrb[0].mxu0
    %v1298 = vadd.f32 0.0, %v1297
    %v1299 = vpop.f32.mrb[0].mxu0
    %1300 = vdwg.mxu0
    %1302 = vrot.lane.b32.xlu0 %v1226, 32
    %v1303 = vpop.permute.xlu0 %1302
    %v1304 = vsel %vm289, %v1303, 0
    %1306 = vmatprep.subr.mxu0 0.0
    %1307 = vmatpush1.msra.mxu0 %v152
    %1308 = vmatprep.subr.mxu0 0.0
    %1309 = vmatpush1.msra.mxu0 %v153
    %1310 = vmatprep.subr.mxu0 0.0
    %1311 = vmatpush1.msra.mxu0 %v154
    %1312 = vmatprep.subr.mxu0 0.0
    %1313 = vmatpush1.msra.mxu0 %v155
    %1314 = vmatprep.subr.mxu0 0.0
    %1315 = vmatpush1.msra.mxu0 0.0
    %1316 = vmatprep.subr.mxu0 0.0
    %1317 = vmatpush1.msra.mxu0 0.0
    %1318 = vmatprep.subr.mxu0 0.0
    %1319 = vmatpush1.msra.mxu0 0.0
    %1320 = vmatprep.subr.mxu0 0.0
    %1321 = vmatpush1.msra.mxu0 0.0
    %1322 = vmatprep.subr.mxu0 0.0
    %1323 = vmatpush1.msra.mxu0 0.0
    %1324 = vmatprep.subr.mxu0 0.0
    %1325 = vmatpush1.msra.mxu0 0.0
    %1326 = vmatprep.subr.mxu0 0.0
    %1327 = vmatpush1.msra.mxu0 0.0
    %1328 = vmatprep.subr.mxu0 0.0
    %1329 = vmatpush1.msra.mxu0 0.0
    %1330 = vmatprep.subr.mxu0 0.0
    %1331 = vmatpush1.msra.mxu0 0.0
    %1332 = vmatprep.subr.mxu0 0.0
    %1333 = vmatpush1.msra.mxu0 0.0
    %1334 = vmatprep.subr.mxu0 0.0
    %1335 = vmatpush1.msra.mxu0 0.0
    %1336 = vmatprep.subr.mxu0 0.0
    %1337 = vmatpush1.msra.mxu0 0.0
    %1338 = vmatprep.subr.mxu0 0.0
    %1339 = vmatpush1.msra.mxu0 0.0
    %1340 = vmatprep.subr.mxu0 0.0
    %1341 = vmatpush1.msra.mxu0 0.0
    %1342 = vmatprep.subr.mxu0 0.0
    %1343 = vmatpush1.msra.mxu0 0.0
    %1344 = vmatprep.subr.mxu0 0.0
    %1345 = vmatpush1.msra.mxu0 0.0
    %1346 = vmatprep.subr.mxu0 0.0
    %1347 = vmatpush1.msra.mxu0 0.0
    %1348 = vmatprep.subr.mxu0 0.0
    %1349 = vmatpush1.msra.mxu0 0.0
    %1350 = vmatprep.subr.mxu0 0.0
    %1351 = vmatpush1.msra.mxu0 0.0
    %1352 = vmatprep.subr.mxu0 0.0
    %1353 = vmatpush1.msra.mxu0 0.0
    %1354 = vmatprep.subr.mxu0 0.0
    %1355 = vmatpush1.msra.mxu0 0.0
    %1356 = vmatprep.subr.mxu0 0.0
    %1357 = vmatpush1.msra.mxu0 0.0
    %1358 = vmatprep.subr.mxu0 0.0
    %1359 = vmatpush1.msra.mxu0 0.0
    %1360 = vmatprep.subr.mxu0 0.0
    %1361 = vmatpush1.msra.mxu0 0.0
    %1362 = vmatprep.subr.mxu0 0.0
    %1363 = vmatpush1.msra.mxu0 0.0
    %1364 = vmatprep.subr.mxu0 0.0
    %1365 = vmatpush1.msra.mxu0 0.0
    %1366 = vmatprep.subr.mxu0 0.0
    %1367 = vmatpush1.msra.mxu0 0.0
    %1368 = vmatprep.subr.mxu0 0.0
    %1369 = vmatpush1.msra.mxu0 0.0
    %1370 = vmatprep.mubr.f32.mxu0 0.0
    %1371 = vmatmul.mubr.f32.gmra.mrb[0].mxu0 %v1304
    %v1372 = vpop.f32.mrb[0].mxu0
    %v1373 = vadd.f32 %v1298, %v1372
    %v1374 = vpop.f32.mrb[0].mxu0
    %1375 = vdwg.mxu0
    %v1376 = vadd.f32 %v1373, %v283
    %v1377 = vmul.f32 %v1376, 0.5
    %v1378 = vtanh.pop %v1377
    %v1379 = vmul.f32 %v1378, 0.5
    %v1380 = vadd.f32 %v1379, 0.5
    %v1381 = vtanh.pop %v1376
    %v1382 = vmul.f32 %v1380, %v1114
    %1384 = vrot.lane.b32.xlu0 %v1381, 64
    %v1385 = vpop.permute.xlu0 %1384
    %v1387 = vmul.f32 %v1380, %v1385
    %1389 = vrot.lane.b32.xlu0 %v1387, 32
    %v1390 = vpop.permute.xlu0 %1389
    %v1392 = vadd.f32 %v1382, %v1390
    %v1393 = vtanh.pop %v1392
    %1395 = vrot.lane.b32.xlu0 %v1393, 64
    %v1396 = vpop.permute.xlu0 %1395
    %v1398 = vmul.f32 %v1380, %v1396
    %vm1399 = vcmask 1042176
    %1400 = vst.msk [vmem:[#allocation2] sm:$0x3] %vm1399, %v1398
    %1401 = vmatprep.subr.mxu0 0.0
    %1402 = vmatpush1.msra.mxu0 %v147
    %1403 = vmatprep.subr.mxu0 0.0
    %1404 = vmatpush1.msra.mxu0 %v148
    %1405 = vmatprep.subr.mxu0 0.0
    %1406 = vmatpush1.msra.mxu0 %v149
    %1407 = vmatprep.subr.mxu0 0.0
    %1408 = vmatpush1.msra.mxu0 %v150
    %1409 = vmatprep.subr.mxu0 0.0
    %1410 = vmatpush1.msra.mxu0 0.0
    %1411 = vmatprep.subr.mxu0 0.0
    %1412 = vmatpush1.msra.mxu0 0.0
    %1413 = vmatprep.subr.mxu0 0.0
    %1414 = vmatpush1.msra.mxu0 0.0
    %1415 = vmatprep.subr.mxu0 0.0
    %1416 = vmatpush1.msra.mxu0 0.0
    %1417 = vmatprep.subr.mxu0 0.0
    %1418 = vmatpush1.msra.mxu0 0.0
    %1419 = vmatprep.subr.mxu0 0.0
    %1420 = vmatpush1.msra.mxu0 0.0
    %1421 = vmatprep.subr.mxu0 0.0
    %1422 = vmatpush1.msra.mxu0 0.0
    %1423 = vmatprep.subr.mxu0 0.0
    %1424 = vmatpush1.msra.mxu0 0.0
    %1425 = vmatprep.subr.mxu0 0.0
    %1426 = vmatpush1.msra.mxu0 0.0
    %1427 = vmatprep.subr.mxu0 0.0
    %1428 = vmatpush1.msra.mxu0 0.0
    %1429 = vmatprep.subr.mxu0 0.0
    %1430 = vmatpush1.msra.mxu0 0.0
    %1431 = vmatprep.subr.mxu0 0.0
    %1432 = vmatpush1.msra.mxu0 0.0
    %1433 = vmatprep.subr.mxu0 0.0
    %1434 = vmatpush1.msra.mxu0 0.0
    %1435 = vmatprep.subr.mxu0 0.0
    %1436 = vmatpush1.msra.mxu0 0.0
    %1437 = vmatprep.subr.mxu0 0.0
    %1438 = vmatpush1.msra.mxu0 0.0
    %1439 = vmatprep.subr.mxu0 0.0
    %1440 = vmatpush1.msra.mxu0 0.0
    %1441 = vmatprep.subr.mxu0 0.0
    %1442 = vmatpush1.msra.mxu0 0.0
    %1443 = vmatprep.subr.mxu0 0.0
    %1444 = vmatpush1.msra.mxu0 0.0
    %1445 = vmatprep.subr.mxu0 0.0
    %1446 = vmatpush1.msra.mxu0 0.0
    %1447 = vmatprep.subr.mxu0 0.0
    %1448 = vmatpush1.msra.mxu0 0.0
    %1449 = vmatprep.subr.mxu0 0.0
    %1450 = vmatpush1.msra.mxu0 0.0
    %1451 = vmatprep.subr.mxu0 0.0
    %1452 = vmatpush1.msra.mxu0 0.0
    %1453 = vmatprep.subr.mxu0 0.0
    %1454 = vmatpush1.msra.mxu0 0.0
    %1455 = vmatprep.subr.mxu0 0.0
    %1456 = vmatpush1.msra.mxu0 0.0
    %1457 = vmatprep.subr.mxu0 0.0
    %1458 = vmatpush1.msra.mxu0 0.0
    %1459 = vmatprep.subr.mxu0 0.0
    %1460 = vmatpush1.msra.mxu0 0.0
    %1461 = vmatprep.subr.mxu0 0.0
    %1462 = vmatpush1.msra.mxu0 0.0
    %1463 = vmatprep.subr.mxu0 0.0
    %1464 = vmatpush1.msra.mxu0 0.0
    %1465 = vmatprep.mubr.f32.mxu0 0.0
    %1466 = vmatmul.mubr.f32.gmra.mrb[0].mxu0 %v1304
    %v1467 = vpop.f32.mrb[0].mxu0
    %v1468 = vadd.f32 0.0, %v1467
    %v1469 = vpop.f32.mrb[0].mxu0
    %1470 = vdwg.mxu0
    %v1471 = vadd.f32 %v276, %v1468
    %v1472 = vmul.f32 %v1471, 0.5
    %v1473 = vtanh.pop %v1472
    %v1474 = vmul.f32 %v1473, 0.5
    %v1475 = vadd.f32 %v1474, 0.5
    %v1476 = vtanh.pop %v1471
    %v1477 = vmul.f32 %v1475, %v1220
    %1479 = vrot.lane.b32.xlu0 %v1476, 64
    %v1480 = vpop.permute.xlu0 %1479
    %v1482 = vmul.f32 %v1475, %v1480
    %1484 = vrot.lane.b32.xlu0 %v1482, 32
    %v1485 = vpop.permute.xlu0 %1484
    %v1487 = vadd.f32 %v1477, %v1485
    %v1488 = vtanh.pop %v1487
    %1490 = vrot.lane.b32.xlu0 %v1488, 64
    %v1491 = vpop.permute.xlu0 %1490
    %v1493 = vmul.f32 %v1475, %v1491
    %1495 = vrot.lane.b32.xlu0 %v1398, 32
    %v1496 = vpop.permute.xlu0 %1495
    %v1497 = vsel %vm289, %v1496, 0
    %1499 = vmatprep.subr.mxu0 0.0
    %1500 = vmatpush1.msra.mxu0 %v156
    %1501 = vmatprep.subr.mxu0 0.0
    %1502 = vmatpush1.msra.mxu0 %v157
    %1503 = vmatprep.subr.mxu0 0.0
    %1504 = vmatpush1.msra.mxu0 %v158
    %1505 = vmatprep.subr.mxu0 0.0
    %1506 = vmatpush1.msra.mxu0 %v159
    %1507 = vmatprep.subr.mxu0 0.0
    %1508 = vmatpush1.msra.mxu0 0.0
    %1509 = vmatprep.subr.mxu0 0.0
    %1510 = vmatpush1.msra.mxu0 0.0
    %1511 = vmatprep.subr.mxu0 0.0
    %1512 = vmatpush1.msra.mxu0 0.0
    %1513 = vmatprep.subr.mxu0 0.0
    %1514 = vmatpush1.msra.mxu0 0.0
    %1515 = vmatprep.subr.mxu0 0.0
    %1516 = vmatpush1.msra.mxu0 0.0
    %1517 = vmatprep.subr.mxu0 0.0
    %1518 = vmatpush1.msra.mxu0 0.0
    %1519 = vmatprep.subr.mxu0 0.0
    %1520 = vmatpush1.msra.mxu0 0.0
    %1521 = vmatprep.subr.mxu0 0.0
    %1522 = vmatpush1.msra.mxu0 0.0
    %1523 = vmatprep.subr.mxu0 0.0
    %1524 = vmatpush1.msra.mxu0 0.0
    %1525 = vmatprep.subr.mxu0 0.0
    %1526 = vmatpush1.msra.mxu0 0.0
    %1527 = vmatprep.subr.mxu0 0.0
    %1528 = vmatpush1.msra.mxu0 0.0
    %1529 = vmatprep.subr.mxu0 0.0
    %1530 = vmatpush1.msra.mxu0 0.0
    %1531 = vmatprep.subr.mxu0 0.0
    %1532 = vmatpush1.msra.mxu0 0.0
    %1533 = vmatprep.subr.mxu0 0.0
    %1534 = vmatpush1.msra.mxu0 0.0
    %1535 = vmatprep.subr.mxu0 0.0
    %1536 = vmatpush1.msra.mxu0 0.0
    %1537 = vmatprep.subr.mxu0 0.0
    %1538 = vmatpush1.msra.mxu0 0.0
    %1539 = vmatprep.subr.mxu0 0.0
    %1540 = vmatpush1.msra.mxu0 0.0
    %1541 = vmatprep.subr.mxu0 0.0
    %1542 = vmatpush1.msra.mxu0 0.0
    %1543 = vmatprep.subr.mxu0 0.0
    %1544 = vmatpush1.msra.mxu0 0.0
    %1545 = vmatprep.subr.mxu0 0.0
    %1546 = vmatpush1.msra.mxu0 0.0
    %1547 = vmatprep.subr.mxu0 0.0
    %1548 = vmatpush1.msra.mxu0 0.0
    %1549 = vmatprep.subr.mxu0 0.0
    %1550 = vmatpush1.msra.mxu0 0.0
    %1551 = vmatprep.subr.mxu0 0.0
    %1552 = vmatpush1.msra.mxu0 0.0
    %1553 = vmatprep.subr.mxu0 0.0
    %1554 = vmatpush1.msra.mxu0 0.0
    %1555 = vmatprep.subr.mxu0 0.0
    %1556 = vmatpush1.msra.mxu0 0.0
    %1557 = vmatprep.subr.mxu0 0.0
    %1558 = vmatpush1.msra.mxu0 0.0
    %1559 = vmatprep.subr.mxu0 0.0
    %1560 = vmatpush1.msra.mxu0 0.0
    %1561 = vmatprep.subr.mxu0 0.0
    %1562 = vmatpush1.msra.mxu0 0.0
    %1563 = vmatprep.mubr.f32.mxu0 0.0
    %1564 = vmatmul.mubr.f32.gmra.mrb[0].mxu0 %v1497
    %v1565 = vpop.f32.mrb[0].mxu0
    %v1566 = vadd.f32 0.0, %v1565
    %v1567 = vpop.f32.mrb[0].mxu0
    %1568 = vdwg.mxu0
    %1570 = vrot.lane.b32.xlu0 %v1493, 32
    %v1571 = vpop.permute.xlu0 %1570
    %v1572 = vsel %vm289, %v1571, 0
    %1574 = vmatprep.subr.mxu0 0.0
    %1575 = vmatpush1.msra.mxu0 %v152
    %1576 = vmatprep.subr.mxu0 0.0
    %1577 = vmatpush1.msra.mxu0 %v153
    %1578 = vmatprep.subr.mxu0 0.0
    %1579 = vmatpush1.msra.mxu0 %v154
    %1580 = vmatprep.subr.mxu0 0.0
    %1581 = vmatpush1.msra.mxu0 %v155
    %1582 = vmatprep.subr.mxu0 0.0
    %1583 = vmatpush1.msra.mxu0 0.0
    %1584 = vmatprep.subr.mxu0 0.0
    %1585 = vmatpush1.msra.mxu0 0.0
    %1586 = vmatprep.subr.mxu0 0.0
    %1587 = vmatpush1.msra.mxu0 0.0
    %1588 = vmatprep.subr.mxu0 0.0
    %1589 = vmatpush1.msra.mxu0 0.0
    %1590 = vmatprep.subr.mxu0 0.0
    %1591 = vmatpush1.msra.mxu0 0.0
    %1592 = vmatprep.subr.mxu0 0.0
    %1593 = vmatpush1.msra.mxu0 0.0
    %1594 = vmatprep.subr.mxu0 0.0
    %1595 = vmatpush1.msra.mxu0 0.0
    %1596 = vmatprep.subr.mxu0 0.0
    %1597 = vmatpush1.msra.mxu0 0.0
    %1598 = vmatprep.subr.mxu0 0.0
    %1599 = vmatpush1.msra.mxu0 0.0
    %1600 = vmatprep.subr.mxu0 0.0
    %1601 = vmatpush1.msra.mxu0 0.0
    %1602 = vmatprep.subr.mxu0 0.0
    %1603 = vmatpush1.msra.mxu0 0.0
    %1604 = vmatprep.subr.mxu0 0.0
    %1605 = vmatpush1.msra.mxu0 0.0
    %1606 = vmatprep.subr.mxu0 0.0
    %1607 = vmatpush1.msra.mxu0 0.0
    %1608 = vmatprep.subr.mxu0 0.0
    %1609 = vmatpush1.msra.mxu0 0.0
    %1610 = vmatprep.subr.mxu0 0.0
    %1611 = vmatpush1.msra.mxu0 0.0
    %1612 = vmatprep.subr.mxu0 0.0
    %1613 = vmatpush1.msra.mxu0 0.0
    %1614 = vmatprep.subr.mxu0 0.0
    %1615 = vmatpush1.msra.mxu0 0.0
    %1616 = vmatprep.subr.mxu0 0.0
    %1617 = vmatpush1.msra.mxu0 0.0
    %1618 = vmatprep.subr.mxu0 0.0
    %1619 = vmatpush1.msra.mxu0 0.0
    %1620 = vmatprep.subr.mxu0 0.0
    %1621 = vmatpush1.msra.mxu0 0.0
    %1622 = vmatprep.subr.mxu0 0.0
    %1623 = vmatpush1.msra.mxu0 0.0
    %1624 = vmatprep.subr.mxu0 0.0
    %1625 = vmatpush1.msra.mxu0 0.0
    %1626 = vmatprep.subr.mxu0 0.0
    %1627 = vmatpush1.msra.mxu0 0.0
    %1628 = vmatprep.subr.mxu0 0.0
    %1629 = vmatpush1.msra.mxu0 0.0
    %1630 = vmatprep.subr.mxu0 0.0
    %1631 = vmatpush1.msra.mxu0 0.0
    %1632 = vmatprep.subr.mxu0 0.0
    %1633 = vmatpush1.msra.mxu0 0.0
    %1634 = vmatprep.subr.mxu0 0.0
    %1635 = vmatpush1.msra.mxu0 0.0
    %1636 = vmatprep.subr.mxu0 0.0
    %1637 = vmatpush1.msra.mxu0 0.0
    %1638 = vmatprep.mubr.f32.mxu0 0.0
    %1639 = vmatmul.mubr.f32.gmra.mrb[0].mxu0 %v1572
    %v1640 = vpop.f32.mrb[0].mxu0
    %v1641 = vadd.f32 %v1566, %v1640
    %v1642 = vpop.f32.mrb[0].mxu0
    %1643 = vdwg.mxu0
    %v1644 = vadd.f32 %v1641, %v283
    %v1645 = vmul.f32 %v1644, 0.5
    %v1646 = vtanh.pop %v1645
    %v1647 = vmul.f32 %v1646, 0.5
    %v1648 = vadd.f32 %v1647, 0.5
    %v1649 = vtanh.pop %v1644
    %v1650 = vmul.f32 %v1648, %v1392
    %1652 = vrot.lane.b32.xlu0 %v1649, 64
    %v1653 = vpop.permute.xlu0 %1652
    %v1655 = vmul.f32 %v1648, %v1653
    %1657 = vrot.lane.b32.xlu0 %v1655, 32
    %v1658 = vpop.permute.xlu0 %1657
    %v1660 = vadd.f32 %v1650, %v1658
    %v1661 = vtanh.pop %v1660
    %1663 = vrot.lane.b32.xlu0 %v1661, 64
    %v1664 = vpop.permute.xlu0 %1663
    %v1666 = vmul.f32 %v1648, %v1664
    %v1669 = vunpack.c.l.s4 1983009808
    %v1670 = vunpack.c.0.s8 %v1669
    %v1671 = vlaneseq
    %v1672 = vshrl.u32 %v1671, 7
    %v1673 = vsub.s32 %v1670, %v1672
    %v1674 = vrot.slane %v1666, %v1673
    %1675 = vrot.lane.b32.xlu0 %v1674, 32
    %v1676 = vpop.permute.xlu0 %1675
    %1678 = vst.msk [vmem:[#allocation2 + $0x2] sm:$0x3] %vm576, %v1676
    %1679 = vmatprep.subr.mxu0 0.0
    %1680 = vmatpush1.msra.mxu0 %v147
    %1681 = vmatprep.subr.mxu0 0.0
    %1682 = vmatpush1.msra.mxu0 %v148
    %1683 = vmatprep.subr.mxu0 0.0
    %1684 = vmatpush1.msra.mxu0 %v149
    %1685 = vmatprep.subr.mxu0 0.0
    %1686 = vmatpush1.msra.mxu0 %v150
    %1687 = vmatprep.subr.mxu0 0.0
    %1688 = vmatpush1.msra.mxu0 0.0
    %1689 = vmatprep.subr.mxu0 0.0
    %1690 = vmatpush1.msra.mxu0 0.0
    %1691 = vmatprep.subr.mxu0 0.0
    %1692 = vmatpush1.msra.mxu0 0.0
    %1693 = vmatprep.subr.mxu0 0.0
    %1694 = vmatpush1.msra.mxu0 0.0
    %1695 = vmatprep.subr.mxu0 0.0
    %1696 = vmatpush1.msra.mxu0 0.0
    %1697 = vmatprep.subr.mxu0 0.0
    %1698 = vmatpush1.msra.mxu0 0.0
    %1699 = vmatprep.subr.mxu0 0.0
    %1700 = vmatpush1.msra.mxu0 0.0
    %1701 = vmatprep.subr.mxu0 0.0
    %1702 = vmatpush1.msra.mxu0 0.0
    %1703 = vmatprep.subr.mxu0 0.0
    %1704 = vmatpush1.msra.mxu0 0.0
    %1705 = vmatprep.subr.mxu0 0.0
    %1706 = vmatpush1.msra.mxu0 0.0
    %1707 = vmatprep.subr.mxu0 0.0
    %1708 = vmatpush1.msra.mxu0 0.0
    %1709 = vmatprep.subr.mxu0 0.0
    %1710 = vmatpush1.msra.mxu0 0.0
    %1711 = vmatprep.subr.mxu0 0.0
    %1712 = vmatpush1.msra.mxu0 0.0
    %1713 = vmatprep.subr.mxu0 0.0
    %1714 = vmatpush1.msra.mxu0 0.0
    %1715 = vmatprep.subr.mxu0 0.0
    %1716 = vmatpush1.msra.mxu0 0.0
    %1717 = vmatprep.subr.mxu0 0.0
    %1718 = vmatpush1.msra.mxu0 0.0
    %1719 = vmatprep.subr.mxu0 0.0
    %1720 = vmatpush1.msra.mxu0 0.0
    %1721 = vmatprep.subr.mxu0 0.0
    %1722 = vmatpush1.msra.mxu0 0.0
    %1723 = vmatprep.subr.mxu0 0.0
    %1724 = vmatpush1.msra.mxu0 0.0
    %1725 = vmatprep.subr.mxu0 0.0
    %1726 = vmatpush1.msra.mxu0 0.0
    %1727 = vmatprep.subr.mxu0 0.0
    %1728 = vmatpush1.msra.mxu0 0.0
    %1729 = vmatprep.subr.mxu0 0.0
    %1730 = vmatpush1.msra.mxu0 0.0
    %1731 = vmatprep.subr.mxu0 0.0
    %1732 = vmatpush1.msra.mxu0 0.0
    %1733 = vmatprep.subr.mxu0 0.0
    %1734 = vmatpush1.msra.mxu0 0.0
    %1735 = vmatprep.subr.mxu0 0.0
    %1736 = vmatpush1.msra.mxu0 0.0
    %1737 = vmatprep.subr.mxu0 0.0
    %1738 = vmatpush1.msra.mxu0 0.0
    %1739 = vmatprep.subr.mxu0 0.0
    %1740 = vmatpush1.msra.mxu0 0.0
    %1741 = vmatprep.subr.mxu0 0.0
    %1742 = vmatpush1.msra.mxu0 0.0
    %1743 = vmatprep.mubr.f32.mxu0 0.0
    %1744 = vmatmul.mubr.f32.gmra.mrb[0].mxu0 %v1572
    %v1745 = vpop.f32.mrb[0].mxu0
    %v1746 = vadd.f32 0.0, %v1745
    %v1747 = vpop.f32.mrb[0].mxu0
    %1748 = vdwg.mxu0
    %v1749 = vadd.f32 %v276, %v1746
    %v1750 = vmul.f32 %v1749, 0.5
    %v1751 = vtanh.pop %v1750
    %v1752 = vmul.f32 %v1751, 0.5
    %v1753 = vadd.f32 %v1752, 0.5
    %v1754 = vtanh.pop %v1749
    %v1755 = vmul.f32 %v1753, %v1487
    %1757 = vrot.lane.b32.xlu0 %v1754, 64
    %v1758 = vpop.permute.xlu0 %1757
    %v1760 = vmul.f32 %v1753, %v1758
    %1762 = vrot.lane.b32.xlu0 %v1760, 32
    %v1763 = vpop.permute.xlu0 %1762
    %v1765 = vadd.f32 %v1755, %v1763
    %v1766 = vtanh.pop %v1765
    %1768 = vrot.lane.b32.xlu0 %v1766, 64
    %v1769 = vpop.permute.xlu0 %1768
    %v1771 = vmul.f32 %v1753, %v1769
    %1772 = vrot.lane.b32.xlu0 %v1666, 32
    %v1773 = vpop.permute.xlu0 %1772
    %v1774 = vsel %vm289, %v1773, 0
    %1776 = vmatprep.subr.mxu0 0.0
    %1777 = vmatpush1.msra.mxu0 %v156
    %1778 = vmatprep.subr.mxu0 0.0
    %1779 = vmatpush1.msra.mxu0 %v157
    %1780 = vmatprep.subr.mxu0 0.0
    %1781 = vmatpush1.msra.mxu0 %v158
    %1782 = vmatprep.subr.mxu0 0.0
    %1783 = vmatpush1.msra.mxu0 %v159
    %1784 = vmatprep.subr.mxu0 0.0
    %1785 = vmatpush1.msra.mxu0 0.0
    %1786 = vmatprep.subr.mxu0 0.0
    %1787 = vmatpush1.msra.mxu0 0.0
    %1788 = vmatprep.subr.mxu0 0.0
    %1789 = vmatpush1.msra.mxu0 0.0
    %1790 = vmatprep.subr.mxu0 0.0
    %1791 = vmatpush1.msra.mxu0 0.0
    %1792 = vmatprep.subr.mxu0 0.0
    %1793 = vmatpush1.msra.mxu0 0.0
    %1794 = vmatprep.subr.mxu0 0.0
    %1795 = vmatpush1.msra.mxu0 0.0
    %1796 = vmatprep.subr.mxu0 0.0
    %1797 = vmatpush1.msra.mxu0 0.0
    %1798 = vmatprep.subr.mxu0 0.0
    %1799 = vmatpush1.msra.mxu0 0.0
    %1800 = vmatprep.subr.mxu0 0.0
    %1801 = vmatpush1.msra.mxu0 0.0
    %1802 = vmatprep.subr.mxu0 0.0
    %1803 = vmatpush1.msra.mxu0 0.0
    %1804 = vmatprep.subr.mxu0 0.0
    %1805 = vmatpush1.msra.mxu0 0.0
    %1806 = vmatprep.subr.mxu0 0.0
    %1807 = vmatpush1.msra.mxu0 0.0
    %1808 = vmatprep.subr.mxu0 0.0
    %1809 = vmatpush1.msra.mxu0 0.0
    %1810 = vmatprep.subr.mxu0 0.0
    %1811 = vmatpush1.msra.mxu0 0.0
    %1812 = vmatprep.subr.mxu0 0.0
    %1813 = vmatpush1.msra.mxu0 0.0
    %1814 = vmatprep.subr.mxu0 0.0
    %1815 = vmatpush1.msra.mxu0 0.0
    %1816 = vmatprep.subr.mxu0 0.0
    %1817 = vmatpush1.msra.mxu0 0.0
    %1818 = vmatprep.subr.mxu0 0.0
    %1819 = vmatpush1.msra.mxu0 0.0
    %1820 = vmatprep.subr.mxu0 0.0
    %1821 = vmatpush1.msra.mxu0 0.0
    %1822 = vmatprep.subr.mxu0 0.0
    %1823 = vmatpush1.msra.mxu0 0.0
    %1824 = vmatprep.subr.mxu0 0.0
    %1825 = vmatpush1.msra.mxu0 0.0
    %1826 = vmatprep.subr.mxu0 0.0
    %1827 = vmatpush1.msra.mxu0 0.0
    %1828 = vmatprep.subr.mxu0 0.0
    %1829 = vmatpush1.msra.mxu0 0.0
    %1830 = vmatprep.subr.mxu0 0.0
    %1831 = vmatpush1.msra.mxu0 0.0
    %1832 = vmatprep.subr.mxu0 0.0
    %1833 = vmatpush1.msra.mxu0 0.0
    %1834 = vmatprep.subr.mxu0 0.0
    %1835 = vmatpush1.msra.mxu0 0.0
    %1836 = vmatprep.subr.mxu0 0.0
    %1837 = vmatpush1.msra.mxu0 0.0
    %1838 = vmatprep.subr.mxu0 0.0
    %1839 = vmatpush1.msra.mxu0 0.0
    %1840 = vmatprep.mubr.f32.mxu0 0.0
    %1841 = vmatmul.mubr.f32.gmra.mrb[0].mxu0 %v1774
    %v1842 = vpop.f32.mrb[0].mxu0
    %v1843 = vadd.f32 0.0, %v1842
    %v1844 = vpop.f32.mrb[0].mxu0
    %1845 = vdwg.mxu0
    %1847 = vrot.lane.b32.xlu0 %v1771, 32
    %v1848 = vpop.permute.xlu0 %1847
    %v1849 = vsel %vm289, %v1848, 0
    %1851 = vmatprep.subr.mxu0 0.0
    %1852 = vmatpush1.msra.mxu0 %v152
    %1853 = vmatprep.subr.mxu0 0.0
    %1854 = vmatpush1.msra.mxu0 %v153
    %1855 = vmatprep.subr.mxu0 0.0
    %1856 = vmatpush1.msra.mxu0 %v154
    %1857 = vmatprep.subr.mxu0 0.0
    %1858 = vmatpush1.msra.mxu0 %v155
    %1859 = vmatprep.subr.mxu0 0.0
    %1860 = vmatpush1.msra.mxu0 0.0
    %1861 = vmatprep.subr.mxu0 0.0
    %1862 = vmatpush1.msra.mxu0 0.0
    %1863 = vmatprep.subr.mxu0 0.0
    %1864 = vmatpush1.msra.mxu0 0.0
    %1865 = vmatprep.subr.mxu0 0.0
    %1866 = vmatpush1.msra.mxu0 0.0
    %1867 = vmatprep.subr.mxu0 0.0
    %1868 = vmatpush1.msra.mxu0 0.0
    %1869 = vmatprep.subr.mxu0 0.0
    %1870 = vmatpush1.msra.mxu0 0.0
    %1871 = vmatprep.subr.mxu0 0.0
    %1872 = vmatpush1.msra.mxu0 0.0
    %1873 = vmatprep.subr.mxu0 0.0
    %1874 = vmatpush1.msra.mxu0 0.0
    %1875 = vmatprep.subr.mxu0 0.0
    %1876 = vmatpush1.msra.mxu0 0.0
    %1877 = vmatprep.subr.mxu0 0.0
    %1878 = vmatpush1.msra.mxu0 0.0
    %1879 = vmatprep.subr.mxu0 0.0
    %1880 = vmatpush1.msra.mxu0 0.0
    %1881 = vmatprep.subr.mxu0 0.0
    %1882 = vmatpush1.msra.mxu0 0.0
    %1883 = vmatprep.subr.mxu0 0.0
    %1884 = vmatpush1.msra.mxu0 0.0
    %1885 = vmatprep.subr.mxu0 0.0
    %1886 = vmatpush1.msra.mxu0 0.0
    %1887 = vmatprep.subr.mxu0 0.0
    %1888 = vmatpush1.msra.mxu0 0.0
    %1889 = vmatprep.subr.mxu0 0.0
    %1890 = vmatpush1.msra.mxu0 0.0
    %1891 = vmatprep.subr.mxu0 0.0
    %1892 = vmatpush1.msra.mxu0 0.0
    %1893 = vmatprep.subr.mxu0 0.0
    %1894 = vmatpush1.msra.mxu0 0.0
    %1895 = vmatprep.subr.mxu0 0.0
    %1896 = vmatpush1.msra.mxu0 0.0
    %1897 = vmatprep.subr.mxu0 0.0
    %1898 = vmatpush1.msra.mxu0 0.0
    %1899 = vmatprep.subr.mxu0 0.0
    %1900 = vmatpush1.msra.mxu0 0.0
    %1901 = vmatprep.subr.mxu0 0.0
    %1902 = vmatpush1.msra.mxu0 0.0
    %1903 = vmatprep.subr.mxu0 0.0
    %1904 = vmatpush1.msra.mxu0 0.0
    %1905 = vmatprep.subr.mxu0 0.0
    %1906 = vmatpush1.msra.mxu0 0.0
    %1907 = vmatprep.subr.mxu0 0.0
    %1908 = vmatpush1.msra.mxu0 0.0
    %1909 = vmatprep.subr.mxu0 0.0
    %1910 = vmatpush1.msra.mxu0 0.0
    %1911 = vmatprep.subr.mxu0 0.0
    %1912 = vmatpush1.msra.mxu0 0.0
    %1913 = vmatprep.subr.mxu0 0.0
    %1914 = vmatpush1.msra.mxu0 0.0
    %1915 = vmatprep.mubr.f32.mxu0 0.0
    %1916 = vmatmul.mubr.f32.gmra.mrb[0].mxu0 %v1849
    %v1917 = vpop.f32.mrb[0].mxu0
    %v1918 = vadd.f32 %v1843, %v1917
    %v1919 = vpop.f32.mrb[0].mxu0
    %1920 = vdwg.mxu0
    %v1921 = vadd.f32 %v1918, %v283
    %v1922 = vmul.f32 %v1921, 0.5
    %v1923 = vtanh.pop %v1922
    %v1924 = vmul.f32 %v1923, 0.5
    %v1925 = vadd.f32 %v1924, 0.5
    %v1926 = vtanh.pop %v1921
    %v1927 = vmul.f32 %v1925, %v1660
    %1929 = vrot.lane.b32.xlu0 %v1926, 64
    %v1930 = vpop.permute.xlu0 %1929
    %v1932 = vmul.f32 %v1925, %v1930
    %1934 = vrot.lane.b32.xlu0 %v1932, 32
    %v1935 = vpop.permute.xlu0 %1934
    %v1937 = vadd.f32 %v1927, %v1935
    %v1938 = vtanh.pop %v1937
    %1940 = vrot.lane.b32.xlu0 %v1938, 64
    %v1941 = vpop.permute.xlu0 %1940
    %v1943 = vmul.f32 %v1925, %v1941
    %v1946 = vunpack.c.l.s4 1983009808
    %v1947 = vunpack.c.0.s8 %v1946
    %v1948 = vlaneseq
    %v1949 = vshrl.u32 %v1948, 7
    %v1950 = vsub.s32 %v1947, %v1949
    %v1951 = vrot.slane %v1943, %v1950
    %1952 = vrot.lane.b32.xlu0 %v1951, 64
    %v1953 = vpop.permute.xlu0 %1952
    %1955 = vst.msk [vmem:[#allocation2 + $0x2] sm:$0x3] %vm854, %v1953
    %1956 = vmatprep.subr.mxu0 0.0
    %1957 = vmatpush1.msra.mxu0 %v147
    %1958 = vmatprep.subr.mxu0 0.0
    %1959 = vmatpush1.msra.mxu0 %v148
    %1960 = vmatprep.subr.mxu0 0.0
    %1961 = vmatpush1.msra.mxu0 %v149
    %1962 = vmatprep.subr.mxu0 0.0
    %1963 = vmatpush1.msra.mxu0 %v150
    %1964 = vmatprep.subr.mxu0 0.0
    %1965 = vmatpush1.msra.mxu0 0.0
    %1966 = vmatprep.subr.mxu0 0.0
    %1967 = vmatpush1.msra.mxu0 0.0
    %1968 = vmatprep.subr.mxu0 0.0
    %1969 = vmatpush1.msra.mxu0 0.0
    %1970 = vmatprep.subr.mxu0 0.0
    %1971 = vmatpush1.msra.mxu0 0.0
    %1972 = vmatprep.subr.mxu0 0.0
    %1973 = vmatpush1.msra.mxu0 0.0
    %1974 = vmatprep.subr.mxu0 0.0
    %1975 = vmatpush1.msra.mxu0 0.0
    %1976 = vmatprep.subr.mxu0 0.0
    %1977 = vmatpush1.msra.mxu0 0.0
    %1978 = vmatprep.subr.mxu0 0.0
    %1979 = vmatpush1.msra.mxu0 0.0
    %1980 = vmatprep.subr.mxu0 0.0
    %1981 = vmatpush1.msra.mxu0 0.0
    %1982 = vmatprep.subr.mxu0 0.0
    %1983 = vmatpush1.msra.mxu0 0.0
    %1984 = vmatprep.subr.mxu0 0.0
    %1985 = vmatpush1.msra.mxu0 0.0
    %1986 = vmatprep.subr.mxu0 0.0
    %1987 = vmatpush1.msra.mxu0 0.0
    %1988 = vmatprep.subr.mxu0 0.0
    %1989 = vmatpush1.msra.mxu0 0.0
    %1990 = vmatprep.subr.mxu0 0.0
    %1991 = vmatpush1.msra.mxu0 0.0
    %1992 = vmatprep.subr.mxu0 0.0
    %1993 = vmatpush1.msra.mxu0 0.0
    %1994 = vmatprep.subr.mxu0 0.0
    %1995 = vmatpush1.msra.mxu0 0.0
    %1996 = vmatprep.subr.mxu0 0.0
    %1997 = vmatpush1.msra.mxu0 0.0
    %1998 = vmatprep.subr.mxu0 0.0
    %1999 = vmatpush1.msra.mxu0 0.0
    %2000 = vmatprep.subr.mxu0 0.0
    %2001 = vmatpush1.msra.mxu0 0.0
    %2002 = vmatprep.subr.mxu0 0.0
    %2003 = vmatpush1.msra.mxu0 0.0
    %2004 = vmatprep.subr.mxu0 0.0
    %2005 = vmatpush1.msra.mxu0 0.0
    %2006 = vmatprep.subr.mxu0 0.0
    %2007 = vmatpush1.msra.mxu0 0.0
    %2008 = vmatprep.subr.mxu0 0.0
    %2009 = vmatpush1.msra.mxu0 0.0
    %2010 = vmatprep.subr.mxu0 0.0
    %2011 = vmatpush1.msra.mxu0 0.0
    %2012 = vmatprep.subr.mxu0 0.0
    %2013 = vmatpush1.msra.mxu0 0.0
    %2014 = vmatprep.subr.mxu0 0.0
    %2015 = vmatpush1.msra.mxu0 0.0
    %2016 = vmatprep.subr.mxu0 0.0
    %2017 = vmatpush1.msra.mxu0 0.0
    %2018 = vmatprep.subr.mxu0 0.0
    %2019 = vmatpush1.msra.mxu0 0.0
    %2020 = vmatprep.mubr.f32.mxu0 0.0
    %2021 = vmatmul.mubr.f32.gmra.mrb[0].mxu0 %v1849
    %v2022 = vpop.f32.mrb[0].mxu0
    %v2023 = vadd.f32 0.0, %v2022
    %v2024 = vpop.f32.mrb[0].mxu0
    %2025 = vdwg.mxu0
    %v2026 = vadd.f32 %v276, %v2023
    %v2027 = vmul.f32 %v2026, 0.5
    %v2028 = vtanh.pop %v2027
    %v2029 = vmul.f32 %v2028, 0.5
    %v2030 = vadd.f32 %v2029, 0.5
    %v2031 = vtanh.pop %v2026
    %v2032 = vmul.f32 %v2030, %v1765
    %2034 = vrot.lane.b32.xlu0 %v2031, 64
    %v2035 = vpop.permute.xlu0 %2034
    %v2037 = vmul.f32 %v2030, %v2035
    %2039 = vrot.lane.b32.xlu0 %v2037, 32
    %v2040 = vpop.permute.xlu0 %2039
    %v2042 = vadd.f32 %v2032, %v2040
    %v2043 = vtanh.pop %v2042
    %2045 = vrot.lane.b32.xlu0 %v2043, 64
    %v2046 = vpop.permute.xlu0 %2045
    %v2048 = vmul.f32 %v2030, %v2046
    %2049 = vrot.lane.b32.xlu0 %v1943, 32
    %v2050 = vpop.permute.xlu0 %2049
    %v2051 = vsel %vm289, %v2050, 0
    %2053 = vmatprep.subr.mxu0 0.0
    %2054 = vmatpush1.msra.mxu0 %v156
    %2055 = vmatprep.subr.mxu0 0.0
    %2056 = vmatpush1.msra.mxu0 %v157
    %2057 = vmatprep.subr.mxu0 0.0
    %2058 = vmatpush1.msra.mxu0 %v158
    %2059 = vmatprep.subr.mxu0 0.0
    %2060 = vmatpush1.msra.mxu0 %v159
    %2061 = vmatprep.subr.mxu0 0.0
    %2062 = vmatpush1.msra.mxu0 0.0
    %2063 = vmatprep.subr.mxu0 0.0
    %2064 = vmatpush1.msra.mxu0 0.0
    %2065 = vmatprep.subr.mxu0 0.0
    %2066 = vmatpush1.msra.mxu0 0.0
    %2067 = vmatprep.subr.mxu0 0.0
    %2068 = vmatpush1.msra.mxu0 0.0
    %2069 = vmatprep.subr.mxu0 0.0
    %2070 = vmatpush1.msra.mxu0 0.0
    %2071 = vmatprep.subr.mxu0 0.0
    %2072 = vmatpush1.msra.mxu0 0.0
    %2073 = vmatprep.subr.mxu0 0.0
    %2074 = vmatpush1.msra.mxu0 0.0
    %2075 = vmatprep.subr.mxu0 0.0
    %2076 = vmatpush1.msra.mxu0 0.0
    %2077 = vmatprep.subr.mxu0 0.0
    %2078 = vmatpush1.msra.mxu0 0.0
    %2079 = vmatprep.subr.mxu0 0.0
    %2080 = vmatpush1.msra.mxu0 0.0
    %2081 = vmatprep.subr.mxu0 0.0
    %2082 = vmatpush1.msra.mxu0 0.0
    %2083 = vmatprep.subr.mxu0 0.0
    %2084 = vmatpush1.msra.mxu0 0.0
    %2085 = vmatprep.subr.mxu0 0.0
    %2086 = vmatpush1.msra.mxu0 0.0
    %2087 = vmatprep.subr.mxu0 0.0
    %2088 = vmatpush1.msra.mxu0 0.0
    %2089 = vmatprep.subr.mxu0 0.0
    %2090 = vmatpush1.msra.mxu0 0.0
    %2091 = vmatprep.subr.mxu0 0.0
    %2092 = vmatpush1.msra.mxu0 0.0
    %2093 = vmatprep.subr.mxu0 0.0
    %2094 = vmatpush1.msra.mxu0 0.0
    %2095 = vmatprep.subr.mxu0 0.0
    %2096 = vmatpush1.msra.mxu0 0.0
    %2097 = vmatprep.subr.mxu0 0.0
    %2098 = vmatpush1.msra.mxu0 0.0
    %2099 = vmatprep.subr.mxu0 0.0
    %2100 = vmatpush1.msra.mxu0 0.0
    %2101 = vmatprep.subr.mxu0 0.0
    %2102 = vmatpush1.msra.mxu0 0.0
    %2103 = vmatprep.subr.mxu0 0.0
    %2104 = vmatpush1.msra.mxu0 0.0
    %2105 = vmatprep.subr.mxu0 0.0
    %2106 = vmatpush1.msra.mxu0 0.0
    %2107 = vmatprep.subr.mxu0 0.0
    %2108 = vmatpush1.msra.mxu0 0.0
    %2109 = vmatprep.subr.mxu0 0.0
    %2110 = vmatpush1.msra.mxu0 0.0
    %2111 = vmatprep.subr.mxu0 0.0
    %2112 = vmatpush1.msra.mxu0 0.0
    %2113 = vmatprep.subr.mxu0 0.0
    %2114 = vmatpush1.msra.mxu0 0.0
    %2115 = vmatprep.subr.mxu0 0.0
    %2116 = vmatpush1.msra.mxu0 0.0
    %2117 = vmatprep.mubr.f32.mxu0 0.0
    %2118 = vmatmul.mubr.f32.gmra.mrb[0].mxu0 %v2051
    %v2119 = vpop.f32.mrb[0].mxu0
    %v2120 = vadd.f32 0.0, %v2119
    %v2121 = vpop.f32.mrb[0].mxu0
    %2122 = vdwg.mxu0
    %2124 = vrot.lane.b32.xlu0 %v2048, 32
    %v2125 = vpop.permute.xlu0 %2124
    %v2126 = vsel %vm289, %v2125, 0
    %2128 = vmatprep.subr.mxu0 0.0
    %2129 = vmatpush1.msra.mxu0 %v152
    %2130 = vmatprep.subr.mxu0 0.0
    %2131 = vmatpush1.msra.mxu0 %v153
    %2132 = vmatprep.subr.mxu0 0.0
    %2133 = vmatpush1.msra.mxu0 %v154
    %2134 = vmatprep.subr.mxu0 0.0
    %2135 = vmatpush1.msra.mxu0 %v155
    %2136 = vmatprep.subr.mxu0 0.0
    %2137 = vmatpush1.msra.mxu0 0.0
    %2138 = vmatprep.subr.mxu0 0.0
    %2139 = vmatpush1.msra.mxu0 0.0
    %2140 = vmatprep.subr.mxu0 0.0
    %2141 = vmatpush1.msra.mxu0 0.0
    %2142 = vmatprep.subr.mxu0 0.0
    %2143 = vmatpush1.msra.mxu0 0.0
    %2144 = vmatprep.subr.mxu0 0.0
    %2145 = vmatpush1.msra.mxu0 0.0
    %2146 = vmatprep.subr.mxu0 0.0
    %2147 = vmatpush1.msra.mxu0 0.0
    %2148 = vmatprep.subr.mxu0 0.0
    %2149 = vmatpush1.msra.mxu0 0.0
    %2150 = vmatprep.subr.mxu0 0.0
    %2151 = vmatpush1.msra.mxu0 0.0
    %2152 = vmatprep.subr.mxu0 0.0
    %2153 = vmatpush1.msra.mxu0 0.0
    %2154 = vmatprep.subr.mxu0 0.0
    %2155 = vmatpush1.msra.mxu0 0.0
    %2156 = vmatprep.subr.mxu0 0.0
    %2157 = vmatpush1.msra.mxu0 0.0
    %2158 = vmatprep.subr.mxu0 0.0
    %2159 = vmatpush1.msra.mxu0 0.0
    %2160 = vmatprep.subr.mxu0 0.0
    %2161 = vmatpush1.msra.mxu0 0.0
    %2162 = vmatprep.subr.mxu0 0.0
    %2163 = vmatpush1.msra.mxu0 0.0
    %2164 = vmatprep.subr.mxu0 0.0
    %2165 = vmatpush1.msra.mxu0 0.0
    %2166 = vmatprep.subr.mxu0 0.0
    %2167 = vmatpush1.msra.mxu0 0.0
    %2168 = vmatprep.subr.mxu0 0.0
    %2169 = vmatpush1.msra.mxu0 0.0
    %2170 = vmatprep.subr.mxu0 0.0
    %2171 = vmatpush1.msra.mxu0 0.0
    %2172 = vmatprep.subr.mxu0 0.0
    %2173 = vmatpush1.msra.mxu0 0.0
    %2174 = vmatprep.subr.mxu0 0.0
    %2175 = vmatpush1.msra.mxu0 0.0
    %2176 = vmatprep.subr.mxu0 0.0
    %2177 = vmatpush1.msra.mxu0 0.0
    %2178 = vmatprep.subr.mxu0 0.0
    %2179 = vmatpush1.msra.mxu0 0.0
    %2180 = vmatprep.subr.mxu0 0.0
    %2181 = vmatpush1.msra.mxu0 0.0
    %2182 = vmatprep.subr.mxu0 0.0
    %2183 = vmatpush1.msra.mxu0 0.0
    %2184 = vmatprep.subr.mxu0 0.0
    %2185 = vmatpush1.msra.mxu0 0.0
    %2186 = vmatprep.subr.mxu0 0.0
    %2187 = vmatpush1.msra.mxu0 0.0
    %2188 = vmatprep.subr.mxu0 0.0
    %2189 = vmatpush1.msra.mxu0 0.0
    %2190 = vmatprep.subr.mxu0 0.0
    %2191 = vmatpush1.msra.mxu0 0.0
    %2192 = vmatprep.mubr.f32.mxu0 0.0
    %2193 = vmatmul.mubr.f32.gmra.mrb[0].mxu0 %v2126
    %v2194 = vpop.f32.mrb[0].mxu0
    %v2195 = vadd.f32 %v2120, %v2194
    %v2196 = vpop.f32.mrb[0].mxu0
    %2197 = vdwg.mxu0
    %v2198 = vadd.f32 %v2195, %v283
    %v2199 = vmul.f32 %v2198, 0.5
    %v2200 = vtanh.pop %v2199
    %v2201 = vmul.f32 %v2200, 0.5
    %v2202 = vadd.f32 %v2201, 0.5
    %v2203 = vtanh.pop %v2198
    %v2204 = vmul.f32 %v2202, %v1937
    %2206 = vrot.lane.b32.xlu0 %v2203, 64
    %v2207 = vpop.permute.xlu0 %2206
    %v2209 = vmul.f32 %v2202, %v2207
    %2211 = vrot.lane.b32.xlu0 %v2209, 32
    %v2212 = vpop.permute.xlu0 %2211
    %v2214 = vadd.f32 %v2204, %v2212
    %v2215 = vtanh.pop %v2214
    %2217 = vrot.lane.b32.xlu0 %v2215, 64
    %v2218 = vpop.permute.xlu0 %2217
    %v2220 = vmul.f32 %v2202, %v2218
    %v2223 = vunpack.c.l.s4 1983009808
    %v2224 = vunpack.c.0.s8 %v2223
    %v2225 = vlaneseq
    %v2226 = vshrl.u32 %v2225, 7
    %v2227 = vsub.s32 %v2224, %v2226
    %v2228 = vrot.slane %v2220, %v2227
    %2229 = vrot.lane.b32.xlu0 %v2228, 96
    %v2230 = vpop.permute.xlu0 %2229
    %2232 = vst.msk [vmem:[#allocation2 + $0x2] sm:$0x3] %vm1132, %v2230
    %2233 = vmatprep.subr.mxu0 0.0
    %2234 = vmatpush1.msra.mxu0 %v147
    %2235 = vmatprep.subr.mxu0 0.0
    %2236 = vmatpush1.msra.mxu0 %v148
    %2237 = vmatprep.subr.mxu0 0.0
    %2238 = vmatpush1.msra.mxu0 %v149
    %2239 = vmatprep.subr.mxu0 0.0
    %2240 = vmatpush1.msra.mxu0 %v150
    %2241 = vmatprep.subr.mxu0 0.0
    %2242 = vmatpush1.msra.mxu0 0.0
    %2243 = vmatprep.subr.mxu0 0.0
    %2244 = vmatpush1.msra.mxu0 0.0
    %2245 = vmatprep.subr.mxu0 0.0
    %2246 = vmatpush1.msra.mxu0 0.0
    %2247 = vmatprep.subr.mxu0 0.0
    %2248 = vmatpush1.msra.mxu0 0.0
    %2249 = vmatprep.subr.mxu0 0.0
    %2250 = vmatpush1.msra.mxu0 0.0
    %2251 = vmatprep.subr.mxu0 0.0
    %2252 = vmatpush1.msra.mxu0 0.0
    %2253 = vmatprep.subr.mxu0 0.0
    %2254 = vmatpush1.msra.mxu0 0.0
    %2255 = vmatprep.subr.mxu0 0.0
    %2256 = vmatpush1.msra.mxu0 0.0
    %2257 = vmatprep.subr.mxu0 0.0
    %2258 = vmatpush1.msra.mxu0 0.0
    %2259 = vmatprep.subr.mxu0 0.0
    %2260 = vmatpush1.msra.mxu0 0.0
    %2261 = vmatprep.subr.mxu0 0.0
    %2262 = vmatpush1.msra.mxu0 0.0
    %2263 = vmatprep.subr.mxu0 0.0
    %2264 = vmatpush1.msra.mxu0 0.0
    %2265 = vmatprep.subr.mxu0 0.0
    %2266 = vmatpush1.msra.mxu0 0.0
    %2267 = vmatprep.subr.mxu0 0.0
    %2268 = vmatpush1.msra.mxu0 0.0
    %2269 = vmatprep.subr.mxu0 0.0
    %2270 = vmatpush1.msra.mxu0 0.0
    %2271 = vmatprep.subr.mxu0 0.0
    %2272 = vmatpush1.msra.mxu0 0.0
    %2273 = vmatprep.subr.mxu0 0.0
    %2274 = vmatpush1.msra.mxu0 0.0
    %2275 = vmatprep.subr.mxu0 0.0
    %2276 = vmatpush1.msra.mxu0 0.0
    %2277 = vmatprep.subr.mxu0 0.0
    %2278 = vmatpush1.msra.mxu0 0.0
    %2279 = vmatprep.subr.mxu0 0.0
    %2280 = vmatpush1.msra.mxu0 0.0
    %2281 = vmatprep.subr.mxu0 0.0
    %2282 = vmatpush1.msra.mxu0 0.0
    %2283 = vmatprep.subr.mxu0 0.0
    %2284 = vmatpush1.msra.mxu0 0.0
    %2285 = vmatprep.subr.mxu0 0.0
    %2286 = vmatpush1.msra.mxu0 0.0
    %2287 = vmatprep.subr.mxu0 0.0
    %2288 = vmatpush1.msra.mxu0 0.0
    %2289 = vmatprep.subr.mxu0 0.0
    %2290 = vmatpush1.msra.mxu0 0.0
    %2291 = vmatprep.subr.mxu0 0.0
    %2292 = vmatpush1.msra.mxu0 0.0
    %2293 = vmatprep.subr.mxu0 0.0
    %2294 = vmatpush1.msra.mxu0 0.0
    %2295 = vmatprep.subr.mxu0 0.0
    %2296 = vmatpush1.msra.mxu0 0.0
    %2297 = vmatprep.mubr.f32.mxu0 0.0
    %2298 = vmatmul.mubr.f32.gmra.mrb[0].mxu0 %v2126
    %v2299 = vpop.f32.mrb[0].mxu0
    %v2300 = vadd.f32 0.0, %v2299
    %v2301 = vpop.f32.mrb[0].mxu0
    %2302 = vdwg.mxu0
    %v2303 = vadd.f32 %v276, %v2300
    %v2304 = vmul.f32 %v2303, 0.5
    %v2305 = vtanh.pop %v2304
    %v2306 = vmul.f32 %v2305, 0.5
    %v2307 = vadd.f32 %v2306, 0.5
    %v2308 = vtanh.pop %v2303
    %v2309 = vmul.f32 %v2307, %v2042
    %2311 = vrot.lane.b32.xlu0 %v2308, 64
    %v2312 = vpop.permute.xlu0 %2311
    %v2314 = vmul.f32 %v2307, %v2312
    %2316 = vrot.lane.b32.xlu0 %v2314, 32
    %v2317 = vpop.permute.xlu0 %2316
    %v2319 = vadd.f32 %v2309, %v2317
    %v2320 = vtanh.pop %v2319
    %2322 = vrot.lane.b32.xlu0 %v2320, 64
    %v2323 = vpop.permute.xlu0 %2322
    %v2325 = vmul.f32 %v2307, %v2323
    %2326 = vrot.lane.b32.xlu0 %v2220, 32
    %v2327 = vpop.permute.xlu0 %2326
    %v2328 = vsel %vm289, %v2327, 0
    %2330 = vmatprep.subr.mxu0 0.0
    %2331 = vmatpush1.msra.mxu0 %v156
    %2332 = vmatprep.subr.mxu0 0.0
    %2333 = vmatpush1.msra.mxu0 %v157
    %2334 = vmatprep.subr.mxu0 0.0
    %2335 = vmatpush1.msra.mxu0 %v158
    %2336 = vmatprep.subr.mxu0 0.0
    %2337 = vmatpush1.msra.mxu0 %v159
    %2338 = vmatprep.subr.mxu0 0.0
    %2339 = vmatpush1.msra.mxu0 0.0
    %2340 = vmatprep.subr.mxu0 0.0
    %2341 = vmatpush1.msra.mxu0 0.0
    %2342 = vmatprep.subr.mxu0 0.0
    %2343 = vmatpush1.msra.mxu0 0.0
    %2344 = vmatprep.subr.mxu0 0.0
    %2345 = vmatpush1.msra.mxu0 0.0
    %2346 = vmatprep.subr.mxu0 0.0
    %2347 = vmatpush1.msra.mxu0 0.0
    %2348 = vmatprep.subr.mxu0 0.0
    %2349 = vmatpush1.msra.mxu0 0.0
    %2350 = vmatprep.subr.mxu0 0.0
    %2351 = vmatpush1.msra.mxu0 0.0
    %2352 = vmatprep.subr.mxu0 0.0
    %2353 = vmatpush1.msra.mxu0 0.0
    %2354 = vmatprep.subr.mxu0 0.0
    %2355 = vmatpush1.msra.mxu0 0.0
    %2356 = vmatprep.subr.mxu0 0.0
    %2357 = vmatpush1.msra.mxu0 0.0
    %2358 = vmatprep.subr.mxu0 0.0
    %2359 = vmatpush1.msra.mxu0 0.0
    %2360 = vmatprep.subr.mxu0 0.0
    %2361 = vmatpush1.msra.mxu0 0.0
    %2362 = vmatprep.subr.mxu0 0.0
    %2363 = vmatpush1.msra.mxu0 0.0
    %2364 = vmatprep.subr.mxu0 0.0
    %2365 = vmatpush1.msra.mxu0 0.0
    %2366 = vmatprep.subr.mxu0 0.0
    %2367 = vmatpush1.msra.mxu0 0.0
    %2368 = vmatprep.subr.mxu0 0.0
    %2369 = vmatpush1.msra.mxu0 0.0
    %2370 = vmatprep.subr.mxu0 0.0
    %2371 = vmatpush1.msra.mxu0 0.0
    %2372 = vmatprep.subr.mxu0 0.0
    %2373 = vmatpush1.msra.mxu0 0.0
    %2374 = vmatprep.subr.mxu0 0.0
    %2375 = vmatpush1.msra.mxu0 0.0
    %2376 = vmatprep.subr.mxu0 0.0
    %2377 = vmatpush1.msra.mxu0 0.0
    %2378 = vmatprep.subr.mxu0 0.0
    %2379 = vmatpush1.msra.mxu0 0.0
    %2380 = vmatprep.subr.mxu0 0.0
    %2381 = vmatpush1.msra.mxu0 0.0
    %2382 = vmatprep.subr.mxu0 0.0
    %2383 = vmatpush1.msra.mxu0 0.0
    %2384 = vmatprep.subr.mxu0 0.0
    %2385 = vmatpush1.msra.mxu0 0.0
    %2386 = vmatprep.subr.mxu0 0.0
    %2387 = vmatpush1.msra.mxu0 0.0
    %2388 = vmatprep.subr.mxu0 0.0
    %2389 = vmatpush1.msra.mxu0 0.0
    %2390 = vmatprep.subr.mxu0 0.0
    %2391 = vmatpush1.msra.mxu0 0.0
    %2392 = vmatprep.subr.mxu0 0.0
    %2393 = vmatpush1.msra.mxu0 0.0
    %2394 = vmatprep.mubr.f32.mxu0 0.0
    %2395 = vmatmul.mubr.f32.gmra.mrb[0].mxu0 %v2328
    %v2396 = vpop.f32.mrb[0].mxu0
    %v2397 = vadd.f32 0.0, %v2396
    %v2398 = vpop.f32.mrb[0].mxu0
    %2399 = vdwg.mxu0
    %2401 = vrot.lane.b32.xlu0 %v2325, 32
    %v2402 = vpop.permute.xlu0 %2401
    %v2403 = vsel %vm289, %v2402, 0
    %2405 = vmatprep.subr.mxu0 0.0
    %2406 = vmatpush1.msra.mxu0 %v152
    %2407 = vmatprep.subr.mxu0 0.0
    %2408 = vmatpush1.msra.mxu0 %v153
    %2409 = vmatprep.subr.mxu0 0.0
    %2410 = vmatpush1.msra.mxu0 %v154
    %2411 = vmatprep.subr.mxu0 0.0
    %2412 = vmatpush1.msra.mxu0 %v155
    %2413 = vmatprep.subr.mxu0 0.0
    %2414 = vmatpush1.msra.mxu0 0.0
    %2415 = vmatprep.subr.mxu0 0.0
    %2416 = vmatpush1.msra.mxu0 0.0
    %2417 = vmatprep.subr.mxu0 0.0
    %2418 = vmatpush1.msra.mxu0 0.0
    %2419 = vmatprep.subr.mxu0 0.0
    %2420 = vmatpush1.msra.mxu0 0.0
    %2421 = vmatprep.subr.mxu0 0.0
    %2422 = vmatpush1.msra.mxu0 0.0
    %2423 = vmatprep.subr.mxu0 0.0
    %2424 = vmatpush1.msra.mxu0 0.0
    %2425 = vmatprep.subr.mxu0 0.0
    %2426 = vmatpush1.msra.mxu0 0.0
    %2427 = vmatprep.subr.mxu0 0.0
    %2428 = vmatpush1.msra.mxu0 0.0
    %2429 = vmatprep.subr.mxu0 0.0
    %2430 = vmatpush1.msra.mxu0 0.0
    %2431 = vmatprep.subr.mxu0 0.0
    %2432 = vmatpush1.msra.mxu0 0.0
    %2433 = vmatprep.subr.mxu0 0.0
    %2434 = vmatpush1.msra.mxu0 0.0
    %2435 = vmatprep.subr.mxu0 0.0
    %2436 = vmatpush1.msra.mxu0 0.0
    %2437 = vmatprep.subr.mxu0 0.0
    %2438 = vmatpush1.msra.mxu0 0.0
    %2439 = vmatprep.subr.mxu0 0.0
    %2440 = vmatpush1.msra.mxu0 0.0
    %2441 = vmatprep.subr.mxu0 0.0
    %2442 = vmatpush1.msra.mxu0 0.0
    %2443 = vmatprep.subr.mxu0 0.0
    %2444 = vmatpush1.msra.mxu0 0.0
    %2445 = vmatprep.subr.mxu0 0.0
    %2446 = vmatpush1.msra.mxu0 0.0
    %2447 = vmatprep.subr.mxu0 0.0
    %2448 = vmatpush1.msra.mxu0 0.0
    %2449 = vmatprep.subr.mxu0 0.0
    %2450 = vmatpush1.msra.mxu0 0.0
    %2451 = vmatprep.subr.mxu0 0.0
    %2452 = vmatpush1.msra.mxu0 0.0
    %2453 = vmatprep.subr.mxu0 0.0
    %2454 = vmatpush1.msra.mxu0 0.0
    %2455 = vmatprep.subr.mxu0 0.0
    %2456 = vmatpush1.msra.mxu0 0.0
    %2457 = vmatprep.subr.mxu0 0.0
    %2458 = vmatpush1.msra.mxu0 0.0
    %2459 = vmatprep.subr.mxu0 0.0
    %2460 = vmatpush1.msra.mxu0 0.0
    %2461 = vmatprep.subr.mxu0 0.0
    %2462 = vmatpush1.msra.mxu0 0.0
    %2463 = vmatprep.subr.mxu0 0.0
    %2464 = vmatpush1.msra.mxu0 0.0
    %2465 = vmatprep.subr.mxu0 0.0
    %2466 = vmatpush1.msra.mxu0 0.0
    %2467 = vmatprep.subr.mxu0 0.0
    %2468 = vmatpush1.msra.mxu0 0.0
    %2469 = vmatprep.mubr.f32.mxu0 0.0
    %2470 = vmatmul.mubr.f32.gmra.mrb[0].mxu0 %v2403
    %v2471 = vpop.f32.mrb[0].mxu0
    %v2472 = vadd.f32 %v2397, %v2471
    %v2473 = vpop.f32.mrb[0].mxu0
    %2474 = vdwg.mxu0
    %v2475 = vadd.f32 %v2472, %v283
    %v2476 = vmul.f32 %v2475, 0.5
    %v2477 = vtanh.pop %v2476
    %v2478 = vmul.f32 %v2477, 0.5
    %v2479 = vadd.f32 %v2478, 0.5
    %v2480 = vtanh.pop %v2475
    %v2481 = vmul.f32 %v2479, %v2214
    %2483 = vrot.lane.b32.xlu0 %v2480, 64
    %v2484 = vpop.permute.xlu0 %2483
    %v2486 = vmul.f32 %v2479, %v2484
    %2488 = vrot.lane.b32.xlu0 %v2486, 32
    %v2489 = vpop.permute.xlu0 %2488
    %v2491 = vadd.f32 %v2481, %v2489
    %v2492 = vtanh.pop %v2491
    %2494 = vrot.lane.b32.xlu0 %v2492, 64
    %v2495 = vpop.permute.xlu0 %2494
    %v2497 = vmul.f32 %v2479, %v2495
    %2498 = vst.msk [vmem:[#allocation2 + $0x2] sm:$0x3] %vm1399, %v2497
    %v2499 = vld [vmem:[#allocation2] sm:$0xf]
    %v2501 = vlaneseq
    %v2502 = vshrl.u32 %v2501, 7
    %v2503 = vsub.s32 0, %v2502
    %v2504 = vrot.slane %v193, %v2503
    %v2508 = vunpack.c.l.s4 1983009808
    %v2509 = vunpack.c.0.s8 %v2508
    %v2510 = vlaneseq
    %v2511 = vshrl.u32 %v2510, 7
    %v2512 = vsub.s32 %v2509, %v2511
    %v2513 = vrot.slane %v2499, %v2512
    %v2514 = vcombine.high %v2513, %v2513
    %2517 = vmatprep.subr.mxu0 0.0
    %2518 = vmatpush1.msra.mxu0 %v161
    %2519 = vmatprep.subr.mxu0 0.0
    %2520 = vmatpush1.msra.mxu0 %v162
    %2521 = vmatprep.subr.mxu0 0.0
    %2522 = vmatpush1.msra.mxu0 %v163
    %2523 = vmatprep.subr.mxu0 0.0
    %2524 = vmatpush1.msra.mxu0 %v164
    %2525 = vmatprep.subr.mxu0 0.0
    %2526 = vmatpush1.msra.mxu0 %v165
    %2527 = vmatprep.subr.mxu0 0.0
    %2528 = vmatpush1.msra.mxu0 %v166
    %2529 = vmatprep.subr.mxu0 0.0
    %2530 = vmatpush1.msra.mxu0 %v167
    %2531 = vmatprep.subr.mxu0 0.0
    %2532 = vmatpush1.msra.mxu0 %v168
    %2533 = vmatprep.subr.mxu0 0.0
    %2534 = vmatpush1.msra.mxu0 %v169
    %2535 = vmatprep.subr.mxu0 0.0
    %2536 = vmatpush1.msra.mxu0 %v170
    %2537 = vmatprep.subr.mxu0 0.0
    %2538 = vmatpush1.msra.mxu0 %v171
    %2539 = vmatprep.subr.mxu0 0.0
    %2540 = vmatpush1.msra.mxu0 %v172
    %2541 = vmatprep.subr.mxu0 0.0
    %2542 = vmatpush1.msra.mxu0 %v173
    %2543 = vmatprep.subr.mxu0 0.0
    %2544 = vmatpush1.msra.mxu0 %v174
    %2545 = vmatprep.subr.mxu0 0.0
    %2546 = vmatpush1.msra.mxu0 %v175
    %2547 = vmatprep.subr.mxu0 0.0
    %2548 = vmatpush1.msra.mxu0 %v176
    %2549 = vmatprep.subr.mxu0 0.0
    %2550 = vmatpush1.msra.mxu0 %v177
    %2551 = vmatprep.subr.mxu0 0.0
    %2552 = vmatpush1.msra.mxu0 %v178
    %2553 = vmatprep.subr.mxu0 0.0
    %2554 = vmatpush1.msra.mxu0 %v179
    %2555 = vmatprep.subr.mxu0 0.0
    %2556 = vmatpush1.msra.mxu0 %v180
    %2557 = vmatprep.subr.mxu0 0.0
    %2558 = vmatpush1.msra.mxu0 %v181
    %2559 = vmatprep.subr.mxu0 0.0
    %2560 = vmatpush1.msra.mxu0 %v182
    %2561 = vmatprep.subr.mxu0 0.0
    %2562 = vmatpush1.msra.mxu0 %v183
    %2563 = vmatprep.subr.mxu0 0.0
    %2564 = vmatpush1.msra.mxu0 %v184
    %2565 = vmatprep.subr.mxu0 0.0
    %2566 = vmatpush1.msra.mxu0 %v185
    %2567 = vmatprep.subr.mxu0 0.0
    %2568 = vmatpush1.msra.mxu0 %v186
    %2569 = vmatprep.subr.mxu0 0.0
    %2570 = vmatpush1.msra.mxu0 %v187
    %2571 = vmatprep.subr.mxu0 0.0
    %2572 = vmatpush1.msra.mxu0 %v188
    %2573 = vmatprep.subr.mxu0 0.0
    %2574 = vmatpush1.msra.mxu0 %v189
    %2575 = vmatprep.subr.mxu0 0.0
    %2576 = vmatpush1.msra.mxu0 %v190
    %2577 = vmatprep.subr.mxu0 0.0
    %2578 = vmatpush1.msra.mxu0 %v191
    %2579 = vmatprep.subr.mxu0 0.0
    %2580 = vmatpush1.msra.mxu0 %v192
    %2581 = vmatprep.mubr.f32.mxu0 %v2514
    %2582 = vmatmul.mubr.f32.gmra.mrb[0].mxu0 %v2513
    %v2583 = vpop.f32.mrb[0].mxu0
    %v2584 = vadd.f32 %v2504, %v2583
    %v2585 = vpop.f32.mrb[0].mxu0
    %2586 = vdwg.mxu0
    %2587 = vst [vmem:[#allocation17] sm:$0x3] %v2584
    %2589 = vrot.lane.b32.xlu0 %v2497, 32
    %v2590 = vpop.permute.xlu0 %2589
    %2593 = vst.msk [vmem:[#allocation18] sm:$0x3] %vm576, %v2402
    %2594 = vst.msk [vmem:[#allocation18 + $0x2] sm:$0x3] %vm576, %v2590
    %2597 = vrot.lane.b32.xlu0 %v2319, 96
    %v2598 = vpop.permute.xlu0 %2597
    %2599 = vrot.lane.b32.xlu0 %v2491, 96
    %v2600 = vpop.permute.xlu0 %2599
    %2603 = vst.msk [vmem:[#allocation20] sm:$0x3] %vm576, %v2598
    %2604 = vst.msk [vmem:[#allocation20 + $0x2] sm:$0x3] %vm576, %v2600
    // Predicated region
    $region78: #{tpu_custom_call.1} parent=1 // pred_check
      _
    $region79: #{tpu_custom_call.1} parent=1 // pred_check_branch
      %2606 = sbr.rel (0) target = $region81
    $region80: #{tpu_custom_call.1} parent=1 // pred_region
      %s2608 = ssub.s32 32, 32
      %2609 = vsyncadd [#allocation5], %s2608
      %s2611 = sshll.u32 [#allocation17], 4
      %s2612 = int_to_ptr.vmem [resolvable:$true] %s2611
      %2614 = dma.vmem_to_hbm [thread:$0]  %s2612, 32, %s11, [#allocation5]
    $region81: #{tpu_custom_call.1} parent=1 // pred_fallthru
      _
    // Predicated region
    $region82: #{tpu_custom_call.1} parent=1 // pred_check
      _
    $region83: #{tpu_custom_call.1} parent=1 // pred_check_branch
      %2616 = sbr.rel (0) target = $region85
    $region84: #{tpu_custom_call.1} parent=1 // pred_region
      %s2618 = ssub.s32 64, 64
      %2619 = vsyncadd [#allocation19], %s2618
      %s2620 = sshll.u32 [#allocation18], 4
      %s2621 = int_to_ptr.vmem [resolvable:$true] %s2620
      %2626 = dma.vmem_to_hbm [thread:$0]  %s2621, 64, %s12, [#allocation19], 32, 32, 2
    $region85: #{tpu_custom_call.1} parent=1 // pred_fallthru
      _
    // Predicated region
    $region86: #{tpu_custom_call.1} parent=1 // pred_check
      _
    $region87: #{tpu_custom_call.1} parent=1 // pred_check_branch
      %2628 = sbr.rel (0) target = $region89
    $region88: #{tpu_custom_call.1} parent=1 // pred_region
      %s2630 = ssub.s32 64, 64
      %2631 = vsyncadd [#allocation19], %s2630
      %s2632 = sshll.u32 [#allocation20], 4
      %s2633 = int_to_ptr.vmem [resolvable:$true] %s2632
      %2638 = dma.vmem_to_hbm [thread:$0]  %s2633, 64, %s13, [#allocation19], 32, 32, 2
    $region89: #{tpu_custom_call.1} parent=1 // pred_fallthru
      _
    // Predicated region
    $region90: #{tpu_custom_call.1} parent=1 // pred_check
      _
    $region91: #{tpu_custom_call.1} parent=1 // pred_check_branch
      %2640 = sbr.rel (0) target = $region93
    $region92: #{tpu_custom_call.1} parent=1 // pred_region
      %2641 = dma.done [#allocation5], 32
    $region93: #{tpu_custom_call.1} parent=1 // pred_fallthru
      _
    // Predicated region
    $region94: #{tpu_custom_call.1} parent=1 // pred_check
      _
    $region95: #{tpu_custom_call.1} parent=1 // pred_check_branch
      %2643 = sbr.rel (0) target = $region97
    $region96: #{tpu_custom_call.1} parent=1 // pred_region
      %2644 = dma.done [#allocation19], 64
    $region97: #{tpu_custom_call.1} parent=1 // pred_fallthru
      _
    // Predicated region
    $region98: #{tpu_custom_call.1} parent=1 // pred_check
      _
    $region99: #{tpu_custom_call.1} parent=1 // pred_check_branch
      %2646 = sbr.rel (0) target = $region101
    $region100: #{tpu_custom_call.1} parent=1 // pred_region
      %2647 = dma.done [#allocation19], 64
    $region101: #{tpu_custom_call.1} parent=1 // pred_fallthru
      _
    %2648 = vsyncpa [#allocation4], 1
    %2649 = vsyncpa [#allocation7], 1
    %2650 = vsyncpa [#allocation10], 1
    %2651 = vsyncpa [#allocation13], 1
    %2652 = vsyncpa [#allocation16], 1
    %2653 = vsyncpa [#allocation5], 1
    %2654 = vsyncpa [#allocation19], 1

</llo_original>
